<compile_context>
chip_gen: v6e
topology: v6e:2x2x1
jax: 0.10.0
libtpu: 0.0.40
codegen_flags: <defaults>
</compile_context>

<pallas_src>
import jax
import jax.numpy as jnp
from jax import lax
from jax.experimental import pallas as pl
from jax.experimental.pallas import tpu as pltpu


# ---------------------------------------------------------------------------
# Kernel helpers
# ---------------------------------------------------------------------------

def _replicate_pad_hw(t, pad=2):
    """ReplicatePad2d(pad) on a channels-last (N, H, W, C) value.

    H is a leading dim and W the sublane dim, so both concats are cheap
    (no lane-axis shifts/selects)."""
    t = jnp.concatenate([t[:, :1]] * pad + [t] + [t[:, -1:]] * pad, axis=1)
    t = jnp.concatenate([t[:, :, :1]] * pad + [t] + [t[:, :, -1:]] * pad, axis=2)
    return t


def _im2col_into(xp, cols_ref, c):
    """Write the 25 (M, C) conv taps of xp (N, H+4, W+4, C) into the scratch ref.

    Column order is (kh, kw, cin), matching the wrapper's weight reshape.  Using
    scratch stores (idle vst slots) instead of a 25-piece lane concat keeps the
    vector-ALU/XLU slots free for the rest of the kernel."""
    n, hp, wp, _ = xp.shape
    h, w = hp - 4, wp - 4
    m = n * h * w
    for kh in range(5):
        for kw in range(5):
            tap = xp[:, kh:kh + h, kw:kw + w, :].reshape(m, c)   # (M, C)
            c0 = (kh * 5 + kw) * c
            cols_ref[:, c0:c0 + c] = tap


def _bn_lrelu(y, axis):
    """Train-mode BatchNorm (gamma=1, beta=0, biased var, eps=1e-5) + LeakyReLU(0.1),
    with statistics reduced along `axis` (the M axis)."""
    mean = jnp.mean(y, axis=axis, keepdims=True)
    var = jnp.mean(jnp.square(y - mean), axis=axis, keepdims=True)
    yn = (y - mean) * lax.rsqrt(var + 1e-5)
    return jnp.where(yn >= 0, yn, 0.1 * yn)


# ---------------------------------------------------------------------------
# Fused Pallas kernel
# ---------------------------------------------------------------------------

def _down_fused_kernel(x_ref, w1_ref, w2_ref, o_ref, cols1_ref, cols2_ref):
    """Fused MaxPool2d(2) -> 2x [ReplicatePad(2) + Conv5x5 + BN + LeakyReLU(0.1)].

    x_ref    : (2, 2, N, H, W, Cin) f32 -- pool phases leading, channels-last minor
    w1_ref   : (K1p, Cout)          f32 -- conv1 weights, rows (kh, kw, cin), K-padded
    w2_ref   : (K2p, Cout)          f32 -- conv2 weights, rows (kh, kw, cin), K-padded
    o_ref    : (Cout, N*H*W)        f32 -- lane-dense output slab
    cols*_ref: (N*H*W, K*p)         f32 -- VMEM scratch for the im2col patch slabs
    """
    _, _, N, H, W, Cin = x_ref.shape
    Cout = o_ref.shape[0]
    M = N * H * W
    K1, K1p = 25 * Cin, cols1_ref.shape[1]
    K2, K2p = 25 * Cout, cols2_ref.shape[1]

    # ---- MaxPool2d(2): the 2x2 phases are leading axes -> 3 elementwise maxes ---
    pooled = jnp.maximum(jnp.maximum(x_ref[0, 0], x_ref[0, 1]),
                         jnp.maximum(x_ref[1, 0], x_ref[1, 1]))      # (N, H, W, Cin)

    # ---- block 1: replicate-pad + 5x5 conv (single im2col matmul) + BN + act ----
    if K1p > K1:   # zero the K-alignment pad lanes once (their weight rows are 0)
        cols1_ref[:, K1:K1p] = jnp.zeros((M, K1p - K1), jnp.float32)
    _im2col_into(_replicate_pad_hw(pooled), cols1_ref, Cin)
    y1 = jnp.dot(cols1_ref[...], w1_ref[...],
                 preferred_element_type=jnp.float32)                  # (M, Cout)
    # BN over M (axis 0).  y1 stays in (M, Cout) layout because conv2's im2col
    # consumes it directly; only the final result is transposed to (Cout, M).
    y1 = _bn_lrelu(y1, axis=0)

    # ---- block 2 ----------------------------------------------------------------
    if K2p > K2:
        cols2_ref[:, K2:K2p] = jnp.zeros((M, K2p - K2), jnp.float32)
    _im2col_into(_replicate_pad_hw(y1.reshape(N, H, W, Cout)), cols2_ref, Cout)
    y2 = jnp.dot(cols2_ref[...], w2_ref[...],
                 preferred_element_type=jnp.float32)                  # (M, Cout)

    # ---- epilogue in (Cout, M): lane-reduce BN + one-vreg act + unmasked store ---
    y2 = y2.T                                                         # (Cout, M)
    y2 = _bn_lrelu(y2, axis=1)
    o_ref[...] = y2.astype(o_ref.dtype)


# ---------------------------------------------------------------------------
# Wrapper (tiny one-time layout plumbing lives in XLA, outside the kernel)
# ---------------------------------------------------------------------------

def _pad_k(w, kp):
    k = w.shape[0]
    if kp == k:
        return w
    return jnp.concatenate([w, jnp.zeros((kp - k,) + w.shape[1:], w.dtype)], axis=0)


@jax.jit
def down_forward(x_nchw, params):
    """Equivalent of down(in_ch, out_ch).forward.  Input/output are NCHW."""
    N, Cin, H0, W0 = x_nchw.shape
    H, W = H0 // 2, W0 // 2
    M = N * H * W
    Cout = params["w1"].shape[-1]
    K1, K2 = 25 * Cin, 25 * Cout
    K1p, K2p = ((K1 + 7) // 8) * 8, ((K2 + 7) // 8) * 8

    # Expose the 2x2 pool phases as leading axes and make the minor dims (W, Cin)
    # channels-last so the kernel never transposes NCHW data.
    x_in = x_nchw.reshape(N, Cin, H, 2, W, 2).transpose(3, 5, 0, 2, 4, 1)

    # HWIO conv weights -> (K, Cout) matmul operands, rows ordered (kh, kw, cin)
    # to match the kernel's tap layout, zero-padded so K is a multiple of 8.
    w1 = _pad_k(params["w1"].reshape(K1, Cout), K1p)
    w2 = _pad_k(params["w2"].reshape(K2, Cout), K2p)
    # Conv biases are intentionally NOT passed: a per-channel bias is cancelled
    # exactly by the train-mode BatchNorm (gamma=1, beta=0) mean subtraction.

    out = pl.pallas_call(
        _down_fused_kernel,
        out_shape=jax.ShapeDtypeStruct((Cout, M), x_nchw.dtype),
        scratch_shapes=[pltpu.VMEM((M, K1p), jnp.float32),
                        pltpu.VMEM((M, K2p), jnp.float32)],
        compiler_params=pltpu.CompilerParams(vmem_limit_bytes=32 * 1024 * 1024),
    )(x_in, w1, w2)

    # Lane-dense (Cout, N*H*W) kernel output -> NCHW (tiny wrapper-side swap).
    return out.reshape(Cout, N, H, W).transpose(1, 0, 2, 3)


def make_down_params(key, in_ch, out_ch):
    """xavier_uniform conv weights (PyTorch (O,I,5,5) -> HWIO), bias=0.01."""
    k1, k2 = jax.random.split(key)

    def xavier(k, o, i):
        fan_in, fan_out = i * 25, o * 25
        bound = (6.0 / (fan_in + fan_out)) ** 0.5
        w_oihw = jax.random.uniform(k, (o, i, 5, 5), jnp.float32, -bound, bound)
        return jnp.transpose(w_oihw, (2, 3, 1, 0))   # -> (5, 5, I, O)

    return {
        "w1": xavier(k1, out_ch, in_ch),
        "b1": jnp.full((out_ch,), 0.01, jnp.float32),
        "w2": xavier(k2, out_ch, out_ch),
        "b2": jnp.full((out_ch,), 0.01, jnp.float32),
    }


# ---------------------------------------------------------------------------
# Pure-JAX reference (correctness check only)
# ---------------------------------------------------------------------------

def _down_ref(x_nchw, params):
    x = jnp.transpose(x_nchw, (0, 2, 3, 1))
    N, H, W, C = x.shape
    x = jnp.max(x.reshape(N, H // 2, 2, W // 2, 2, C), axis=(2, 4))

    def block(x, w, b):
        xp = jnp.pad(x, ((0, 0), (2, 2), (2, 2), (0, 0)), mode="edge")
        y = lax.conv_general_dilated(
            xp, w, window_strides=(1, 1), padding="VALID",
            dimension_numbers=("NHWC", "HWIO", "NHWC")) + b
        mean = jnp.mean(y, axis=(0, 1, 2), keepdims=True)
        var = jnp.mean(jnp.square(y - mean), axis=(0, 1, 2), keepdims=True)
        y = (y - mean) * lax.rsqrt(var + 1e-5)
        return jnp.where(y >= 0, y, 0.1 * y)

    x = block(x, params["w1"], params["b1"])
    x = block(x, params["w2"], params["b2"])
    return jnp.transpose(x, (0, 3, 1, 2))


# ---------------------------------------------------------------------------

if __name__ == "__main__":
    key = jax.random.PRNGKey(0)
    kx, kp = jax.random.split(key)

    N, IN_CH, OUT_CH, S = 2, 4, 8, 16
    x = jax.random.normal(kx, (N, IN_CH, S, S), jnp.float32)   # NCHW like PyTorch
    params = make_down_params(kp, IN_CH, OUT_CH)

    out = jax.block_until_ready(down_forward(x, params))

    ref = _down_ref(x, params)
    assert out.shape == (N, OUT_CH, S // 2, S // 2), out.shape
    assert jnp.allclose(out, ref, atol=1e-3, rtol=1e-3), "mismatch vs reference"

    print("KERNEL_OK")
</pallas_src>

<mosaic_0001>
module attributes {stable_mosaic.version = 11 : i64} {
  func.func @_down_fused_kernel(%arg0: memref<2x2x2x8x8x4xf32, #tpu.memory_space<vmem>>, %arg1: memref<104x8xf32, #tpu.memory_space<vmem>>, %arg2: memref<200x8xf32, #tpu.memory_space<vmem>>, %arg3: memref<8x128xf32, #tpu.memory_space<vmem>>, %arg4: memref<128x104xf32, #tpu.memory_space<vmem>>, %arg5: memref<128x200xf32, #tpu.memory_space<vmem>>) attributes {dimension_semantics = [], scalar_prefetch = 0 : i64, scratch_operands = 2 : i64, tpu.core_type = #tpu.core_type<tc>} {
    %c0 = arith.constant 0 : index
    %c0_0 = arith.constant 0 : index
    %c0_1 = arith.constant 0 : index
    %c0_2 = arith.constant 0 : index
    %c0_3 = arith.constant 0 : index
    %c0_4 = arith.constant 0 : index
    %0 = vector.load %arg0[%c0, %c0_0, %c0_1, %c0_2, %c0_3, %c0_4] : memref<2x2x2x8x8x4xf32, #tpu.memory_space<vmem>>, vector<1x1x2x8x8x4xf32>
    %1 = vector.shape_cast %0 : vector<1x1x2x8x8x4xf32> to vector<2x8x8x4xf32>
    %c0_5 = arith.constant 0 : index
    %c1 = arith.constant 1 : index
    %c0_6 = arith.constant 0 : index
    %c0_7 = arith.constant 0 : index
    %c0_8 = arith.constant 0 : index
    %c0_9 = arith.constant 0 : index
    %2 = vector.load %arg0[%c0_5, %c1, %c0_6, %c0_7, %c0_8, %c0_9] : memref<2x2x2x8x8x4xf32, #tpu.memory_space<vmem>>, vector<1x1x2x8x8x4xf32>
    %3 = vector.shape_cast %2 : vector<1x1x2x8x8x4xf32> to vector<2x8x8x4xf32>
    %4 = arith.maximumf %1, %3 : vector<2x8x8x4xf32>
    %c1_10 = arith.constant 1 : index
    %c0_11 = arith.constant 0 : index
    %c0_12 = arith.constant 0 : index
    %c0_13 = arith.constant 0 : index
    %c0_14 = arith.constant 0 : index
    %c0_15 = arith.constant 0 : index
    %5 = vector.load %arg0[%c1_10, %c0_11, %c0_12, %c0_13, %c0_14, %c0_15] : memref<2x2x2x8x8x4xf32, #tpu.memory_space<vmem>>, vector<1x1x2x8x8x4xf32>
    %6 = vector.shape_cast %5 : vector<1x1x2x8x8x4xf32> to vector<2x8x8x4xf32>
    %c1_16 = arith.constant 1 : index
    %c1_17 = arith.constant 1 : index
    %c0_18 = arith.constant 0 : index
    %c0_19 = arith.constant 0 : index
    %c0_20 = arith.constant 0 : index
    %c0_21 = arith.constant 0 : index
    %7 = vector.load %arg0[%c1_16, %c1_17, %c0_18, %c0_19, %c0_20, %c0_21] : memref<2x2x2x8x8x4xf32, #tpu.memory_space<vmem>>, vector<1x1x2x8x8x4xf32>
    %8 = vector.shape_cast %7 : vector<1x1x2x8x8x4xf32> to vector<2x8x8x4xf32>
    %9 = arith.maximumf %6, %8 : vector<2x8x8x4xf32>
    %10 = arith.maximumf %4, %9 : vector<2x8x8x4xf32>
    %cst = arith.constant 0.000000e+00 : f32
    %11 = vector.broadcast %cst : f32 to vector<128x4xf32>
    %c0_22 = arith.constant 0 : index
    %c100 = arith.constant 100 : index
    %12 = vector.load %arg4[%c0_22, %c100] : memref<128x104xf32, #tpu.memory_space<vmem>>, vector<128x4xf32>
    tpu.vector_store %arg4[%c0_22, %c100], %11 {strides = array<i32>} : memref<128x104xf32, #tpu.memory_space<vmem>>, vector<128x4xf32>,
    %13 = vector.extract_strided_slice %10 {offsets = [0, 0, 0, 0], sizes = [2, 1, 8, 4], strides = [1, 1, 1, 1]} : vector<2x8x8x4xf32> to vector<2x1x8x4xf32>
    %14 = vector.extract_strided_slice %10 {offsets = [0, 7, 0, 0], sizes = [2, 1, 8, 4], strides = [1, 1, 1, 1]} : vector<2x8x8x4xf32> to vector<2x1x8x4xf32>
    %15 = tpu.concatenate %13, %13, %10, %14, %14 in 1 : vector<2x1x8x4xf32>, vector<2x1x8x4xf32>, vector<2x8x8x4xf32>, vector<2x1x8x4xf32>, vector<2x1x8x4xf32> -> vector<2x12x8x4xf32>
    %16 = vector.extract_strided_slice %15 {offsets = [0, 0, 0, 0], sizes = [2, 12, 1, 4], strides = [1, 1, 1, 1]} : vector<2x12x8x4xf32> to vector<2x12x1x4xf32>
    %17 = vector.extract_strided_slice %15 {offsets = [0, 0, 7, 0], sizes = [2, 12, 1, 4], strides = [1, 1, 1, 1]} : vector<2x12x8x4xf32> to vector<2x12x1x4xf32>
    %18 = tpu.concatenate %16, %16, %15, %17, %17 in 2 : vector<2x12x1x4xf32>, vector<2x12x1x4xf32>, vector<2x12x8x4xf32>, vector<2x12x1x4xf32>, vector<2x12x1x4xf32> -> vector<2x12x12x4xf32>
    %19 = vector.extract_strided_slice %18 {offsets = [0, 0, 0, 0], sizes = [2, 8, 8, 4], strides = [1, 1, 1, 1]} : vector<2x12x12x4xf32> to vector<2x8x8x4xf32>
    %20 = vector.shape_cast %19 : vector<2x8x8x4xf32> to vector<128x4xf32>
    %c0_23 = arith.constant 0 : index
    %c0_24 = arith.constant 0 : index
    %21 = vector.load %arg4[%c0_23, %c0_24] : memref<128x104xf32, #tpu.memory_space<vmem>>, vector<128x4xf32>
    tpu.vector_store %arg4[%c0_23, %c0_24], %20 {strides = array<i32>} : memref<128x104xf32, #tpu.memory_space<vmem>>, vector<128x4xf32>,
    %22 = vector.extract_strided_slice %18 {offsets = [0, 0, 1, 0], sizes = [2, 8, 8, 4], strides = [1, 1, 1, 1]} : vector<2x12x12x4xf32> to vector<2x8x8x4xf32>
    %23 = vector.shape_cast %22 : vector<2x8x8x4xf32> to vector<128x4xf32>
    %c0_25 = arith.constant 0 : index
    %c4 = arith.constant 4 : index
    %24 = vector.load %arg4[%c0_25, %c4] : memref<128x104xf32, #tpu.memory_space<vmem>>, vector<128x4xf32>
    tpu.vector_store %arg4[%c0_25, %c4], %23 {strides = array<i32>} : memref<128x104xf32, #tpu.memory_space<vmem>>, vector<128x4xf32>,
    %25 = vector.extract_strided_slice %18 {offsets = [0, 0, 2, 0], sizes = [2, 8, 8, 4], strides = [1, 1, 1, 1]} : vector<2x12x12x4xf32> to vector<2x8x8x4xf32>
    %26 = vector.shape_cast %25 : vector<2x8x8x4xf32> to vector<128x4xf32>
    %c0_26 = arith.constant 0 : index
    %c8 = arith.constant 8 : index
    %27 = vector.load %arg4[%c0_26, %c8] : memref<128x104xf32, #tpu.memory_space<vmem>>, vector<128x4xf32>
    tpu.vector_store %arg4[%c0_26, %c8], %26 {strides = array<i32>} : memref<128x104xf32, #tpu.memory_space<vmem>>, vector<128x4xf32>,
    %28 = vector.extract_strided_slice %18 {offsets = [0, 0, 3, 0], sizes = [2, 8, 8, 4], strides = [1, 1, 1, 1]} : vector<2x12x12x4xf32> to vector<2x8x8x4xf32>
    %29 = vector.shape_cast %28 : vector<2x8x8x4xf32> to vector<128x4xf32>
    %c0_27 = arith.constant 0 : index
    %c12 = arith.constant 12 : index
    %30 = vector.load %arg4[%c0_27, %c12] : memref<128x104xf32, #tpu.memory_space<vmem>>, vector<128x4xf32>
    tpu.vector_store %arg4[%c0_27, %c12], %29 {strides = array<i32>} : memref<128x104xf32, #tpu.memory_space<vmem>>, vector<128x4xf32>,
    %31 = vector.extract_strided_slice %18 {offsets = [0, 0, 4, 0], sizes = [2, 8, 8, 4], strides = [1, 1, 1, 1]} : vector<2x12x12x4xf32> to vector<2x8x8x4xf32>
    %32 = vector.shape_cast %31 : vector<2x8x8x4xf32> to vector<128x4xf32>
    %c0_28 = arith.constant 0 : index
    %c16 = arith.constant 16 : index
    %33 = vector.load %arg4[%c0_28, %c16] : memref<128x104xf32, #tpu.memory_space<vmem>>, vector<128x4xf32>
    tpu.vector_store %arg4[%c0_28, %c16], %32 {strides = array<i32>} : memref<128x104xf32, #tpu.memory_space<vmem>>, vector<128x4xf32>,
    %34 = vector.extract_strided_slice %18 {offsets = [0, 1, 0, 0], sizes = [2, 8, 8, 4], strides = [1, 1, 1, 1]} : vector<2x12x12x4xf32> to vector<2x8x8x4xf32>
    %35 = vector.shape_cast %34 : vector<2x8x8x4xf32> to vector<128x4xf32>
    %c0_29 = arith.constant 0 : index
    %c20 = arith.constant 20 : index
    %36 = vector.load %arg4[%c0_29, %c20] : memref<128x104xf32, #tpu.memory_space<vmem>>, vector<128x4xf32>
    tpu.vector_store %arg4[%c0_29, %c20], %35 {strides = array<i32>} : memref<128x104xf32, #tpu.memory_space<vmem>>, vector<128x4xf32>,
    %37 = vector.extract_strided_slice %18 {offsets = [0, 1, 1, 0], sizes = [2, 8, 8, 4], strides = [1, 1, 1, 1]} : vector<2x12x12x4xf32> to vector<2x8x8x4xf32>
    %38 = vector.shape_cast %37 : vector<2x8x8x4xf32> to vector<128x4xf32>
    %c0_30 = arith.constant 0 : index
    %c24 = arith.constant 24 : index
    %39 = vector.load %arg4[%c0_30, %c24] : memref<128x104xf32, #tpu.memory_space<vmem>>, vector<128x4xf32>
    tpu.vector_store %arg4[%c0_30, %c24], %38 {strides = array<i32>} : memref<128x104xf32, #tpu.memory_space<vmem>>, vector<128x4xf32>,
    %40 = vector.extract_strided_slice %18 {offsets = [0, 1, 2, 0], sizes = [2, 8, 8, 4], strides = [1, 1, 1, 1]} : vector<2x12x12x4xf32> to vector<2x8x8x4xf32>
    %41 = vector.shape_cast %40 : vector<2x8x8x4xf32> to vector<128x4xf32>
    %c0_31 = arith.constant 0 : index
    %c28 = arith.constant 28 : index
    %42 = vector.load %arg4[%c0_31, %c28] : memref<128x104xf32, #tpu.memory_space<vmem>>, vector<128x4xf32>
    tpu.vector_store %arg4[%c0_31, %c28], %41 {strides = array<i32>} : memref<128x104xf32, #tpu.memory_space<vmem>>, vector<128x4xf32>,
    %43 = vector.extract_strided_slice %18 {offsets = [0, 1, 3, 0], sizes = [2, 8, 8, 4], strides = [1, 1, 1, 1]} : vector<2x12x12x4xf32> to vector<2x8x8x4xf32>
    %44 = vector.shape_cast %43 : vector<2x8x8x4xf32> to vector<128x4xf32>
    %c0_32 = arith.constant 0 : index
    %c32 = arith.constant 32 : index
    %45 = vector.load %arg4[%c0_32, %c32] : memref<128x104xf32, #tpu.memory_space<vmem>>, vector<128x4xf32>
    tpu.vector_store %arg4[%c0_32, %c32], %44 {strides = array<i32>} : memref<128x104xf32, #tpu.memory_space<vmem>>, vector<128x4xf32>,
    %46 = vector.extract_strided_slice %18 {offsets = [0, 1, 4, 0], sizes = [2, 8, 8, 4], strides = [1, 1, 1, 1]} : vector<2x12x12x4xf32> to vector<2x8x8x4xf32>
    %47 = vector.shape_cast %46 : vector<2x8x8x4xf32> to vector<128x4xf32>
    %c0_33 = arith.constant 0 : index
    %c36 = arith.constant 36 : index
    %48 = vector.load %arg4[%c0_33, %c36] : memref<128x104xf32, #tpu.memory_space<vmem>>, vector<128x4xf32>
    tpu.vector_store %arg4[%c0_33, %c36], %47 {strides = array<i32>} : memref<128x104xf32, #tpu.memory_space<vmem>>, vector<128x4xf32>,
    %49 = vector.extract_strided_slice %18 {offsets = [0, 2, 0, 0], sizes = [2, 8, 8, 4], strides = [1, 1, 1, 1]} : vector<2x12x12x4xf32> to vector<2x8x8x4xf32>
    %50 = vector.shape_cast %49 : vector<2x8x8x4xf32> to vector<128x4xf32>
    %c0_34 = arith.constant 0 : index
    %c40 = arith.constant 40 : index
    %51 = vector.load %arg4[%c0_34, %c40] : memref<128x104xf32, #tpu.memory_space<vmem>>, vector<128x4xf32>
    tpu.vector_store %arg4[%c0_34, %c40], %50 {strides = array<i32>} : memref<128x104xf32, #tpu.memory_space<vmem>>, vector<128x4xf32>,
    %52 = vector.extract_strided_slice %18 {offsets = [0, 2, 1, 0], sizes = [2, 8, 8, 4], strides = [1, 1, 1, 1]} : vector<2x12x12x4xf32> to vector<2x8x8x4xf32>
    %53 = vector.shape_cast %52 : vector<2x8x8x4xf32> to vector<128x4xf32>
    %c0_35 = arith.constant 0 : index
    %c44 = arith.constant 44 : index
    %54 = vector.load %arg4[%c0_35, %c44] : memref<128x104xf32, #tpu.memory_space<vmem>>, vector<128x4xf32>
    tpu.vector_store %arg4[%c0_35, %c44], %53 {strides = array<i32>} : memref<128x104xf32, #tpu.memory_space<vmem>>, vector<128x4xf32>,
    %55 = vector.extract_strided_slice %18 {offsets = [0, 2, 2, 0], sizes = [2, 8, 8, 4], strides = [1, 1, 1, 1]} : vector<2x12x12x4xf32> to vector<2x8x8x4xf32>
    %56 = vector.shape_cast %55 : vector<2x8x8x4xf32> to vector<128x4xf32>
    %c0_36 = arith.constant 0 : index
    %c48 = arith.constant 48 : index
    %57 = vector.load %arg4[%c0_36, %c48] : memref<128x104xf32, #tpu.memory_space<vmem>>, vector<128x4xf32>
    tpu.vector_store %arg4[%c0_36, %c48], %56 {strides = array<i32>} : memref<128x104xf32, #tpu.memory_space<vmem>>, vector<128x4xf32>,
    %58 = vector.extract_strided_slice %18 {offsets = [0, 2, 3, 0], sizes = [2, 8, 8, 4], strides = [1, 1, 1, 1]} : vector<2x12x12x4xf32> to vector<2x8x8x4xf32>
    %59 = vector.shape_cast %58 : vector<2x8x8x4xf32> to vector<128x4xf32>
    %c0_37 = arith.constant 0 : index
    %c52 = arith.constant 52 : index
    %60 = vector.load %arg4[%c0_37, %c52] : memref<128x104xf32, #tpu.memory_space<vmem>>, vector<128x4xf32>
    tpu.vector_store %arg4[%c0_37, %c52], %59 {strides = array<i32>} : memref<128x104xf32, #tpu.memory_space<vmem>>, vector<128x4xf32>,
    %61 = vector.extract_strided_slice %18 {offsets = [0, 2, 4, 0], sizes = [2, 8, 8, 4], strides = [1, 1, 1, 1]} : vector<2x12x12x4xf32> to vector<2x8x8x4xf32>
    %62 = vector.shape_cast %61 : vector<2x8x8x4xf32> to vector<128x4xf32>
    %c0_38 = arith.constant 0 : index
    %c56 = arith.constant 56 : index
    %63 = vector.load %arg4[%c0_38, %c56] : memref<128x104xf32, #tpu.memory_space<vmem>>, vector<128x4xf32>
    tpu.vector_store %arg4[%c0_38, %c56], %62 {strides = array<i32>} : memref<128x104xf32, #tpu.memory_space<vmem>>, vector<128x4xf32>,
    %64 = vector.extract_strided_slice %18 {offsets = [0, 3, 0, 0], sizes = [2, 8, 8, 4], strides = [1, 1, 1, 1]} : vector<2x12x12x4xf32> to vector<2x8x8x4xf32>
    %65 = vector.shape_cast %64 : vector<2x8x8x4xf32> to vector<128x4xf32>
    %c0_39 = arith.constant 0 : index
    %c60 = arith.constant 60 : index
    %66 = vector.load %arg4[%c0_39, %c60] : memref<128x104xf32, #tpu.memory_space<vmem>>, vector<128x4xf32>
    tpu.vector_store %arg4[%c0_39, %c60], %65 {strides = array<i32>} : memref<128x104xf32, #tpu.memory_space<vmem>>, vector<128x4xf32>,
    %67 = vector.extract_strided_slice %18 {offsets = [0, 3, 1, 0], sizes = [2, 8, 8, 4], strides = [1, 1, 1, 1]} : vector<2x12x12x4xf32> to vector<2x8x8x4xf32>
    %68 = vector.shape_cast %67 : vector<2x8x8x4xf32> to vector<128x4xf32>
    %c0_40 = arith.constant 0 : index
    %c64 = arith.constant 64 : index
    %69 = vector.load %arg4[%c0_40, %c64] : memref<128x104xf32, #tpu.memory_space<vmem>>, vector<128x4xf32>
    tpu.vector_store %arg4[%c0_40, %c64], %68 {strides = array<i32>} : memref<128x104xf32, #tpu.memory_space<vmem>>, vector<128x4xf32>,
    %70 = vector.extract_strided_slice %18 {offsets = [0, 3, 2, 0], sizes = [2, 8, 8, 4], strides = [1, 1, 1, 1]} : vector<2x12x12x4xf32> to vector<2x8x8x4xf32>
    %71 = vector.shape_cast %70 : vector<2x8x8x4xf32> to vector<128x4xf32>
    %c0_41 = arith.constant 0 : index
    %c68 = arith.constant 68 : index
    %72 = vector.load %arg4[%c0_41, %c68] : memref<128x104xf32, #tpu.memory_space<vmem>>, vector<128x4xf32>
    tpu.vector_store %arg4[%c0_41, %c68], %71 {strides = array<i32>} : memref<128x104xf32, #tpu.memory_space<vmem>>, vector<128x4xf32>,
    %73 = vector.extract_strided_slice %18 {offsets = [0, 3, 3, 0], sizes = [2, 8, 8, 4], strides = [1, 1, 1, 1]} : vector<2x12x12x4xf32> to vector<2x8x8x4xf32>
    %74 = vector.shape_cast %73 : vector<2x8x8x4xf32> to vector<128x4xf32>
    %c0_42 = arith.constant 0 : index
    %c72 = arith.constant 72 : index
    %75 = vector.load %arg4[%c0_42, %c72] : memref<128x104xf32, #tpu.memory_space<vmem>>, vector<128x4xf32>
    tpu.vector_store %arg4[%c0_42, %c72], %74 {strides = array<i32>} : memref<128x104xf32, #tpu.memory_space<vmem>>, vector<128x4xf32>,
    %76 = vector.extract_strided_slice %18 {offsets = [0, 3, 4, 0], sizes = [2, 8, 8, 4], strides = [1, 1, 1, 1]} : vector<2x12x12x4xf32> to vector<2x8x8x4xf32>
    %77 = vector.shape_cast %76 : vector<2x8x8x4xf32> to vector<128x4xf32>
    %c0_43 = arith.constant 0 : index
    %c76 = arith.constant 76 : index
    %78 = vector.load %arg4[%c0_43, %c76] : memref<128x104xf32, #tpu.memory_space<vmem>>, vector<128x4xf32>
    tpu.vector_store %arg4[%c0_43, %c76], %77 {strides = array<i32>} : memref<128x104xf32, #tpu.memory_space<vmem>>, vector<128x4xf32>,
    %79 = vector.extract_strided_slice %18 {offsets = [0, 4, 0, 0], sizes = [2, 8, 8, 4], strides = [1, 1, 1, 1]} : vector<2x12x12x4xf32> to vector<2x8x8x4xf32>
    %80 = vector.shape_cast %79 : vector<2x8x8x4xf32> to vector<128x4xf32>
    %c0_44 = arith.constant 0 : index
    %c80 = arith.constant 80 : index
    %81 = vector.load %arg4[%c0_44, %c80] : memref<128x104xf32, #tpu.memory_space<vmem>>, vector<128x4xf32>
    tpu.vector_store %arg4[%c0_44, %c80], %80 {strides = array<i32>} : memref<128x104xf32, #tpu.memory_space<vmem>>, vector<128x4xf32>,
    %82 = vector.extract_strided_slice %18 {offsets = [0, 4, 1, 0], sizes = [2, 8, 8, 4], strides = [1, 1, 1, 1]} : vector<2x12x12x4xf32> to vector<2x8x8x4xf32>
    %83 = vector.shape_cast %82 : vector<2x8x8x4xf32> to vector<128x4xf32>
    %c0_45 = arith.constant 0 : index
    %c84 = arith.constant 84 : index
    %84 = vector.load %arg4[%c0_45, %c84] : memref<128x104xf32, #tpu.memory_space<vmem>>, vector<128x4xf32>
    tpu.vector_store %arg4[%c0_45, %c84], %83 {strides = array<i32>} : memref<128x104xf32, #tpu.memory_space<vmem>>, vector<128x4xf32>,
    %85 = vector.extract_strided_slice %18 {offsets = [0, 4, 2, 0], sizes = [2, 8, 8, 4], strides = [1, 1, 1, 1]} : vector<2x12x12x4xf32> to vector<2x8x8x4xf32>
    %86 = vector.shape_cast %85 : vector<2x8x8x4xf32> to vector<128x4xf32>
    %c0_46 = arith.constant 0 : index
    %c88 = arith.constant 88 : index
    %87 = vector.load %arg4[%c0_46, %c88] : memref<128x104xf32, #tpu.memory_space<vmem>>, vector<128x4xf32>
    tpu.vector_store %arg4[%c0_46, %c88], %86 {strides = array<i32>} : memref<128x104xf32, #tpu.memory_space<vmem>>, vector<128x4xf32>,
    %88 = vector.extract_strided_slice %18 {offsets = [0, 4, 3, 0], sizes = [2, 8, 8, 4], strides = [1, 1, 1, 1]} : vector<2x12x12x4xf32> to vector<2x8x8x4xf32>
    %89 = vector.shape_cast %88 : vector<2x8x8x4xf32> to vector<128x4xf32>
    %c0_47 = arith.constant 0 : index
    %c92 = arith.constant 92 : index
    %90 = vector.load %arg4[%c0_47, %c92] : memref<128x104xf32, #tpu.memory_space<vmem>>, vector<128x4xf32>
    tpu.vector_store %arg4[%c0_47, %c92], %89 {strides = array<i32>} : memref<128x104xf32, #tpu.memory_space<vmem>>, vector<128x4xf32>,
    %91 = vector.extract_strided_slice %18 {offsets = [0, 4, 4, 0], sizes = [2, 8, 8, 4], strides = [1, 1, 1, 1]} : vector<2x12x12x4xf32> to vector<2x8x8x4xf32>
    %92 = vector.shape_cast %91 : vector<2x8x8x4xf32> to vector<128x4xf32>
    %c0_48 = arith.constant 0 : index
    %c96 = arith.constant 96 : index
    %93 = vector.load %arg4[%c0_48, %c96] : memref<128x104xf32, #tpu.memory_space<vmem>>, vector<128x4xf32>
    tpu.vector_store %arg4[%c0_48, %c96], %92 {strides = array<i32>} : memref<128x104xf32, #tpu.memory_space<vmem>>, vector<128x4xf32>,
    %c0_49 = arith.constant 0 : index
    %c0_50 = arith.constant 0 : index
    %94 = vector.load %arg4[%c0_49, %c0_50] : memref<128x104xf32, #tpu.memory_space<vmem>>, vector<128x104xf32>
    %c0_51 = arith.constant 0 : index
    %c0_52 = arith.constant 0 : index
    %95 = vector.load %arg1[%c0_51, %c0_52] : memref<104x8xf32, #tpu.memory_space<vmem>>, vector<104x8xf32>
    %cst_53 = arith.constant dense<0.000000e+00> : vector<128x8xf32>
    %96 = tpu.matmul %94, %95, %cst_53 {dimension_numbers = #tpu.dot_dimension_numbers<[1], [0], [0], [1], [0, 0, 1, 1], [], []>} : vector<128x104xf32>, vector<104x8xf32>, vector<128x8xf32> -> vector<128x8xf32>
    %cst_54 = arith.constant dense<0.000000e+00> : vector<8xf32>
    %97 = vector.multi_reduction <add>, %96, %cst_54 [0] : vector<128x8xf32> to vector<8xf32>
    %98 = vector.shape_cast %97 : vector<8xf32> to vector<1x8xf32>
    %cst_55 = arith.constant 1.280000e+02 : f32
    %99 = vector.broadcast %cst_55 : f32 to vector<1x8xf32>
    %100 = arith.divf %98, %99 : vector<1x8xf32>
    %101 = vector.broadcast %100 : vector<1x8xf32> to vector<128x8xf32>
    %102 = arith.subf %96, %101 : vector<128x8xf32>
    %103 = arith.mulf %102, %102 : vector<128x8xf32>
    %cst_56 = arith.constant dense<0.000000e+00> : vector<8xf32>
    %104 = vector.multi_reduction <add>, %103, %cst_56 [0] : vector<128x8xf32> to vector<8xf32>
    %105 = vector.shape_cast %104 : vector<8xf32> to vector<1x8xf32>
    %cst_57 = arith.constant 1.280000e+02 : f32
    %106 = vector.broadcast %cst_57 : f32 to vector<1x8xf32>
    %107 = arith.divf %105, %106 : vector<1x8xf32>
    %108 = vector.broadcast %100 : vector<1x8xf32> to vector<128x8xf32>
    %109 = arith.subf %96, %108 : vector<128x8xf32>
    %cst_58 = arith.constant 9.99999974E-6 : f32
    %110 = vector.broadcast %cst_58 : f32 to vector<1x8xf32>
    %111 = arith.addf %107, %110 : vector<1x8xf32>
    %112 = math.rsqrt %111 : vector<1x8xf32>
    %113 = vector.broadcast %112 : vector<1x8xf32> to vector<128x8xf32>
    %114 = arith.mulf %109, %113 : vector<128x8xf32>
    %cst_59 = arith.constant 0.000000e+00 : f32
    %115 = vector.broadcast %cst_59 : f32 to vector<128x8xf32>
    %116 = arith.cmpf oge, %114, %115 : vector<128x8xf32>
    %cst_60 = arith.constant 1.000000e-01 : f32
    %117 = vector.broadcast %cst_60 : f32 to vector<128x8xf32>
    %118 = arith.mulf %117, %114 : vector<128x8xf32>
    %119 = arith.select %116, %114, %118 : vector<128x8xi1>, vector<128x8xf32>
    %120 = vector.shape_cast %119 : vector<128x8xf32> to vector<2x8x8x8xf32>
    %121 = vector.extract_strided_slice %120 {offsets = [0, 0, 0, 0], sizes = [2, 1, 8, 8], strides = [1, 1, 1, 1]} : vector<2x8x8x8xf32> to vector<2x1x8x8xf32>
    %122 = vector.extract_strided_slice %120 {offsets = [0, 7, 0, 0], sizes = [2, 1, 8, 8], strides = [1, 1, 1, 1]} : vector<2x8x8x8xf32> to vector<2x1x8x8xf32>
    %123 = tpu.concatenate %121, %121, %120, %122, %122 in 1 : vector<2x1x8x8xf32>, vector<2x1x8x8xf32>, vector<2x8x8x8xf32>, vector<2x1x8x8xf32>, vector<2x1x8x8xf32> -> vector<2x12x8x8xf32>
    %124 = vector.extract_strided_slice %123 {offsets = [0, 0, 0, 0], sizes = [2, 12, 1, 8], strides = [1, 1, 1, 1]} : vector<2x12x8x8xf32> to vector<2x12x1x8xf32>
    %125 = vector.extract_strided_slice %123 {offsets = [0, 0, 7, 0], sizes = [2, 12, 1, 8], strides = [1, 1, 1, 1]} : vector<2x12x8x8xf32> to vector<2x12x1x8xf32>
    %126 = tpu.concatenate %124, %124, %123, %125, %125 in 2 : vector<2x12x1x8xf32>, vector<2x12x1x8xf32>, vector<2x12x8x8xf32>, vector<2x12x1x8xf32>, vector<2x12x1x8xf32> -> vector<2x12x12x8xf32>
    %127 = vector.extract_strided_slice %126 {offsets = [0, 0, 0, 0], sizes = [2, 8, 8, 8], strides = [1, 1, 1, 1]} : vector<2x12x12x8xf32> to vector<2x8x8x8xf32>
    %128 = vector.shape_cast %127 : vector<2x8x8x8xf32> to vector<128x8xf32>
    %c0_61 = arith.constant 0 : index
    %c0_62 = arith.constant 0 : index
    %129 = vector.load %arg5[%c0_61, %c0_62] : memref<128x200xf32, #tpu.memory_space<vmem>>, vector<128x8xf32>
    tpu.vector_store %arg5[%c0_61, %c0_62], %128 {strides = array<i32>} : memref<128x200xf32, #tpu.memory_space<vmem>>, vector<128x8xf32>,
    %130 = vector.extract_strided_slice %126 {offsets = [0, 0, 1, 0], sizes = [2, 8, 8, 8], strides = [1, 1, 1, 1]} : vector<2x12x12x8xf32> to vector<2x8x8x8xf32>
    %131 = vector.shape_cast %130 : vector<2x8x8x8xf32> to vector<128x8xf32>
    %c0_63 = arith.constant 0 : index
    %c8_64 = arith.constant 8 : index
    %132 = vector.load %arg5[%c0_63, %c8_64] : memref<128x200xf32, #tpu.memory_space<vmem>>, vector<128x8xf32>
    tpu.vector_store %arg5[%c0_63, %c8_64], %131 {strides = array<i32>} : memref<128x200xf32, #tpu.memory_space<vmem>>, vector<128x8xf32>,
    %133 = vector.extract_strided_slice %126 {offsets = [0, 0, 2, 0], sizes = [2, 8, 8, 8], strides = [1, 1, 1, 1]} : vector<2x12x12x8xf32> to vector<2x8x8x8xf32>
    %134 = vector.shape_cast %133 : vector<2x8x8x8xf32> to vector<128x8xf32>
    %c0_65 = arith.constant 0 : index
    %c16_66 = arith.constant 16 : index
    %135 = vector.load %arg5[%c0_65, %c16_66] : memref<128x200xf32, #tpu.memory_space<vmem>>, vector<128x8xf32>
    tpu.vector_store %arg5[%c0_65, %c16_66], %134 {strides = array<i32>} : memref<128x200xf32, #tpu.memory_space<vmem>>, vector<128x8xf32>,
    %136 = vector.extract_strided_slice %126 {offsets = [0, 0, 3, 0], sizes = [2, 8, 8, 8], strides = [1, 1, 1, 1]} : vector<2x12x12x8xf32> to vector<2x8x8x8xf32>
    %137 = vector.shape_cast %136 : vector<2x8x8x8xf32> to vector<128x8xf32>
    %c0_67 = arith.constant 0 : index
    %c24_68 = arith.constant 24 : index
    %138 = vector.load %arg5[%c0_67, %c24_68] : memref<128x200xf32, #tpu.memory_space<vmem>>, vector<128x8xf32>
    tpu.vector_store %arg5[%c0_67, %c24_68], %137 {strides = array<i32>} : memref<128x200xf32, #tpu.memory_space<vmem>>, vector<128x8xf32>,
    %139 = vector.extract_strided_slice %126 {offsets = [0, 0, 4, 0], sizes = [2, 8, 8, 8], strides = [1, 1, 1, 1]} : vector<2x12x12x8xf32> to vector<2x8x8x8xf32>
    %140 = vector.shape_cast %139 : vector<2x8x8x8xf32> to vector<128x8xf32>
    %c0_69 = arith.constant 0 : index
    %c32_70 = arith.constant 32 : index
    %141 = vector.load %arg5[%c0_69, %c32_70] : memref<128x200xf32, #tpu.memory_space<vmem>>, vector<128x8xf32>
    tpu.vector_store %arg5[%c0_69, %c32_70], %140 {strides = array<i32>} : memref<128x200xf32, #tpu.memory_space<vmem>>, vector<128x8xf32>,
    %142 = vector.extract_strided_slice %126 {offsets = [0, 1, 0, 0], sizes = [2, 8, 8, 8], strides = [1, 1, 1, 1]} : vector<2x12x12x8xf32> to vector<2x8x8x8xf32>
    %143 = vector.shape_cast %142 : vector<2x8x8x8xf32> to vector<128x8xf32>
    %c0_71 = arith.constant 0 : index
    %c40_72 = arith.constant 40 : index
    %144 = vector.load %arg5[%c0_71, %c40_72] : memref<128x200xf32, #tpu.memory_space<vmem>>, vector<128x8xf32>
    tpu.vector_store %arg5[%c0_71, %c40_72], %143 {strides = array<i32>} : memref<128x200xf32, #tpu.memory_space<vmem>>, vector<128x8xf32>,
    %145 = vector.extract_strided_slice %126 {offsets = [0, 1, 1, 0], sizes = [2, 8, 8, 8], strides = [1, 1, 1, 1]} : vector<2x12x12x8xf32> to vector<2x8x8x8xf32>
    %146 = vector.shape_cast %145 : vector<2x8x8x8xf32> to vector<128x8xf32>
    %c0_73 = arith.constant 0 : index
    %c48_74 = arith.constant 48 : index
    %147 = vector.load %arg5[%c0_73, %c48_74] : memref<128x200xf32, #tpu.memory_space<vmem>>, vector<128x8xf32>
    tpu.vector_store %arg5[%c0_73, %c48_74], %146 {strides = array<i32>} : memref<128x200xf32, #tpu.memory_space<vmem>>, vector<128x8xf32>,
    %148 = vector.extract_strided_slice %126 {offsets = [0, 1, 2, 0], sizes = [2, 8, 8, 8], strides = [1, 1, 1, 1]} : vector<2x12x12x8xf32> to vector<2x8x8x8xf32>
    %149 = vector.shape_cast %148 : vector<2x8x8x8xf32> to vector<128x8xf32>
    %c0_75 = arith.constant 0 : index
    %c56_76 = arith.constant 56 : index
    %150 = vector.load %arg5[%c0_75, %c56_76] : memref<128x200xf32, #tpu.memory_space<vmem>>, vector<128x8xf32>
    tpu.vector_store %arg5[%c0_75, %c56_76], %149 {strides = array<i32>} : memref<128x200xf32, #tpu.memory_space<vmem>>, vector<128x8xf32>,
    %151 = vector.extract_strided_slice %126 {offsets = [0, 1, 3, 0], sizes = [2, 8, 8, 8], strides = [1, 1, 1, 1]} : vector<2x12x12x8xf32> to vector<2x8x8x8xf32>
    %152 = vector.shape_cast %151 : vector<2x8x8x8xf32> to vector<128x8xf32>
    %c0_77 = arith.constant 0 : index
    %c64_78 = arith.constant 64 : index
    %153 = vector.load %arg5[%c0_77, %c64_78] : memref<128x200xf32, #tpu.memory_space<vmem>>, vector<128x8xf32>
    tpu.vector_store %arg5[%c0_77, %c64_78], %152 {strides = array<i32>} : memref<128x200xf32, #tpu.memory_space<vmem>>, vector<128x8xf32>,
    %154 = vector.extract_strided_slice %126 {offsets = [0, 1, 4, 0], sizes = [2, 8, 8, 8], strides = [1, 1, 1, 1]} : vector<2x12x12x8xf32> to vector<2x8x8x8xf32>
    %155 = vector.shape_cast %154 : vector<2x8x8x8xf32> to vector<128x8xf32>
    %c0_79 = arith.constant 0 : index
    %c72_80 = arith.constant 72 : index
    %156 = vector.load %arg5[%c0_79, %c72_80] : memref<128x200xf32, #tpu.memory_space<vmem>>, vector<128x8xf32>
    tpu.vector_store %arg5[%c0_79, %c72_80], %155 {strides = array<i32>} : memref<128x200xf32, #tpu.memory_space<vmem>>, vector<128x8xf32>,
    %157 = vector.extract_strided_slice %126 {offsets = [0, 2, 0, 0], sizes = [2, 8, 8, 8], strides = [1, 1, 1, 1]} : vector<2x12x12x8xf32> to vector<2x8x8x8xf32>
    %158 = vector.shape_cast %157 : vector<2x8x8x8xf32> to vector<128x8xf32>
    %c0_81 = arith.constant 0 : index
    %c80_82 = arith.constant 80 : index
    %159 = vector.load %arg5[%c0_81, %c80_82] : memref<128x200xf32, #tpu.memory_space<vmem>>, vector<128x8xf32>
    tpu.vector_store %arg5[%c0_81, %c80_82], %158 {strides = array<i32>} : memref<128x200xf32, #tpu.memory_space<vmem>>, vector<128x8xf32>,
    %160 = vector.extract_strided_slice %126 {offsets = [0, 2, 1, 0], sizes = [2, 8, 8, 8], strides = [1, 1, 1, 1]} : vector<2x12x12x8xf32> to vector<2x8x8x8xf32>
    %161 = vector.shape_cast %160 : vector<2x8x8x8xf32> to vector<128x8xf32>
    %c0_83 = arith.constant 0 : index
    %c88_84 = arith.constant 88 : index
    %162 = vector.load %arg5[%c0_83, %c88_84] : memref<128x200xf32, #tpu.memory_space<vmem>>, vector<128x8xf32>
    tpu.vector_store %arg5[%c0_83, %c88_84], %161 {strides = array<i32>} : memref<128x200xf32, #tpu.memory_space<vmem>>, vector<128x8xf32>,
    %163 = vector.extract_strided_slice %126 {offsets = [0, 2, 2, 0], sizes = [2, 8, 8, 8], strides = [1, 1, 1, 1]} : vector<2x12x12x8xf32> to vector<2x8x8x8xf32>
    %164 = vector.shape_cast %163 : vector<2x8x8x8xf32> to vector<128x8xf32>
    %c0_85 = arith.constant 0 : index
    %c96_86 = arith.constant 96 : index
    %165 = vector.load %arg5[%c0_85, %c96_86] : memref<128x200xf32, #tpu.memory_space<vmem>>, vector<128x8xf32>
    tpu.vector_store %arg5[%c0_85, %c96_86], %164 {strides = array<i32>} : memref<128x200xf32, #tpu.memory_space<vmem>>, vector<128x8xf32>,
    %166 = vector.extract_strided_slice %126 {offsets = [0, 2, 3, 0], sizes = [2, 8, 8, 8], strides = [1, 1, 1, 1]} : vector<2x12x12x8xf32> to vector<2x8x8x8xf32>
    %167 = vector.shape_cast %166 : vector<2x8x8x8xf32> to vector<128x8xf32>
    %c0_87 = arith.constant 0 : index
    %c104 = arith.constant 104 : index
    %168 = vector.load %arg5[%c0_87, %c104] : memref<128x200xf32, #tpu.memory_space<vmem>>, vector<128x8xf32>
    tpu.vector_store %arg5[%c0_87, %c104], %167 {strides = array<i32>} : memref<128x200xf32, #tpu.memory_space<vmem>>, vector<128x8xf32>,
    %169 = vector.extract_strided_slice %126 {offsets = [0, 2, 4, 0], sizes = [2, 8, 8, 8], strides = [1, 1, 1, 1]} : vector<2x12x12x8xf32> to vector<2x8x8x8xf32>
    %170 = vector.shape_cast %169 : vector<2x8x8x8xf32> to vector<128x8xf32>
    %c0_88 = arith.constant 0 : index
    %c112 = arith.constant 112 : index
    %171 = vector.load %arg5[%c0_88, %c112] : memref<128x200xf32, #tpu.memory_space<vmem>>, vector<128x8xf32>
    tpu.vector_store %arg5[%c0_88, %c112], %170 {strides = array<i32>} : memref<128x200xf32, #tpu.memory_space<vmem>>, vector<128x8xf32>,
    %172 = vector.extract_strided_slice %126 {offsets = [0, 3, 0, 0], sizes = [2, 8, 8, 8], strides = [1, 1, 1, 1]} : vector<2x12x12x8xf32> to vector<2x8x8x8xf32>
    %173 = vector.shape_cast %172 : vector<2x8x8x8xf32> to vector<128x8xf32>
    %c0_89 = arith.constant 0 : index
    %c120 = arith.constant 120 : index
    %174 = vector.load %arg5[%c0_89, %c120] : memref<128x200xf32, #tpu.memory_space<vmem>>, vector<128x8xf32>
    tpu.vector_store %arg5[%c0_89, %c120], %173 {strides = array<i32>} : memref<128x200xf32, #tpu.memory_space<vmem>>, vector<128x8xf32>,
    %175 = vector.extract_strided_slice %126 {offsets = [0, 3, 1, 0], sizes = [2, 8, 8, 8], strides = [1, 1, 1, 1]} : vector<2x12x12x8xf32> to vector<2x8x8x8xf32>
    %176 = vector.shape_cast %175 : vector<2x8x8x8xf32> to vector<128x8xf32>
    %c0_90 = arith.constant 0 : index
    %c128 = arith.constant 128 : index
    %177 = vector.load %arg5[%c0_90, %c128] : memref<128x200xf32, #tpu.memory_space<vmem>>, vector<128x8xf32>
    tpu.vector_store %arg5[%c0_90, %c128], %176 {strides = array<i32>} : memref<128x200xf32, #tpu.memory_space<vmem>>, vector<128x8xf32>,
    %178 = vector.extract_strided_slice %126 {offsets = [0, 3, 2, 0], sizes = [2, 8, 8, 8], strides = [1, 1, 1, 1]} : vector<2x12x12x8xf32> to vector<2x8x8x8xf32>
    %179 = vector.shape_cast %178 : vector<2x8x8x8xf32> to vector<128x8xf32>
    %c0_91 = arith.constant 0 : index
    %c136 = arith.constant 136 : index
    %180 = vector.load %arg5[%c0_91, %c136] : memref<128x200xf32, #tpu.memory_space<vmem>>, vector<128x8xf32>
    tpu.vector_store %arg5[%c0_91, %c136], %179 {strides = array<i32>} : memref<128x200xf32, #tpu.memory_space<vmem>>, vector<128x8xf32>,
    %181 = vector.extract_strided_slice %126 {offsets = [0, 3, 3, 0], sizes = [2, 8, 8, 8], strides = [1, 1, 1, 1]} : vector<2x12x12x8xf32> to vector<2x8x8x8xf32>
    %182 = vector.shape_cast %181 : vector<2x8x8x8xf32> to vector<128x8xf32>
    %c0_92 = arith.constant 0 : index
    %c144 = arith.constant 144 : index
    %183 = vector.load %arg5[%c0_92, %c144] : memref<128x200xf32, #tpu.memory_space<vmem>>, vector<128x8xf32>
    tpu.vector_store %arg5[%c0_92, %c144], %182 {strides = array<i32>} : memref<128x200xf32, #tpu.memory_space<vmem>>, vector<128x8xf32>,
    %184 = vector.extract_strided_slice %126 {offsets = [0, 3, 4, 0], sizes = [2, 8, 8, 8], strides = [1, 1, 1, 1]} : vector<2x12x12x8xf32> to vector<2x8x8x8xf32>
    %185 = vector.shape_cast %184 : vector<2x8x8x8xf32> to vector<128x8xf32>
    %c0_93 = arith.constant 0 : index
    %c152 = arith.constant 152 : index
    %186 = vector.load %arg5[%c0_93, %c152] : memref<128x200xf32, #tpu.memory_space<vmem>>, vector<128x8xf32>
    tpu.vector_store %arg5[%c0_93, %c152], %185 {strides = array<i32>} : memref<128x200xf32, #tpu.memory_space<vmem>>, vector<128x8xf32>,
    %187 = vector.extract_strided_slice %126 {offsets = [0, 4, 0, 0], sizes = [2, 8, 8, 8], strides = [1, 1, 1, 1]} : vector<2x12x12x8xf32> to vector<2x8x8x8xf32>
    %188 = vector.shape_cast %187 : vector<2x8x8x8xf32> to vector<128x8xf32>
    %c0_94 = arith.constant 0 : index
    %c160 = arith.constant 160 : index
    %189 = vector.load %arg5[%c0_94, %c160] : memref<128x200xf32, #tpu.memory_space<vmem>>, vector<128x8xf32>
    tpu.vector_store %arg5[%c0_94, %c160], %188 {strides = array<i32>} : memref<128x200xf32, #tpu.memory_space<vmem>>, vector<128x8xf32>,
    %190 = vector.extract_strided_slice %126 {offsets = [0, 4, 1, 0], sizes = [2, 8, 8, 8], strides = [1, 1, 1, 1]} : vector<2x12x12x8xf32> to vector<2x8x8x8xf32>
    %191 = vector.shape_cast %190 : vector<2x8x8x8xf32> to vector<128x8xf32>
    %c0_95 = arith.constant 0 : index
    %c168 = arith.constant 168 : index
    %192 = vector.load %arg5[%c0_95, %c168] : memref<128x200xf32, #tpu.memory_space<vmem>>, vector<128x8xf32>
    tpu.vector_store %arg5[%c0_95, %c168], %191 {strides = array<i32>} : memref<128x200xf32, #tpu.memory_space<vmem>>, vector<128x8xf32>,
    %193 = vector.extract_strided_slice %126 {offsets = [0, 4, 2, 0], sizes = [2, 8, 8, 8], strides = [1, 1, 1, 1]} : vector<2x12x12x8xf32> to vector<2x8x8x8xf32>
    %194 = vector.shape_cast %193 : vector<2x8x8x8xf32> to vector<128x8xf32>
    %c0_96 = arith.constant 0 : index
    %c176 = arith.constant 176 : index
    %195 = vector.load %arg5[%c0_96, %c176] : memref<128x200xf32, #tpu.memory_space<vmem>>, vector<128x8xf32>
    tpu.vector_store %arg5[%c0_96, %c176], %194 {strides = array<i32>} : memref<128x200xf32, #tpu.memory_space<vmem>>, vector<128x8xf32>,
    %196 = vector.extract_strided_slice %126 {offsets = [0, 4, 3, 0], sizes = [2, 8, 8, 8], strides = [1, 1, 1, 1]} : vector<2x12x12x8xf32> to vector<2x8x8x8xf32>
    %197 = vector.shape_cast %196 : vector<2x8x8x8xf32> to vector<128x8xf32>
    %c0_97 = arith.constant 0 : index
    %c184 = arith.constant 184 : index
    %198 = vector.load %arg5[%c0_97, %c184] : memref<128x200xf32, #tpu.memory_space<vmem>>, vector<128x8xf32>
    tpu.vector_store %arg5[%c0_97, %c184], %197 {strides = array<i32>} : memref<128x200xf32, #tpu.memory_space<vmem>>, vector<128x8xf32>,
    %199 = vector.extract_strided_slice %126 {offsets = [0, 4, 4, 0], sizes = [2, 8, 8, 8], strides = [1, 1, 1, 1]} : vector<2x12x12x8xf32> to vector<2x8x8x8xf32>
    %200 = vector.shape_cast %199 : vector<2x8x8x8xf32> to vector<128x8xf32>
    %c0_98 = arith.constant 0 : index
    %c192 = arith.constant 192 : index
    %201 = vector.load %arg5[%c0_98, %c192] : memref<128x200xf32, #tpu.memory_space<vmem>>, vector<128x8xf32>
    tpu.vector_store %arg5[%c0_98, %c192], %200 {strides = array<i32>} : memref<128x200xf32, #tpu.memory_space<vmem>>, vector<128x8xf32>,
    %c0_99 = arith.constant 0 : index
    %c0_100 = arith.constant 0 : index
    %202 = vector.load %arg5[%c0_99, %c0_100] : memref<128x200xf32, #tpu.memory_space<vmem>>, vector<128x200xf32>
    %c0_101 = arith.constant 0 : index
    %c0_102 = arith.constant 0 : index
    %203 = vector.load %arg2[%c0_101, %c0_102] : memref<200x8xf32, #tpu.memory_space<vmem>>, vector<200x8xf32>
    %cst_103 = arith.constant dense<0.000000e+00> : vector<128x8xf32>
    %204 = tpu.matmul %202, %203, %cst_103 {dimension_numbers = #tpu.dot_dimension_numbers<[1], [0], [0], [1], [0, 0, 1, 1], [], []>} : vector<128x200xf32>, vector<200x8xf32>, vector<128x8xf32> -> vector<128x8xf32>
    %205 = tpu.transpose %204, [1, 0] : vector<128x8xf32> -> vector<8x128xf32>
    %cst_104 = arith.constant dense<0.000000e+00> : vector<8xf32>
    %206 = vector.multi_reduction <add>, %205, %cst_104 [1] : vector<8x128xf32> to vector<8xf32>
    %207 = vector.shape_cast %206 : vector<8xf32> to vector<8x1xf32>
    %cst_105 = arith.constant 1.280000e+02 : f32
    %208 = vector.broadcast %cst_105 : f32 to vector<8x1xf32>
    %209 = arith.divf %207, %208 : vector<8x1xf32>
    %210 = vector.broadcast %209 : vector<8x1xf32> to vector<8x128xf32>
    %211 = arith.subf %205, %210 : vector<8x128xf32>
    %212 = arith.mulf %211, %211 : vector<8x128xf32>
    %cst_106 = arith.constant dense<0.000000e+00> : vector<8xf32>
    %213 = vector.multi_reduction <add>, %212, %cst_106 [1] : vector<8x128xf32> to vector<8xf32>
    %214 = vector.shape_cast %213 : vector<8xf32> to vector<8x1xf32>
    %cst_107 = arith.constant 1.280000e+02 : f32
    %215 = vector.broadcast %cst_107 : f32 to vector<8x1xf32>
    %216 = arith.divf %214, %215 : vector<8x1xf32>
    %217 = vector.broadcast %209 : vector<8x1xf32> to vector<8x128xf32>
    %218 = arith.subf %205, %217 : vector<8x128xf32>
    %cst_108 = arith.constant 9.99999974E-6 : f32
    %219 = vector.broadcast %cst_108 : f32 to vector<8x1xf32>
    %220 = arith.addf %216, %219 : vector<8x1xf32>
    %221 = math.rsqrt %220 : vector<8x1xf32>
    %222 = vector.broadcast %221 : vector<8x1xf32> to vector<8x128xf32>
    %223 = arith.mulf %218, %222 : vector<8x128xf32>
    %cst_109 = arith.constant 0.000000e+00 : f32
    %224 = vector.broadcast %cst_109 : f32 to vector<8x128xf32>
    %225 = arith.cmpf oge, %223, %224 : vector<8x128xf32>
    %cst_110 = arith.constant 1.000000e-01 : f32
    %226 = vector.broadcast %cst_110 : f32 to vector<8x128xf32>
    %227 = arith.mulf %226, %223 : vector<8x128xf32>
    %228 = arith.select %225, %223, %227 : vector<8x128xi1>, vector<8x128xf32>
    %c0_111 = arith.constant 0 : index
    %c0_112 = arith.constant 0 : index
    %229 = vector.load %arg3[%c0_111, %c0_112] : memref<8x128xf32, #tpu.memory_space<vmem>>, vector<8x128xf32>
    tpu.vector_store %arg3[%c0_111, %c0_112], %228 {strides = array<i32>} : memref<8x128xf32, #tpu.memory_space<vmem>>, vector<8x128xf32>,
    return
  }
}

</mosaic_0001>

<llo_original>
// kernel: down_forward.1
$region0: #{down_forward.1}
  #allocation0 [shape = 'u32[]', space=smem, size = 0x4, offset = 0x4, fixed_abs, tag = 'smem constant byte address 0x4 - core index']
  #allocation1 [shape = 'u32[144,128]{1,0:T(1,128)}', space=vmem, size = 0x12000, scoped, tag = 'internal scratch']
  #allocation2 [shape = 'f32[128,104]{1,0:T(8,128)}', space=vmem, size = 0x10000, scoped, tag = 'scratch operand']
  #allocation3 [shape = 'f32[128,200]{1,0:T(8,128)}', space=vmem, size = 0x20000, scoped, tag = 'scratch operand']
  %s0 = inlined_call_operand.vmem [shape: f32[2,2,2,8,8,4], index: 0, kind: input, shape index: {}]
  %s1 = inlined_call_operand.vmem [shape: f32[104,8], index: 1, kind: input, shape index: {}]
  %s2 = inlined_call_operand.vmem [shape: f32[200,8], index: 2, kind: input, shape index: {}]
  %s3 = inlined_call_operand.vmem [shape: f32[8,128], index: 3, kind: output, shape index: {}]
  %s4 = sld [smem:[#allocation0]]
  $region22: #{down_forward.1} parent=0
    _
  %s6 = ssub.s32 1, %s4
  %s7 = scalar_select 0, %s6, %s4
  // Predicated region
  $region2: #{down_forward.1} parent=0 // pred_check
    _
  $region3: #{down_forward.1} parent=0 // pred_check_branch
    %9 = sbr.rel (0) target = $region5
  $region4: #{down_forward.1} parent=0 // pred_region
    _
  $region5: #{down_forward.1} parent=0 // pred_fallthru
    _
  // Predicated region
  $region6: #{down_forward.1} parent=0 // pred_check
    _
  $region7: #{down_forward.1} parent=0 // pred_check_branch
    %11 = sbr.rel (0) target = $region9
  $region8: #{down_forward.1} parent=0 // pred_region
    _
  $region9: #{down_forward.1} parent=0 // pred_fallthru
    _
  // Predicated region
  $region10: #{down_forward.1} parent=0 // pred_check
    _
  $region11: #{down_forward.1} parent=0 // pred_check_branch
    %13 = sbr.rel (0) target = $region13
  $region12: #{down_forward.1} parent=0 // pred_region
    _
  $region13: #{down_forward.1} parent=0 // pred_fallthru
    _
  %v14 = vld [vmem:[%s0] sm:$0xff]
  %v15 = vld [vmem:[%s0 + $0x8] sm:$0xff]
  %v16 = vld [vmem:[%s0 + $0x10] sm:$0xff]
  %v17 = vld [vmem:[%s0 + $0x18] sm:$0xff]
  %v18 = vld [vmem:[%s0 + $0x20] sm:$0xff]
  %v19 = vld [vmem:[%s0 + $0x28] sm:$0xff]
  %v20 = vld [vmem:[%s0 + $0x30] sm:$0xff]
  %v21 = vld [vmem:[%s0 + $0x38] sm:$0xff]
  %v22 = vld [vmem:[%s0 + $0x40] sm:$0xff]
  %v23 = vld [vmem:[%s0 + $0x48] sm:$0xff]
  %v24 = vld [vmem:[%s0 + $0x50] sm:$0xff]
  %v25 = vld [vmem:[%s0 + $0x58] sm:$0xff]
  %v26 = vld [vmem:[%s0 + $0x60] sm:$0xff]
  %v27 = vld [vmem:[%s0 + $0x68] sm:$0xff]
  %v28 = vld [vmem:[%s0 + $0x70] sm:$0xff]
  %v29 = vld [vmem:[%s0 + $0x78] sm:$0xff]
  %s30 = scalar_lea.vmem %s0, 128
  %v31 = vld [vmem:[%s30] sm:$0xff]
  %v32 = vld [vmem:[%s30 + $0x8] sm:$0xff]
  %v33 = vld [vmem:[%s30 + $0x10] sm:$0xff]
  %v34 = vld [vmem:[%s30 + $0x18] sm:$0xff]
  %v35 = vld [vmem:[%s30 + $0x20] sm:$0xff]
  %v36 = vld [vmem:[%s30 + $0x28] sm:$0xff]
  %v37 = vld [vmem:[%s30 + $0x30] sm:$0xff]
  %v38 = vld [vmem:[%s30 + $0x38] sm:$0xff]
  %v39 = vld [vmem:[%s30 + $0x40] sm:$0xff]
  %v40 = vld [vmem:[%s30 + $0x48] sm:$0xff]
  %v41 = vld [vmem:[%s30 + $0x50] sm:$0xff]
  %v42 = vld [vmem:[%s30 + $0x58] sm:$0xff]
  %v43 = vld [vmem:[%s30 + $0x60] sm:$0xff]
  %v44 = vld [vmem:[%s30 + $0x68] sm:$0xff]
  %v45 = vld [vmem:[%s30 + $0x70] sm:$0xff]
  %v46 = vld [vmem:[%s30 + $0x78] sm:$0xff]
  %v47 = vmax.f32 %v14, %v31
  %v48 = vmax.f32 %v15, %v32
  %v49 = vmax.f32 %v16, %v33
  %v50 = vmax.f32 %v17, %v34
  %v51 = vmax.f32 %v18, %v35
  %v52 = vmax.f32 %v19, %v36
  %v53 = vmax.f32 %v20, %v37
  %v54 = vmax.f32 %v21, %v38
  %v55 = vmax.f32 %v22, %v39
  %v56 = vmax.f32 %v23, %v40
  %v57 = vmax.f32 %v24, %v41
  %v58 = vmax.f32 %v25, %v42
  %v59 = vmax.f32 %v26, %v43
  %v60 = vmax.f32 %v27, %v44
  %v61 = vmax.f32 %v28, %v45
  %v62 = vmax.f32 %v29, %v46
  %s63 = scalar_lea.vmem %s0, 256
  %v64 = vld [vmem:[%s63] sm:$0xff]
  %v65 = vld [vmem:[%s63 + $0x8] sm:$0xff]
  %v66 = vld [vmem:[%s63 + $0x10] sm:$0xff]
  %v67 = vld [vmem:[%s63 + $0x18] sm:$0xff]
  %v68 = vld [vmem:[%s63 + $0x20] sm:$0xff]
  %v69 = vld [vmem:[%s63 + $0x28] sm:$0xff]
  %v70 = vld [vmem:[%s63 + $0x30] sm:$0xff]
  %v71 = vld [vmem:[%s63 + $0x38] sm:$0xff]
  %v72 = vld [vmem:[%s63 + $0x40] sm:$0xff]
  %v73 = vld [vmem:[%s63 + $0x48] sm:$0xff]
  %v74 = vld [vmem:[%s63 + $0x50] sm:$0xff]
  %v75 = vld [vmem:[%s63 + $0x58] sm:$0xff]
  %v76 = vld [vmem:[%s63 + $0x60] sm:$0xff]
  %v77 = vld [vmem:[%s63 + $0x68] sm:$0xff]
  %v78 = vld [vmem:[%s63 + $0x70] sm:$0xff]
  %v79 = vld [vmem:[%s63 + $0x78] sm:$0xff]
  %s80 = scalar_lea.vmem %s0, 384
  %v81 = vld [vmem:[%s80] sm:$0xff]
  %v82 = vld [vmem:[%s80 + $0x8] sm:$0xff]
  %v83 = vld [vmem:[%s80 + $0x10] sm:$0xff]
  %v84 = vld [vmem:[%s80 + $0x18] sm:$0xff]
  %v85 = vld [vmem:[%s80 + $0x20] sm:$0xff]
  %v86 = vld [vmem:[%s80 + $0x28] sm:$0xff]
  %v87 = vld [vmem:[%s80 + $0x30] sm:$0xff]
  %v88 = vld [vmem:[%s80 + $0x38] sm:$0xff]
  %v89 = vld [vmem:[%s80 + $0x40] sm:$0xff]
  %v90 = vld [vmem:[%s80 + $0x48] sm:$0xff]
  %v91 = vld [vmem:[%s80 + $0x50] sm:$0xff]
  %v92 = vld [vmem:[%s80 + $0x58] sm:$0xff]
  %v93 = vld [vmem:[%s80 + $0x60] sm:$0xff]
  %v94 = vld [vmem:[%s80 + $0x68] sm:$0xff]
  %v95 = vld [vmem:[%s80 + $0x70] sm:$0xff]
  %v96 = vld [vmem:[%s80 + $0x78] sm:$0xff]
  %v97 = vmax.f32 %v64, %v81
  %v98 = vmax.f32 %v65, %v82
  %v99 = vmax.f32 %v66, %v83
  %v100 = vmax.f32 %v67, %v84
  %v101 = vmax.f32 %v68, %v85
  %v102 = vmax.f32 %v69, %v86
  %v103 = vmax.f32 %v70, %v87
  %v104 = vmax.f32 %v71, %v88
  %v105 = vmax.f32 %v72, %v89
  %v106 = vmax.f32 %v73, %v90
  %v107 = vmax.f32 %v74, %v91
  %v108 = vmax.f32 %v75, %v92
  %v109 = vmax.f32 %v76, %v93
  %v110 = vmax.f32 %v77, %v94
  %v111 = vmax.f32 %v78, %v95
  %v112 = vmax.f32 %v79, %v96
  %v113 = vmax.f32 %v47, %v97
  %v114 = vmax.f32 %v48, %v98
  %v115 = vmax.f32 %v49, %v99
  %v116 = vmax.f32 %v50, %v100
  %v117 = vmax.f32 %v51, %v101
  %v118 = vmax.f32 %v52, %v102
  %v119 = vmax.f32 %v53, %v103
  %v120 = vmax.f32 %v54, %v104
  %v121 = vmax.f32 %v55, %v105
  %v122 = vmax.f32 %v56, %v106
  %v123 = vmax.f32 %v57, %v107
  %v124 = vmax.f32 %v58, %v108
  %v125 = vmax.f32 %v59, %v109
  %v126 = vmax.f32 %v60, %v110
  %v127 = vmax.f32 %v61, %v111
  %v128 = vmax.f32 %v62, %v112
  %vm129 = vcmask 851744
  %130 = vst.msk [vmem:[#allocation2] sm:$0xff] %vm129, 0.0
  %131 = vst.msk [vmem:[#allocation2 + $0x8] sm:$0xff] %vm129, 0.0
  %132 = vst.msk [vmem:[#allocation2 + $0x10] sm:$0xff] %vm129, 0.0
  %133 = vst.msk [vmem:[#allocation2 + $0x18] sm:$0xff] %vm129, 0.0
  %134 = vst.msk [vmem:[#allocation2 + $0x20] sm:$0xff] %vm129, 0.0
  %135 = vst.msk [vmem:[#allocation2 + $0x28] sm:$0xff] %vm129, 0.0
  %136 = vst.msk [vmem:[#allocation2 + $0x30] sm:$0xff] %vm129, 0.0
  %137 = vst.msk [vmem:[#allocation2 + $0x38] sm:$0xff] %vm129, 0.0
  %138 = vst.msk [vmem:[#allocation2 + $0x40] sm:$0xff] %vm129, 0.0
  %139 = vst.msk [vmem:[#allocation2 + $0x48] sm:$0xff] %vm129, 0.0
  %140 = vst.msk [vmem:[#allocation2 + $0x50] sm:$0xff] %vm129, 0.0
  %141 = vst.msk [vmem:[#allocation2 + $0x58] sm:$0xff] %vm129, 0.0
  %142 = vst.msk [vmem:[#allocation2 + $0x60] sm:$0xff] %vm129, 0.0
  %143 = vst.msk [vmem:[#allocation2 + $0x68] sm:$0xff] %vm129, 0.0
  %144 = vst.msk [vmem:[#allocation2 + $0x70] sm:$0xff] %vm129, 0.0
  %145 = vst.msk [vmem:[#allocation2 + $0x78] sm:$0xff] %vm129, 0.0
  %v162 = vrot.slane %v113, 7
  %v163 = vrot.slane %v114, 7
  %v164 = vrot.slane %v115, 7
  %v165 = vrot.slane %v116, 7
  %v166 = vrot.slane %v117, 7
  %v167 = vrot.slane %v118, 7
  %v168 = vrot.slane %v119, 7
  %v169 = vrot.slane %v120, 7
  %v170 = vrot.slane %v121, 7
  %v171 = vrot.slane %v122, 7
  %v172 = vrot.slane %v123, 7
  %v173 = vrot.slane %v124, 7
  %v174 = vrot.slane %v125, 7
  %v175 = vrot.slane %v126, 7
  %v176 = vrot.slane %v127, 7
  %v177 = vrot.slane %v128, 7
  %v194 = vrot.slane %v113, 6
  %v195 = vrot.slane %v114, 6
  %v196 = vrot.slane %v115, 6
  %v197 = vrot.slane %v116, 6
  %v198 = vrot.slane %v117, 6
  %v199 = vrot.slane %v118, 6
  %v200 = vrot.slane %v119, 6
  %v201 = vrot.slane %v120, 6
  %v202 = vrot.slane %v121, 6
  %v203 = vrot.slane %v122, 6
  %v204 = vrot.slane %v123, 6
  %v205 = vrot.slane %v124, 6
  %v206 = vrot.slane %v125, 6
  %v207 = vrot.slane %v126, 6
  %v208 = vrot.slane %v127, 6
  %v209 = vrot.slane %v128, 6
  %v226 = vrot.slane %v113, 5
  %v227 = vrot.slane %v114, 5
  %v228 = vrot.slane %v115, 5
  %v229 = vrot.slane %v116, 5
  %v230 = vrot.slane %v117, 5
  %v231 = vrot.slane %v118, 5
  %v232 = vrot.slane %v119, 5
  %v233 = vrot.slane %v120, 5
  %v234 = vrot.slane %v121, 5
  %v235 = vrot.slane %v122, 5
  %v236 = vrot.slane %v123, 5
  %v237 = vrot.slane %v124, 5
  %v238 = vrot.slane %v125, 5
  %v239 = vrot.slane %v126, 5
  %v240 = vrot.slane %v127, 5
  %v241 = vrot.slane %v128, 5
  %v258 = vrot.slane %v113, 4
  %v259 = vrot.slane %v114, 4
  %v260 = vrot.slane %v115, 4
  %v261 = vrot.slane %v116, 4
  %v262 = vrot.slane %v117, 4
  %v263 = vrot.slane %v118, 4
  %v264 = vrot.slane %v119, 4
  %v265 = vrot.slane %v120, 4
  %v266 = vrot.slane %v121, 4
  %v267 = vrot.slane %v122, 4
  %v268 = vrot.slane %v123, 4
  %v269 = vrot.slane %v124, 4
  %v270 = vrot.slane %v125, 4
  %v271 = vrot.slane %v126, 4
  %v272 = vrot.slane %v127, 4
  %v273 = vrot.slane %v128, 4
  %vm290 = vcmask 1040384
  %v291 = vsel %vm290, %v113, %v162
  %v292 = vsel %vm290, %v114, %v163
  %v293 = vsel %vm290, %v115, %v164
  %v294 = vsel %vm290, %v116, %v165
  %v295 = vsel %vm290, %v117, %v166
  %v296 = vsel %vm290, %v118, %v167
  %v297 = vsel %vm290, %v119, %v168
  %v298 = vsel %vm290, %v120, %v169
  %v299 = vsel %vm290, %v121, %v170
  %v300 = vsel %vm290, %v122, %v171
  %v301 = vsel %vm290, %v123, %v172
  %v302 = vsel %vm290, %v124, %v173
  %v303 = vsel %vm290, %v125, %v174
  %v304 = vsel %vm290, %v126, %v175
  %v305 = vsel %vm290, %v127, %v176
  %v306 = vsel %vm290, %v128, %v177
  %vm307 = vcmask 1041408
  %v308 = vsel %vm307, %v291, %v194
  %v309 = vsel %vm307, %v292, %v195
  %v310 = vsel %vm307, %v293, %v196
  %v311 = vsel %vm307, %v294, %v197
  %v312 = vsel %vm307, %v295, %v198
  %v313 = vsel %vm307, %v296, %v199
  %v314 = vsel %vm307, %v297, %v200
  %v315 = vsel %vm307, %v298, %v201
  %v316 = vsel %vm307, %v299, %v202
  %v317 = vsel %vm307, %v300, %v203
  %v318 = vsel %vm307, %v301, %v204
  %v319 = vsel %vm307, %v302, %v205
  %v320 = vsel %vm307, %v303, %v206
  %v321 = vsel %vm307, %v304, %v207
  %v322 = vsel %vm307, %v305, %v208
  %v323 = vsel %vm307, %v306, %v209
  %v324 = vsel %vm307, %v194, %v226
  %v325 = vsel %vm307, %v195, %v227
  %v326 = vsel %vm307, %v196, %v228
  %v327 = vsel %vm307, %v197, %v229
  %v328 = vsel %vm307, %v198, %v230
  %v329 = vsel %vm307, %v199, %v231
  %v330 = vsel %vm307, %v200, %v232
  %v331 = vsel %vm307, %v201, %v233
  %v332 = vsel %vm307, %v202, %v234
  %v333 = vsel %vm307, %v203, %v235
  %v334 = vsel %vm307, %v204, %v236
  %v335 = vsel %vm307, %v205, %v237
  %v336 = vsel %vm307, %v206, %v238
  %v337 = vsel %vm307, %v207, %v239
  %v338 = vsel %vm307, %v208, %v240
  %v339 = vsel %vm307, %v209, %v241
  %vm340 = vcmask 1042432
  %v341 = vsel %vm340, %v324, %v258
  %v342 = vsel %vm340, %v325, %v259
  %v343 = vsel %vm340, %v326, %v260
  %v344 = vsel %vm340, %v327, %v261
  %v345 = vsel %vm340, %v328, %v262
  %v346 = vsel %vm340, %v329, %v263
  %v347 = vsel %vm340, %v330, %v264
  %v348 = vsel %vm340, %v331, %v265
  %v349 = vsel %vm340, %v332, %v266
  %v350 = vsel %vm340, %v333, %v267
  %v351 = vsel %vm340, %v334, %v268
  %v352 = vsel %vm340, %v335, %v269
  %v353 = vsel %vm340, %v336, %v270
  %v354 = vsel %vm340, %v337, %v271
  %v355 = vsel %vm340, %v338, %v272
  %v356 = vsel %vm340, %v339, %v273
  %vm357 = vcmask 31744
  %358 = vst.msk [vmem:[#allocation2] sm:$0xff] %vm357, %v308
  %359 = vst.msk [vmem:[#allocation2 + $0x8] sm:$0xff] %vm357, %v308
  %360 = vst.msk [vmem:[#allocation2 + $0x10] sm:$0xff] %vm357, %v308
  %361 = vst.msk [vmem:[#allocation2 + $0x18] sm:$0xff] %vm357, %v309
  %362 = vst.msk [vmem:[#allocation2 + $0x20] sm:$0xff] %vm357, %v310
  %363 = vst.msk [vmem:[#allocation2 + $0x28] sm:$0xff] %vm357, %v311
  %364 = vst.msk [vmem:[#allocation2 + $0x30] sm:$0xff] %vm357, %v312
  %365 = vst.msk [vmem:[#allocation2 + $0x38] sm:$0xff] %vm357, %v313
  %366 = vst.msk [vmem:[#allocation2 + $0x40] sm:$0xff] %vm357, %v316
  %367 = vst.msk [vmem:[#allocation2 + $0x48] sm:$0xff] %vm357, %v316
  %368 = vst.msk [vmem:[#allocation2 + $0x50] sm:$0xff] %vm357, %v316
  %369 = vst.msk [vmem:[#allocation2 + $0x58] sm:$0xff] %vm357, %v317
  %370 = vst.msk [vmem:[#allocation2 + $0x60] sm:$0xff] %vm357, %v318
  %371 = vst.msk [vmem:[#allocation2 + $0x68] sm:$0xff] %vm357, %v319
  %372 = vst.msk [vmem:[#allocation2 + $0x70] sm:$0xff] %vm357, %v320
  %373 = vst.msk [vmem:[#allocation2 + $0x78] sm:$0xff] %vm357, %v321
  %vm398 = vcmask 1046528
  %v399 = vrot.slane %v308, 1
  %v400 = vrot.slane %v341, 1
  %v401 = vsel %vm398, %v399, %v400
  %v402 = vrot.slane %v309, 1
  %v403 = vrot.slane %v342, 1
  %v404 = vsel %vm398, %v402, %v403
  %v405 = vrot.slane %v310, 1
  %v406 = vrot.slane %v343, 1
  %v407 = vsel %vm398, %v405, %v406
  %v408 = vrot.slane %v311, 1
  %v409 = vrot.slane %v344, 1
  %v410 = vsel %vm398, %v408, %v409
  %v411 = vrot.slane %v312, 1
  %v412 = vrot.slane %v345, 1
  %v413 = vsel %vm398, %v411, %v412
  %v414 = vrot.slane %v313, 1
  %v415 = vrot.slane %v346, 1
  %v416 = vsel %vm398, %v414, %v415
  %v417 = vrot.slane %v316, 1
  %v418 = vrot.slane %v349, 1
  %v419 = vsel %vm398, %v417, %v418
  %v420 = vrot.slane %v317, 1
  %v421 = vrot.slane %v350, 1
  %v422 = vsel %vm398, %v420, %v421
  %v423 = vrot.slane %v318, 1
  %v424 = vrot.slane %v351, 1
  %v425 = vsel %vm398, %v423, %v424
  %v426 = vrot.slane %v319, 1
  %v427 = vrot.slane %v352, 1
  %v428 = vsel %vm398, %v426, %v427
  %v429 = vrot.slane %v320, 1
  %v430 = vrot.slane %v353, 1
  %v431 = vsel %vm398, %v429, %v430
  %v432 = vrot.slane %v321, 1
  %v433 = vrot.slane %v354, 1
  %v434 = vsel %vm398, %v432, %v433
  %435 = vrot.lane.b32.xlu0 %v401, 4
  %v436 = vpop.permute.xlu0 %435
  %437 = vrot.lane.b32.xlu0 %v404, 4
  %v438 = vpop.permute.xlu0 %437
  %439 = vrot.lane.b32.xlu0 %v407, 4
  %v440 = vpop.permute.xlu0 %439
  %441 = vrot.lane.b32.xlu0 %v410, 4
  %v442 = vpop.permute.xlu0 %441
  %443 = vrot.lane.b32.xlu0 %v413, 4
  %v444 = vpop.permute.xlu0 %443
  %445 = vrot.lane.b32.xlu0 %v416, 4
  %v446 = vpop.permute.xlu0 %445
  %447 = vrot.lane.b32.xlu0 %v419, 4
  %v448 = vpop.permute.xlu0 %447
  %449 = vrot.lane.b32.xlu0 %v422, 4
  %v450 = vpop.permute.xlu0 %449
  %451 = vrot.lane.b32.xlu0 %v425, 4
  %v452 = vpop.permute.xlu0 %451
  %453 = vrot.lane.b32.xlu0 %v428, 4
  %v454 = vpop.permute.xlu0 %453
  %455 = vrot.lane.b32.xlu0 %v431, 4
  %v456 = vpop.permute.xlu0 %455
  %457 = vrot.lane.b32.xlu0 %v434, 4
  %v458 = vpop.permute.xlu0 %457
  %vm471 = vcmask 64544
  %472 = vst.msk [vmem:[#allocation2] sm:$0xff] %vm471, %v436
  %473 = vst.msk [vmem:[#allocation2 + $0x8] sm:$0xff] %vm471, %v436
  %474 = vst.msk [vmem:[#allocation2 + $0x10] sm:$0xff] %vm471, %v436
  %475 = vst.msk [vmem:[#allocation2 + $0x18] sm:$0xff] %vm471, %v438
  %476 = vst.msk [vmem:[#allocation2 + $0x20] sm:$0xff] %vm471, %v440
  %477 = vst.msk [vmem:[#allocation2 + $0x28] sm:$0xff] %vm471, %v442
  %478 = vst.msk [vmem:[#allocation2 + $0x30] sm:$0xff] %vm471, %v444
  %479 = vst.msk [vmem:[#allocation2 + $0x38] sm:$0xff] %vm471, %v446
  %480 = vst.msk [vmem:[#allocation2 + $0x40] sm:$0xff] %vm471, %v448
  %481 = vst.msk [vmem:[#allocation2 + $0x48] sm:$0xff] %vm471, %v448
  %482 = vst.msk [vmem:[#allocation2 + $0x50] sm:$0xff] %vm471, %v448
  %483 = vst.msk [vmem:[#allocation2 + $0x58] sm:$0xff] %vm471, %v450
  %484 = vst.msk [vmem:[#allocation2 + $0x60] sm:$0xff] %vm471, %v452
  %485 = vst.msk [vmem:[#allocation2 + $0x68] sm:$0xff] %vm471, %v454
  %486 = vst.msk [vmem:[#allocation2 + $0x70] sm:$0xff] %vm471, %v456
  %487 = vst.msk [vmem:[#allocation2 + $0x78] sm:$0xff] %vm471, %v458
  %vm488 = vcmask 1045504
  %v489 = vrot.slane %v308, 2
  %v490 = vrot.slane %v341, 2
  %v491 = vsel %vm488, %v489, %v490
  %v492 = vrot.slane %v309, 2
  %v493 = vrot.slane %v342, 2
  %v494 = vsel %vm488, %v492, %v493
  %v495 = vrot.slane %v310, 2
  %v496 = vrot.slane %v343, 2
  %v497 = vsel %vm488, %v495, %v496
  %v498 = vrot.slane %v311, 2
  %v499 = vrot.slane %v344, 2
  %v500 = vsel %vm488, %v498, %v499
  %v501 = vrot.slane %v312, 2
  %v502 = vrot.slane %v345, 2
  %v503 = vsel %vm488, %v501, %v502
  %v504 = vrot.slane %v313, 2
  %v505 = vrot.slane %v346, 2
  %v506 = vsel %vm488, %v504, %v505
  %v507 = vrot.slane %v316, 2
  %v508 = vrot.slane %v349, 2
  %v509 = vsel %vm488, %v507, %v508
  %v510 = vrot.slane %v317, 2
  %v511 = vrot.slane %v350, 2
  %v512 = vsel %vm488, %v510, %v511
  %v513 = vrot.slane %v318, 2
  %v514 = vrot.slane %v351, 2
  %v515 = vsel %vm488, %v513, %v514
  %v516 = vrot.slane %v319, 2
  %v517 = vrot.slane %v352, 2
  %v518 = vsel %vm488, %v516, %v517
  %v519 = vrot.slane %v320, 2
  %v520 = vrot.slane %v353, 2
  %v521 = vsel %vm488, %v519, %v520
  %v522 = vrot.slane %v321, 2
  %v523 = vrot.slane %v354, 2
  %v524 = vsel %vm488, %v522, %v523
  %525 = vrot.lane.b32.xlu0 %v491, 8
  %v526 = vpop.permute.xlu0 %525
  %527 = vrot.lane.b32.xlu0 %v494, 8
  %v528 = vpop.permute.xlu0 %527
  %529 = vrot.lane.b32.xlu0 %v497, 8
  %v530 = vpop.permute.xlu0 %529
  %531 = vrot.lane.b32.xlu0 %v500, 8
  %v532 = vpop.permute.xlu0 %531
  %533 = vrot.lane.b32.xlu0 %v503, 8
  %v534 = vpop.permute.xlu0 %533
  %535 = vrot.lane.b32.xlu0 %v506, 8
  %v536 = vpop.permute.xlu0 %535
  %537 = vrot.lane.b32.xlu0 %v509, 8
  %v538 = vpop.permute.xlu0 %537
  %539 = vrot.lane.b32.xlu0 %v512, 8
  %v540 = vpop.permute.xlu0 %539
  %541 = vrot.lane.b32.xlu0 %v515, 8
  %v542 = vpop.permute.xlu0 %541
  %543 = vrot.lane.b32.xlu0 %v518, 8
  %v544 = vpop.permute.xlu0 %543
  %545 = vrot.lane.b32.xlu0 %v521, 8
  %v546 = vpop.permute.xlu0 %545
  %547 = vrot.lane.b32.xlu0 %v524, 8
  %v548 = vpop.permute.xlu0 %547
  %vm561 = vcmask 97344
  %562 = vst.msk [vmem:[#allocation2] sm:$0xff] %vm561, %v526
  %563 = vst.msk [vmem:[#allocation2 + $0x8] sm:$0xff] %vm561, %v526
  %564 = vst.msk [vmem:[#allocation2 + $0x10] sm:$0xff] %vm561, %v526
  %565 = vst.msk [vmem:[#allocation2 + $0x18] sm:$0xff] %vm561, %v528
  %566 = vst.msk [vmem:[#allocation2 + $0x20] sm:$0xff] %vm561, %v530
  %567 = vst.msk [vmem:[#allocation2 + $0x28] sm:$0xff] %vm561, %v532
  %568 = vst.msk [vmem:[#allocation2 + $0x30] sm:$0xff] %vm561, %v534
  %569 = vst.msk [vmem:[#allocation2 + $0x38] sm:$0xff] %vm561, %v536
  %570 = vst.msk [vmem:[#allocation2 + $0x40] sm:$0xff] %vm561, %v538
  %571 = vst.msk [vmem:[#allocation2 + $0x48] sm:$0xff] %vm561, %v538
  %572 = vst.msk [vmem:[#allocation2 + $0x50] sm:$0xff] %vm561, %v538
  %573 = vst.msk [vmem:[#allocation2 + $0x58] sm:$0xff] %vm561, %v540
  %574 = vst.msk [vmem:[#allocation2 + $0x60] sm:$0xff] %vm561, %v542
  %575 = vst.msk [vmem:[#allocation2 + $0x68] sm:$0xff] %vm561, %v544
  %576 = vst.msk [vmem:[#allocation2 + $0x70] sm:$0xff] %vm561, %v546
  %577 = vst.msk [vmem:[#allocation2 + $0x78] sm:$0xff] %vm561, %v548
  %vm578 = vcmask 1044480
  %v579 = vrot.slane %v308, 3
  %v580 = vrot.slane %v341, 3
  %v581 = vsel %vm578, %v579, %v580
  %v582 = vrot.slane %v309, 3
  %v583 = vrot.slane %v342, 3
  %v584 = vsel %vm578, %v582, %v583
  %v585 = vrot.slane %v310, 3
  %v586 = vrot.slane %v343, 3
  %v587 = vsel %vm578, %v585, %v586
  %v588 = vrot.slane %v311, 3
  %v589 = vrot.slane %v344, 3
  %v590 = vsel %vm578, %v588, %v589
  %v591 = vrot.slane %v312, 3
  %v592 = vrot.slane %v345, 3
  %v593 = vsel %vm578, %v591, %v592
  %v594 = vrot.slane %v313, 3
  %v595 = vrot.slane %v346, 3
  %v596 = vsel %vm578, %v594, %v595
  %v597 = vrot.slane %v316, 3
  %v598 = vrot.slane %v349, 3
  %v599 = vsel %vm578, %v597, %v598
  %v600 = vrot.slane %v317, 3
  %v601 = vrot.slane %v350, 3
  %v602 = vsel %vm578, %v600, %v601
  %v603 = vrot.slane %v318, 3
  %v604 = vrot.slane %v351, 3
  %v605 = vsel %vm578, %v603, %v604
  %v606 = vrot.slane %v319, 3
  %v607 = vrot.slane %v352, 3
  %v608 = vsel %vm578, %v606, %v607
  %v609 = vrot.slane %v320, 3
  %v610 = vrot.slane %v353, 3
  %v611 = vsel %vm578, %v609, %v610
  %v612 = vrot.slane %v321, 3
  %v613 = vrot.slane %v354, 3
  %v614 = vsel %vm578, %v612, %v613
  %615 = vrot.lane.b32.xlu0 %v581, 12
  %v616 = vpop.permute.xlu0 %615
  %617 = vrot.lane.b32.xlu0 %v584, 12
  %v618 = vpop.permute.xlu0 %617
  %619 = vrot.lane.b32.xlu0 %v587, 12
  %v620 = vpop.permute.xlu0 %619
  %621 = vrot.lane.b32.xlu0 %v590, 12
  %v622 = vpop.permute.xlu0 %621
  %623 = vrot.lane.b32.xlu0 %v593, 12
  %v624 = vpop.permute.xlu0 %623
  %625 = vrot.lane.b32.xlu0 %v596, 12
  %v626 = vpop.permute.xlu0 %625
  %627 = vrot.lane.b32.xlu0 %v599, 12
  %v628 = vpop.permute.xlu0 %627
  %629 = vrot.lane.b32.xlu0 %v602, 12
  %v630 = vpop.permute.xlu0 %629
  %631 = vrot.lane.b32.xlu0 %v605, 12
  %v632 = vpop.permute.xlu0 %631
  %633 = vrot.lane.b32.xlu0 %v608, 12
  %v634 = vpop.permute.xlu0 %633
  %635 = vrot.lane.b32.xlu0 %v611, 12
  %v636 = vpop.permute.xlu0 %635
  %637 = vrot.lane.b32.xlu0 %v614, 12
  %v638 = vpop.permute.xlu0 %637
  %vm651 = vcmask 130144
  %652 = vst.msk [vmem:[#allocation2] sm:$0xff] %vm651, %v616
  %653 = vst.msk [vmem:[#allocation2 + $0x8] sm:$0xff] %vm651, %v616
  %654 = vst.msk [vmem:[#allocation2 + $0x10] sm:$0xff] %vm651, %v616
  %655 = vst.msk [vmem:[#allocation2 + $0x18] sm:$0xff] %vm651, %v618
  %656 = vst.msk [vmem:[#allocation2 + $0x20] sm:$0xff] %vm651, %v620
  %657 = vst.msk [vmem:[#allocation2 + $0x28] sm:$0xff] %vm651, %v622
  %658 = vst.msk [vmem:[#allocation2 + $0x30] sm:$0xff] %vm651, %v624
  %659 = vst.msk [vmem:[#allocation2 + $0x38] sm:$0xff] %vm651, %v626
  %660 = vst.msk [vmem:[#allocation2 + $0x40] sm:$0xff] %vm651, %v628
  %661 = vst.msk [vmem:[#allocation2 + $0x48] sm:$0xff] %vm651, %v628
  %662 = vst.msk [vmem:[#allocation2 + $0x50] sm:$0xff] %vm651, %v628
  %663 = vst.msk [vmem:[#allocation2 + $0x58] sm:$0xff] %vm651, %v630
  %664 = vst.msk [vmem:[#allocation2 + $0x60] sm:$0xff] %vm651, %v632
  %665 = vst.msk [vmem:[#allocation2 + $0x68] sm:$0xff] %vm651, %v634
  %666 = vst.msk [vmem:[#allocation2 + $0x70] sm:$0xff] %vm651, %v636
  %667 = vst.msk [vmem:[#allocation2 + $0x78] sm:$0xff] %vm651, %v638
  %vm668 = vcmask 1043456
  %v669 = vrot.slane %v308, 4
  %v670 = vrot.slane %v341, 4
  %v671 = vsel %vm668, %v669, %v670
  %v672 = vrot.slane %v309, 4
  %v673 = vrot.slane %v342, 4
  %v674 = vsel %vm668, %v672, %v673
  %v675 = vrot.slane %v310, 4
  %v676 = vrot.slane %v343, 4
  %v677 = vsel %vm668, %v675, %v676
  %v678 = vrot.slane %v311, 4
  %v679 = vrot.slane %v344, 4
  %v680 = vsel %vm668, %v678, %v679
  %v681 = vrot.slane %v312, 4
  %v682 = vrot.slane %v345, 4
  %v683 = vsel %vm668, %v681, %v682
  %v684 = vrot.slane %v313, 4
  %v685 = vrot.slane %v346, 4
  %v686 = vsel %vm668, %v684, %v685
  %v687 = vrot.slane %v316, 4
  %v688 = vrot.slane %v349, 4
  %v689 = vsel %vm668, %v687, %v688
  %v690 = vrot.slane %v317, 4
  %v691 = vrot.slane %v350, 4
  %v692 = vsel %vm668, %v690, %v691
  %v693 = vrot.slane %v318, 4
  %v694 = vrot.slane %v351, 4
  %v695 = vsel %vm668, %v693, %v694
  %v696 = vrot.slane %v319, 4
  %v697 = vrot.slane %v352, 4
  %v698 = vsel %vm668, %v696, %v697
  %v699 = vrot.slane %v320, 4
  %v700 = vrot.slane %v353, 4
  %v701 = vsel %vm668, %v699, %v700
  %v702 = vrot.slane %v321, 4
  %v703 = vrot.slane %v354, 4
  %v704 = vsel %vm668, %v702, %v703
  %705 = vrot.lane.b32.xlu0 %v671, 16
  %v706 = vpop.permute.xlu0 %705
  %707 = vrot.lane.b32.xlu0 %v674, 16
  %v708 = vpop.permute.xlu0 %707
  %709 = vrot.lane.b32.xlu0 %v677, 16
  %v710 = vpop.permute.xlu0 %709
  %711 = vrot.lane.b32.xlu0 %v680, 16
  %v712 = vpop.permute.xlu0 %711
  %713 = vrot.lane.b32.xlu0 %v683, 16
  %v714 = vpop.permute.xlu0 %713
  %715 = vrot.lane.b32.xlu0 %v686, 16
  %v716 = vpop.permute.xlu0 %715
  %717 = vrot.lane.b32.xlu0 %v689, 16
  %v718 = vpop.permute.xlu0 %717
  %719 = vrot.lane.b32.xlu0 %v692, 16
  %v720 = vpop.permute.xlu0 %719
  %721 = vrot.lane.b32.xlu0 %v695, 16
  %v722 = vpop.permute.xlu0 %721
  %723 = vrot.lane.b32.xlu0 %v698, 16
  %v724 = vpop.permute.xlu0 %723
  %725 = vrot.lane.b32.xlu0 %v701, 16
  %v726 = vpop.permute.xlu0 %725
  %727 = vrot.lane.b32.xlu0 %v704, 16
  %v728 = vpop.permute.xlu0 %727
  %vm741 = vcmask 162944
  %742 = vst.msk [vmem:[#allocation2] sm:$0xff] %vm741, %v706
  %743 = vst.msk [vmem:[#allocation2 + $0x8] sm:$0xff] %vm741, %v706
  %744 = vst.msk [vmem:[#allocation2 + $0x10] sm:$0xff] %vm741, %v706
  %745 = vst.msk [vmem:[#allocation2 + $0x18] sm:$0xff] %vm741, %v708
  %746 = vst.msk [vmem:[#allocation2 + $0x20] sm:$0xff] %vm741, %v710
  %747 = vst.msk [vmem:[#allocation2 + $0x28] sm:$0xff] %vm741, %v712
  %748 = vst.msk [vmem:[#allocation2 + $0x30] sm:$0xff] %vm741, %v714
  %749 = vst.msk [vmem:[#allocation2 + $0x38] sm:$0xff] %vm741, %v716
  %750 = vst.msk [vmem:[#allocation2 + $0x40] sm:$0xff] %vm741, %v718
  %751 = vst.msk [vmem:[#allocation2 + $0x48] sm:$0xff] %vm741, %v718
  %752 = vst.msk [vmem:[#allocation2 + $0x50] sm:$0xff] %vm741, %v718
  %753 = vst.msk [vmem:[#allocation2 + $0x58] sm:$0xff] %vm741, %v720
  %754 = vst.msk [vmem:[#allocation2 + $0x60] sm:$0xff] %vm741, %v722
  %755 = vst.msk [vmem:[#allocation2 + $0x68] sm:$0xff] %vm741, %v724
  %756 = vst.msk [vmem:[#allocation2 + $0x70] sm:$0xff] %vm741, %v726
  %757 = vst.msk [vmem:[#allocation2 + $0x78] sm:$0xff] %vm741, %v728
  %760 = vrot.lane.b32.xlu0 %v308, 20
  %v761 = vpop.permute.xlu0 %760
  %762 = vrot.lane.b32.xlu0 %v309, 20
  %v763 = vpop.permute.xlu0 %762
  %764 = vrot.lane.b32.xlu0 %v310, 20
  %v765 = vpop.permute.xlu0 %764
  %766 = vrot.lane.b32.xlu0 %v311, 20
  %v767 = vpop.permute.xlu0 %766
  %768 = vrot.lane.b32.xlu0 %v312, 20
  %v769 = vpop.permute.xlu0 %768
  %770 = vrot.lane.b32.xlu0 %v313, 20
  %v771 = vpop.permute.xlu0 %770
  %772 = vrot.lane.b32.xlu0 %v314, 20
  %v773 = vpop.permute.xlu0 %772
  %774 = vrot.lane.b32.xlu0 %v316, 20
  %v775 = vpop.permute.xlu0 %774
  %776 = vrot.lane.b32.xlu0 %v317, 20
  %v777 = vpop.permute.xlu0 %776
  %778 = vrot.lane.b32.xlu0 %v318, 20
  %v779 = vpop.permute.xlu0 %778
  %780 = vrot.lane.b32.xlu0 %v319, 20
  %v781 = vpop.permute.xlu0 %780
  %782 = vrot.lane.b32.xlu0 %v320, 20
  %v783 = vpop.permute.xlu0 %782
  %784 = vrot.lane.b32.xlu0 %v321, 20
  %v785 = vpop.permute.xlu0 %784
  %786 = vrot.lane.b32.xlu0 %v322, 20
  %v787 = vpop.permute.xlu0 %786
  %vm802 = vcmask 195744
  %803 = vst.msk [vmem:[#allocation2] sm:$0xff] %vm802, %v761
  %804 = vst.msk [vmem:[#allocation2 + $0x8] sm:$0xff] %vm802, %v761
  %805 = vst.msk [vmem:[#allocation2 + $0x10] sm:$0xff] %vm802, %v763
  %806 = vst.msk [vmem:[#allocation2 + $0x18] sm:$0xff] %vm802, %v765
  %807 = vst.msk [vmem:[#allocation2 + $0x20] sm:$0xff] %vm802, %v767
  %808 = vst.msk [vmem:[#allocation2 + $0x28] sm:$0xff] %vm802, %v769
  %809 = vst.msk [vmem:[#allocation2 + $0x30] sm:$0xff] %vm802, %v771
  %810 = vst.msk [vmem:[#allocation2 + $0x38] sm:$0xff] %vm802, %v773
  %811 = vst.msk [vmem:[#allocation2 + $0x40] sm:$0xff] %vm802, %v775
  %812 = vst.msk [vmem:[#allocation2 + $0x48] sm:$0xff] %vm802, %v775
  %813 = vst.msk [vmem:[#allocation2 + $0x50] sm:$0xff] %vm802, %v777
  %814 = vst.msk [vmem:[#allocation2 + $0x58] sm:$0xff] %vm802, %v779
  %815 = vst.msk [vmem:[#allocation2 + $0x60] sm:$0xff] %vm802, %v781
  %816 = vst.msk [vmem:[#allocation2 + $0x68] sm:$0xff] %vm802, %v783
  %817 = vst.msk [vmem:[#allocation2 + $0x70] sm:$0xff] %vm802, %v785
  %818 = vst.msk [vmem:[#allocation2 + $0x78] sm:$0xff] %vm802, %v787
  %v821 = vrot.slane %v314, 1
  %v822 = vrot.slane %v347, 1
  %v823 = vsel %vm398, %v821, %v822
  %v824 = vrot.slane %v322, 1
  %v825 = vrot.slane %v355, 1
  %v826 = vsel %vm398, %v824, %v825
  %827 = vrot.lane.b32.xlu0 %v401, 24
  %v828 = vpop.permute.xlu0 %827
  %829 = vrot.lane.b32.xlu0 %v404, 24
  %v830 = vpop.permute.xlu0 %829
  %831 = vrot.lane.b32.xlu0 %v407, 24
  %v832 = vpop.permute.xlu0 %831
  %833 = vrot.lane.b32.xlu0 %v410, 24
  %v834 = vpop.permute.xlu0 %833
  %835 = vrot.lane.b32.xlu0 %v413, 24
  %v836 = vpop.permute.xlu0 %835
  %837 = vrot.lane.b32.xlu0 %v416, 24
  %v838 = vpop.permute.xlu0 %837
  %839 = vrot.lane.b32.xlu0 %v823, 24
  %v840 = vpop.permute.xlu0 %839
  %841 = vrot.lane.b32.xlu0 %v419, 24
  %v842 = vpop.permute.xlu0 %841
  %843 = vrot.lane.b32.xlu0 %v422, 24
  %v844 = vpop.permute.xlu0 %843
  %845 = vrot.lane.b32.xlu0 %v425, 24
  %v846 = vpop.permute.xlu0 %845
  %847 = vrot.lane.b32.xlu0 %v428, 24
  %v848 = vpop.permute.xlu0 %847
  %849 = vrot.lane.b32.xlu0 %v431, 24
  %v850 = vpop.permute.xlu0 %849
  %851 = vrot.lane.b32.xlu0 %v434, 24
  %v852 = vpop.permute.xlu0 %851
  %853 = vrot.lane.b32.xlu0 %v826, 24
  %v854 = vpop.permute.xlu0 %853
  %vm869 = vcmask 228544
  %870 = vst.msk [vmem:[#allocation2] sm:$0xff] %vm869, %v828
  %871 = vst.msk [vmem:[#allocation2 + $0x8] sm:$0xff] %vm869, %v828
  %872 = vst.msk [vmem:[#allocation2 + $0x10] sm:$0xff] %vm869, %v830
  %873 = vst.msk [vmem:[#allocation2 + $0x18] sm:$0xff] %vm869, %v832
  %874 = vst.msk [vmem:[#allocation2 + $0x20] sm:$0xff] %vm869, %v834
  %875 = vst.msk [vmem:[#allocation2 + $0x28] sm:$0xff] %vm869, %v836
  %876 = vst.msk [vmem:[#allocation2 + $0x30] sm:$0xff] %vm869, %v838
  %877 = vst.msk [vmem:[#allocation2 + $0x38] sm:$0xff] %vm869, %v840
  %878 = vst.msk [vmem:[#allocation2 + $0x40] sm:$0xff] %vm869, %v842
  %879 = vst.msk [vmem:[#allocation2 + $0x48] sm:$0xff] %vm869, %v842
  %880 = vst.msk [vmem:[#allocation2 + $0x50] sm:$0xff] %vm869, %v844
  %881 = vst.msk [vmem:[#allocation2 + $0x58] sm:$0xff] %vm869, %v846
  %882 = vst.msk [vmem:[#allocation2 + $0x60] sm:$0xff] %vm869, %v848
  %883 = vst.msk [vmem:[#allocation2 + $0x68] sm:$0xff] %vm869, %v850
  %884 = vst.msk [vmem:[#allocation2 + $0x70] sm:$0xff] %vm869, %v852
  %885 = vst.msk [vmem:[#allocation2 + $0x78] sm:$0xff] %vm869, %v854
  %v886 = vrot.slane %v314, 2
  %v887 = vrot.slane %v347, 2
  %v888 = vsel %vm488, %v886, %v887
  %v889 = vrot.slane %v322, 2
  %v890 = vrot.slane %v355, 2
  %v891 = vsel %vm488, %v889, %v890
  %892 = vrot.lane.b32.xlu0 %v491, 28
  %v893 = vpop.permute.xlu0 %892
  %894 = vrot.lane.b32.xlu0 %v494, 28
  %v895 = vpop.permute.xlu0 %894
  %896 = vrot.lane.b32.xlu0 %v497, 28
  %v897 = vpop.permute.xlu0 %896
  %898 = vrot.lane.b32.xlu0 %v500, 28
  %v899 = vpop.permute.xlu0 %898
  %900 = vrot.lane.b32.xlu0 %v503, 28
  %v901 = vpop.permute.xlu0 %900
  %902 = vrot.lane.b32.xlu0 %v506, 28
  %v903 = vpop.permute.xlu0 %902
  %904 = vrot.lane.b32.xlu0 %v888, 28
  %v905 = vpop.permute.xlu0 %904
  %906 = vrot.lane.b32.xlu0 %v509, 28
  %v907 = vpop.permute.xlu0 %906
  %908 = vrot.lane.b32.xlu0 %v512, 28
  %v909 = vpop.permute.xlu0 %908
  %910 = vrot.lane.b32.xlu0 %v515, 28
  %v911 = vpop.permute.xlu0 %910
  %912 = vrot.lane.b32.xlu0 %v518, 28
  %v913 = vpop.permute.xlu0 %912
  %914 = vrot.lane.b32.xlu0 %v521, 28
  %v915 = vpop.permute.xlu0 %914
  %916 = vrot.lane.b32.xlu0 %v524, 28
  %v917 = vpop.permute.xlu0 %916
  %918 = vrot.lane.b32.xlu0 %v891, 28
  %v919 = vpop.permute.xlu0 %918
  %vm934 = vcmask 261344
  %935 = vst.msk [vmem:[#allocation2] sm:$0xff] %vm934, %v893
  %936 = vst.msk [vmem:[#allocation2 + $0x8] sm:$0xff] %vm934, %v893
  %937 = vst.msk [vmem:[#allocation2 + $0x10] sm:$0xff] %vm934, %v895
  %938 = vst.msk [vmem:[#allocation2 + $0x18] sm:$0xff] %vm934, %v897
  %939 = vst.msk [vmem:[#allocation2 + $0x20] sm:$0xff] %vm934, %v899
  %940 = vst.msk [vmem:[#allocation2 + $0x28] sm:$0xff] %vm934, %v901
  %941 = vst.msk [vmem:[#allocation2 + $0x30] sm:$0xff] %vm934, %v903
  %942 = vst.msk [vmem:[#allocation2 + $0x38] sm:$0xff] %vm934, %v905
  %943 = vst.msk [vmem:[#allocation2 + $0x40] sm:$0xff] %vm934, %v907
  %944 = vst.msk [vmem:[#allocation2 + $0x48] sm:$0xff] %vm934, %v907
  %945 = vst.msk [vmem:[#allocation2 + $0x50] sm:$0xff] %vm934, %v909
  %946 = vst.msk [vmem:[#allocation2 + $0x58] sm:$0xff] %vm934, %v911
  %947 = vst.msk [vmem:[#allocation2 + $0x60] sm:$0xff] %vm934, %v913
  %948 = vst.msk [vmem:[#allocation2 + $0x68] sm:$0xff] %vm934, %v915
  %949 = vst.msk [vmem:[#allocation2 + $0x70] sm:$0xff] %vm934, %v917
  %950 = vst.msk [vmem:[#allocation2 + $0x78] sm:$0xff] %vm934, %v919
  %v951 = vrot.slane %v314, 3
  %v952 = vrot.slane %v347, 3
  %v953 = vsel %vm578, %v951, %v952
  %v954 = vrot.slane %v322, 3
  %v955 = vrot.slane %v355, 3
  %v956 = vsel %vm578, %v954, %v955
  %957 = vrot.lane.b32.xlu0 %v581, 32
  %v958 = vpop.permute.xlu0 %957
  %959 = vrot.lane.b32.xlu0 %v584, 32
  %v960 = vpop.permute.xlu0 %959
  %961 = vrot.lane.b32.xlu0 %v587, 32
  %v962 = vpop.permute.xlu0 %961
  %963 = vrot.lane.b32.xlu0 %v590, 32
  %v964 = vpop.permute.xlu0 %963
  %965 = vrot.lane.b32.xlu0 %v593, 32
  %v966 = vpop.permute.xlu0 %965
  %967 = vrot.lane.b32.xlu0 %v596, 32
  %v968 = vpop.permute.xlu0 %967
  %969 = vrot.lane.b32.xlu0 %v953, 32
  %v970 = vpop.permute.xlu0 %969
  %971 = vrot.lane.b32.xlu0 %v599, 32
  %v972 = vpop.permute.xlu0 %971
  %973 = vrot.lane.b32.xlu0 %v602, 32
  %v974 = vpop.permute.xlu0 %973
  %975 = vrot.lane.b32.xlu0 %v605, 32
  %v976 = vpop.permute.xlu0 %975
  %977 = vrot.lane.b32.xlu0 %v608, 32
  %v978 = vpop.permute.xlu0 %977
  %979 = vrot.lane.b32.xlu0 %v611, 32
  %v980 = vpop.permute.xlu0 %979
  %981 = vrot.lane.b32.xlu0 %v614, 32
  %v982 = vpop.permute.xlu0 %981
  %983 = vrot.lane.b32.xlu0 %v956, 32
  %v984 = vpop.permute.xlu0 %983
  %vm999 = vcmask 294144
  %1000 = vst.msk [vmem:[#allocation2] sm:$0xff] %vm999, %v958
  %1001 = vst.msk [vmem:[#allocation2 + $0x8] sm:$0xff] %vm999, %v958
  %1002 = vst.msk [vmem:[#allocation2 + $0x10] sm:$0xff] %vm999, %v960
  %1003 = vst.msk [vmem:[#allocation2 + $0x18] sm:$0xff] %vm999, %v962
  %1004 = vst.msk [vmem:[#allocation2 + $0x20] sm:$0xff] %vm999, %v964
  %1005 = vst.msk [vmem:[#allocation2 + $0x28] sm:$0xff] %vm999, %v966
  %1006 = vst.msk [vmem:[#allocation2 + $0x30] sm:$0xff] %vm999, %v968
  %1007 = vst.msk [vmem:[#allocation2 + $0x38] sm:$0xff] %vm999, %v970
  %1008 = vst.msk [vmem:[#allocation2 + $0x40] sm:$0xff] %vm999, %v972
  %1009 = vst.msk [vmem:[#allocation2 + $0x48] sm:$0xff] %vm999, %v972
  %1010 = vst.msk [vmem:[#allocation2 + $0x50] sm:$0xff] %vm999, %v974
  %1011 = vst.msk [vmem:[#allocation2 + $0x58] sm:$0xff] %vm999, %v976
  %1012 = vst.msk [vmem:[#allocation2 + $0x60] sm:$0xff] %vm999, %v978
  %1013 = vst.msk [vmem:[#allocation2 + $0x68] sm:$0xff] %vm999, %v980
  %1014 = vst.msk [vmem:[#allocation2 + $0x70] sm:$0xff] %vm999, %v982
  %1015 = vst.msk [vmem:[#allocation2 + $0x78] sm:$0xff] %vm999, %v984
  %v1016 = vrot.slane %v314, 4
  %v1017 = vrot.slane %v347, 4
  %v1018 = vsel %vm668, %v1016, %v1017
  %v1019 = vrot.slane %v322, 4
  %v1020 = vrot.slane %v355, 4
  %v1021 = vsel %vm668, %v1019, %v1020
  %1022 = vrot.lane.b32.xlu0 %v671, 36
  %v1023 = vpop.permute.xlu0 %1022
  %1024 = vrot.lane.b32.xlu0 %v674, 36
  %v1025 = vpop.permute.xlu0 %1024
  %1026 = vrot.lane.b32.xlu0 %v677, 36
  %v1027 = vpop.permute.xlu0 %1026
  %1028 = vrot.lane.b32.xlu0 %v680, 36
  %v1029 = vpop.permute.xlu0 %1028
  %1030 = vrot.lane.b32.xlu0 %v683, 36
  %v1031 = vpop.permute.xlu0 %1030
  %1032 = vrot.lane.b32.xlu0 %v686, 36
  %v1033 = vpop.permute.xlu0 %1032
  %1034 = vrot.lane.b32.xlu0 %v1018, 36
  %v1035 = vpop.permute.xlu0 %1034
  %1036 = vrot.lane.b32.xlu0 %v689, 36
  %v1037 = vpop.permute.xlu0 %1036
  %1038 = vrot.lane.b32.xlu0 %v692, 36
  %v1039 = vpop.permute.xlu0 %1038
  %1040 = vrot.lane.b32.xlu0 %v695, 36
  %v1041 = vpop.permute.xlu0 %1040
  %1042 = vrot.lane.b32.xlu0 %v698, 36
  %v1043 = vpop.permute.xlu0 %1042
  %1044 = vrot.lane.b32.xlu0 %v701, 36
  %v1045 = vpop.permute.xlu0 %1044
  %1046 = vrot.lane.b32.xlu0 %v704, 36
  %v1047 = vpop.permute.xlu0 %1046
  %1048 = vrot.lane.b32.xlu0 %v1021, 36
  %v1049 = vpop.permute.xlu0 %1048
  %vm1064 = vcmask 326944
  %1065 = vst.msk [vmem:[#allocation2] sm:$0xff] %vm1064, %v1023
  %1066 = vst.msk [vmem:[#allocation2 + $0x8] sm:$0xff] %vm1064, %v1023
  %1067 = vst.msk [vmem:[#allocation2 + $0x10] sm:$0xff] %vm1064, %v1025
  %1068 = vst.msk [vmem:[#allocation2 + $0x18] sm:$0xff] %vm1064, %v1027
  %1069 = vst.msk [vmem:[#allocation2 + $0x20] sm:$0xff] %vm1064, %v1029
  %1070 = vst.msk [vmem:[#allocation2 + $0x28] sm:$0xff] %vm1064, %v1031
  %1071 = vst.msk [vmem:[#allocation2 + $0x30] sm:$0xff] %vm1064, %v1033
  %1072 = vst.msk [vmem:[#allocation2 + $0x38] sm:$0xff] %vm1064, %v1035
  %1073 = vst.msk [vmem:[#allocation2 + $0x40] sm:$0xff] %vm1064, %v1037
  %1074 = vst.msk [vmem:[#allocation2 + $0x48] sm:$0xff] %vm1064, %v1037
  %1075 = vst.msk [vmem:[#allocation2 + $0x50] sm:$0xff] %vm1064, %v1039
  %1076 = vst.msk [vmem:[#allocation2 + $0x58] sm:$0xff] %vm1064, %v1041
  %1077 = vst.msk [vmem:[#allocation2 + $0x60] sm:$0xff] %vm1064, %v1043
  %1078 = vst.msk [vmem:[#allocation2 + $0x68] sm:$0xff] %vm1064, %v1045
  %1079 = vst.msk [vmem:[#allocation2 + $0x70] sm:$0xff] %vm1064, %v1047
  %1080 = vst.msk [vmem:[#allocation2 + $0x78] sm:$0xff] %vm1064, %v1049
  %1083 = vrot.lane.b32.xlu0 %v308, 40
  %v1084 = vpop.permute.xlu0 %1083
  %1085 = vrot.lane.b32.xlu0 %v309, 40
  %v1086 = vpop.permute.xlu0 %1085
  %1087 = vrot.lane.b32.xlu0 %v310, 40
  %v1088 = vpop.permute.xlu0 %1087
  %1089 = vrot.lane.b32.xlu0 %v311, 40
  %v1090 = vpop.permute.xlu0 %1089
  %1091 = vrot.lane.b32.xlu0 %v312, 40
  %v1092 = vpop.permute.xlu0 %1091
  %1093 = vrot.lane.b32.xlu0 %v313, 40
  %v1094 = vpop.permute.xlu0 %1093
  %1095 = vrot.lane.b32.xlu0 %v314, 40
  %v1096 = vpop.permute.xlu0 %1095
  %1097 = vrot.lane.b32.xlu0 %v315, 40
  %v1098 = vpop.permute.xlu0 %1097
  %1099 = vrot.lane.b32.xlu0 %v316, 40
  %v1100 = vpop.permute.xlu0 %1099
  %1101 = vrot.lane.b32.xlu0 %v317, 40
  %v1102 = vpop.permute.xlu0 %1101
  %1103 = vrot.lane.b32.xlu0 %v318, 40
  %v1104 = vpop.permute.xlu0 %1103
  %1105 = vrot.lane.b32.xlu0 %v319, 40
  %v1106 = vpop.permute.xlu0 %1105
  %1107 = vrot.lane.b32.xlu0 %v320, 40
  %v1108 = vpop.permute.xlu0 %1107
  %1109 = vrot.lane.b32.xlu0 %v321, 40
  %v1110 = vpop.permute.xlu0 %1109
  %1111 = vrot.lane.b32.xlu0 %v322, 40
  %v1112 = vpop.permute.xlu0 %1111
  %1113 = vrot.lane.b32.xlu0 %v323, 40
  %v1114 = vpop.permute.xlu0 %1113
  %vm1131 = vcmask 359744
  %1132 = vst.msk [vmem:[#allocation2] sm:$0xff] %vm1131, %v1084
  %1133 = vst.msk [vmem:[#allocation2 + $0x8] sm:$0xff] %vm1131, %v1086
  %1134 = vst.msk [vmem:[#allocation2 + $0x10] sm:$0xff] %vm1131, %v1088
  %1135 = vst.msk [vmem:[#allocation2 + $0x18] sm:$0xff] %vm1131, %v1090
  %1136 = vst.msk [vmem:[#allocation2 + $0x20] sm:$0xff] %vm1131, %v1092
  %1137 = vst.msk [vmem:[#allocation2 + $0x28] sm:$0xff] %vm1131, %v1094
  %1138 = vst.msk [vmem:[#allocation2 + $0x30] sm:$0xff] %vm1131, %v1096
  %1139 = vst.msk [vmem:[#allocation2 + $0x38] sm:$0xff] %vm1131, %v1098
  %1140 = vst.msk [vmem:[#allocation2 + $0x40] sm:$0xff] %vm1131, %v1100
  %1141 = vst.msk [vmem:[#allocation2 + $0x48] sm:$0xff] %vm1131, %v1102
  %1142 = vst.msk [vmem:[#allocation2 + $0x50] sm:$0xff] %vm1131, %v1104
  %1143 = vst.msk [vmem:[#allocation2 + $0x58] sm:$0xff] %vm1131, %v1106
  %1144 = vst.msk [vmem:[#allocation2 + $0x60] sm:$0xff] %vm1131, %v1108
  %1145 = vst.msk [vmem:[#allocation2 + $0x68] sm:$0xff] %vm1131, %v1110
  %1146 = vst.msk [vmem:[#allocation2 + $0x70] sm:$0xff] %vm1131, %v1112
  %1147 = vst.msk [vmem:[#allocation2 + $0x78] sm:$0xff] %vm1131, %v1114
  %v1150 = vrot.slane %v315, 1
  %v1151 = vrot.slane %v348, 1
  %v1152 = vsel %vm398, %v1150, %v1151
  %v1153 = vrot.slane %v323, 1
  %v1154 = vrot.slane %v356, 1
  %v1155 = vsel %vm398, %v1153, %v1154
  %1156 = vrot.lane.b32.xlu0 %v401, 44
  %v1157 = vpop.permute.xlu0 %1156
  %1158 = vrot.lane.b32.xlu0 %v404, 44
  %v1159 = vpop.permute.xlu0 %1158
  %1160 = vrot.lane.b32.xlu0 %v407, 44
  %v1161 = vpop.permute.xlu0 %1160
  %1162 = vrot.lane.b32.xlu0 %v410, 44
  %v1163 = vpop.permute.xlu0 %1162
  %1164 = vrot.lane.b32.xlu0 %v413, 44
  %v1165 = vpop.permute.xlu0 %1164
  %1166 = vrot.lane.b32.xlu0 %v416, 44
  %v1167 = vpop.permute.xlu0 %1166
  %1168 = vrot.lane.b32.xlu0 %v823, 44
  %v1169 = vpop.permute.xlu0 %1168
  %1170 = vrot.lane.b32.xlu0 %v1152, 44
  %v1171 = vpop.permute.xlu0 %1170
  %1172 = vrot.lane.b32.xlu0 %v419, 44
  %v1173 = vpop.permute.xlu0 %1172
  %1174 = vrot.lane.b32.xlu0 %v422, 44
  %v1175 = vpop.permute.xlu0 %1174
  %1176 = vrot.lane.b32.xlu0 %v425, 44
  %v1177 = vpop.permute.xlu0 %1176
  %1178 = vrot.lane.b32.xlu0 %v428, 44
  %v1179 = vpop.permute.xlu0 %1178
  %1180 = vrot.lane.b32.xlu0 %v431, 44
  %v1181 = vpop.permute.xlu0 %1180
  %1182 = vrot.lane.b32.xlu0 %v434, 44
  %v1183 = vpop.permute.xlu0 %1182
  %1184 = vrot.lane.b32.xlu0 %v826, 44
  %v1185 = vpop.permute.xlu0 %1184
  %1186 = vrot.lane.b32.xlu0 %v1155, 44
  %v1187 = vpop.permute.xlu0 %1186
  %vm1204 = vcmask 392544
  %1205 = vst.msk [vmem:[#allocation2] sm:$0xff] %vm1204, %v1157
  %1206 = vst.msk [vmem:[#allocation2 + $0x8] sm:$0xff] %vm1204, %v1159
  %1207 = vst.msk [vmem:[#allocation2 + $0x10] sm:$0xff] %vm1204, %v1161
  %1208 = vst.msk [vmem:[#allocation2 + $0x18] sm:$0xff] %vm1204, %v1163
  %1209 = vst.msk [vmem:[#allocation2 + $0x20] sm:$0xff] %vm1204, %v1165
  %1210 = vst.msk [vmem:[#allocation2 + $0x28] sm:$0xff] %vm1204, %v1167
  %1211 = vst.msk [vmem:[#allocation2 + $0x30] sm:$0xff] %vm1204, %v1169
  %1212 = vst.msk [vmem:[#allocation2 + $0x38] sm:$0xff] %vm1204, %v1171
  %1213 = vst.msk [vmem:[#allocation2 + $0x40] sm:$0xff] %vm1204, %v1173
  %1214 = vst.msk [vmem:[#allocation2 + $0x48] sm:$0xff] %vm1204, %v1175
  %1215 = vst.msk [vmem:[#allocation2 + $0x50] sm:$0xff] %vm1204, %v1177
  %1216 = vst.msk [vmem:[#allocation2 + $0x58] sm:$0xff] %vm1204, %v1179
  %1217 = vst.msk [vmem:[#allocation2 + $0x60] sm:$0xff] %vm1204, %v1181
  %1218 = vst.msk [vmem:[#allocation2 + $0x68] sm:$0xff] %vm1204, %v1183
  %1219 = vst.msk [vmem:[#allocation2 + $0x70] sm:$0xff] %vm1204, %v1185
  %1220 = vst.msk [vmem:[#allocation2 + $0x78] sm:$0xff] %vm1204, %v1187
  %v1221 = vrot.slane %v315, 2
  %v1222 = vrot.slane %v348, 2
  %v1223 = vsel %vm488, %v1221, %v1222
  %v1224 = vrot.slane %v323, 2
  %v1225 = vrot.slane %v356, 2
  %v1226 = vsel %vm488, %v1224, %v1225
  %1227 = vrot.lane.b32.xlu0 %v491, 48
  %v1228 = vpop.permute.xlu0 %1227
  %1229 = vrot.lane.b32.xlu0 %v494, 48
  %v1230 = vpop.permute.xlu0 %1229
  %1231 = vrot.lane.b32.xlu0 %v497, 48
  %v1232 = vpop.permute.xlu0 %1231
  %1233 = vrot.lane.b32.xlu0 %v500, 48
  %v1234 = vpop.permute.xlu0 %1233
  %1235 = vrot.lane.b32.xlu0 %v503, 48
  %v1236 = vpop.permute.xlu0 %1235
  %1237 = vrot.lane.b32.xlu0 %v506, 48
  %v1238 = vpop.permute.xlu0 %1237
  %1239 = vrot.lane.b32.xlu0 %v888, 48
  %v1240 = vpop.permute.xlu0 %1239
  %1241 = vrot.lane.b32.xlu0 %v1223, 48
  %v1242 = vpop.permute.xlu0 %1241
  %1243 = vrot.lane.b32.xlu0 %v509, 48
  %v1244 = vpop.permute.xlu0 %1243
  %1245 = vrot.lane.b32.xlu0 %v512, 48
  %v1246 = vpop.permute.xlu0 %1245
  %1247 = vrot.lane.b32.xlu0 %v515, 48
  %v1248 = vpop.permute.xlu0 %1247
  %1249 = vrot.lane.b32.xlu0 %v518, 48
  %v1250 = vpop.permute.xlu0 %1249
  %1251 = vrot.lane.b32.xlu0 %v521, 48
  %v1252 = vpop.permute.xlu0 %1251
  %1253 = vrot.lane.b32.xlu0 %v524, 48
  %v1254 = vpop.permute.xlu0 %1253
  %1255 = vrot.lane.b32.xlu0 %v891, 48
  %v1256 = vpop.permute.xlu0 %1255
  %1257 = vrot.lane.b32.xlu0 %v1226, 48
  %v1258 = vpop.permute.xlu0 %1257
  %vm1275 = vcmask 425344
  %1276 = vst.msk [vmem:[#allocation2] sm:$0xff] %vm1275, %v1228
  %1277 = vst.msk [vmem:[#allocation2 + $0x8] sm:$0xff] %vm1275, %v1230
  %1278 = vst.msk [vmem:[#allocation2 + $0x10] sm:$0xff] %vm1275, %v1232
  %1279 = vst.msk [vmem:[#allocation2 + $0x18] sm:$0xff] %vm1275, %v1234
  %1280 = vst.msk [vmem:[#allocation2 + $0x20] sm:$0xff] %vm1275, %v1236
  %1281 = vst.msk [vmem:[#allocation2 + $0x28] sm:$0xff] %vm1275, %v1238
  %1282 = vst.msk [vmem:[#allocation2 + $0x30] sm:$0xff] %vm1275, %v1240
  %1283 = vst.msk [vmem:[#allocation2 + $0x38] sm:$0xff] %vm1275, %v1242
  %1284 = vst.msk [vmem:[#allocation2 + $0x40] sm:$0xff] %vm1275, %v1244
  %1285 = vst.msk [vmem:[#allocation2 + $0x48] sm:$0xff] %vm1275, %v1246
  %1286 = vst.msk [vmem:[#allocation2 + $0x50] sm:$0xff] %vm1275, %v1248
  %1287 = vst.msk [vmem:[#allocation2 + $0x58] sm:$0xff] %vm1275, %v1250
  %1288 = vst.msk [vmem:[#allocation2 + $0x60] sm:$0xff] %vm1275, %v1252
  %1289 = vst.msk [vmem:[#allocation2 + $0x68] sm:$0xff] %vm1275, %v1254
  %1290 = vst.msk [vmem:[#allocation2 + $0x70] sm:$0xff] %vm1275, %v1256
  %1291 = vst.msk [vmem:[#allocation2 + $0x78] sm:$0xff] %vm1275, %v1258
  %v1292 = vrot.slane %v315, 3
  %v1293 = vrot.slane %v348, 3
  %v1294 = vsel %vm578, %v1292, %v1293
  %v1295 = vrot.slane %v323, 3
  %v1296 = vrot.slane %v356, 3
  %v1297 = vsel %vm578, %v1295, %v1296
  %1298 = vrot.lane.b32.xlu0 %v581, 52
  %v1299 = vpop.permute.xlu0 %1298
  %1300 = vrot.lane.b32.xlu0 %v584, 52
  %v1301 = vpop.permute.xlu0 %1300
  %1302 = vrot.lane.b32.xlu0 %v587, 52
  %v1303 = vpop.permute.xlu0 %1302
  %1304 = vrot.lane.b32.xlu0 %v590, 52
  %v1305 = vpop.permute.xlu0 %1304
  %1306 = vrot.lane.b32.xlu0 %v593, 52
  %v1307 = vpop.permute.xlu0 %1306
  %1308 = vrot.lane.b32.xlu0 %v596, 52
  %v1309 = vpop.permute.xlu0 %1308
  %1310 = vrot.lane.b32.xlu0 %v953, 52
  %v1311 = vpop.permute.xlu0 %1310
  %1312 = vrot.lane.b32.xlu0 %v1294, 52
  %v1313 = vpop.permute.xlu0 %1312
  %1314 = vrot.lane.b32.xlu0 %v599, 52
  %v1315 = vpop.permute.xlu0 %1314
  %1316 = vrot.lane.b32.xlu0 %v602, 52
  %v1317 = vpop.permute.xlu0 %1316
  %1318 = vrot.lane.b32.xlu0 %v605, 52
  %v1319 = vpop.permute.xlu0 %1318
  %1320 = vrot.lane.b32.xlu0 %v608, 52
  %v1321 = vpop.permute.xlu0 %1320
  %1322 = vrot.lane.b32.xlu0 %v611, 52
  %v1323 = vpop.permute.xlu0 %1322
  %1324 = vrot.lane.b32.xlu0 %v614, 52
  %v1325 = vpop.permute.xlu0 %1324
  %1326 = vrot.lane.b32.xlu0 %v956, 52
  %v1327 = vpop.permute.xlu0 %1326
  %1328 = vrot.lane.b32.xlu0 %v1297, 52
  %v1329 = vpop.permute.xlu0 %1328
  %vm1346 = vcmask 458144
  %1347 = vst.msk [vmem:[#allocation2] sm:$0xff] %vm1346, %v1299
  %1348 = vst.msk [vmem:[#allocation2 + $0x8] sm:$0xff] %vm1346, %v1301
  %1349 = vst.msk [vmem:[#allocation2 + $0x10] sm:$0xff] %vm1346, %v1303
  %1350 = vst.msk [vmem:[#allocation2 + $0x18] sm:$0xff] %vm1346, %v1305
  %1351 = vst.msk [vmem:[#allocation2 + $0x20] sm:$0xff] %vm1346, %v1307
  %1352 = vst.msk [vmem:[#allocation2 + $0x28] sm:$0xff] %vm1346, %v1309
  %1353 = vst.msk [vmem:[#allocation2 + $0x30] sm:$0xff] %vm1346, %v1311
  %1354 = vst.msk [vmem:[#allocation2 + $0x38] sm:$0xff] %vm1346, %v1313
  %1355 = vst.msk [vmem:[#allocation2 + $0x40] sm:$0xff] %vm1346, %v1315
  %1356 = vst.msk [vmem:[#allocation2 + $0x48] sm:$0xff] %vm1346, %v1317
  %1357 = vst.msk [vmem:[#allocation2 + $0x50] sm:$0xff] %vm1346, %v1319
  %1358 = vst.msk [vmem:[#allocation2 + $0x58] sm:$0xff] %vm1346, %v1321
  %1359 = vst.msk [vmem:[#allocation2 + $0x60] sm:$0xff] %vm1346, %v1323
  %1360 = vst.msk [vmem:[#allocation2 + $0x68] sm:$0xff] %vm1346, %v1325
  %1361 = vst.msk [vmem:[#allocation2 + $0x70] sm:$0xff] %vm1346, %v1327
  %1362 = vst.msk [vmem:[#allocation2 + $0x78] sm:$0xff] %vm1346, %v1329
  %v1363 = vrot.slane %v315, 4
  %v1364 = vrot.slane %v348, 4
  %v1365 = vsel %vm668, %v1363, %v1364
  %v1366 = vrot.slane %v323, 4
  %v1367 = vrot.slane %v356, 4
  %v1368 = vsel %vm668, %v1366, %v1367
  %1369 = vrot.lane.b32.xlu0 %v671, 56
  %v1370 = vpop.permute.xlu0 %1369
  %1371 = vrot.lane.b32.xlu0 %v674, 56
  %v1372 = vpop.permute.xlu0 %1371
  %1373 = vrot.lane.b32.xlu0 %v677, 56
  %v1374 = vpop.permute.xlu0 %1373
  %1375 = vrot.lane.b32.xlu0 %v680, 56
  %v1376 = vpop.permute.xlu0 %1375
  %1377 = vrot.lane.b32.xlu0 %v683, 56
  %v1378 = vpop.permute.xlu0 %1377
  %1379 = vrot.lane.b32.xlu0 %v686, 56
  %v1380 = vpop.permute.xlu0 %1379
  %1381 = vrot.lane.b32.xlu0 %v1018, 56
  %v1382 = vpop.permute.xlu0 %1381
  %1383 = vrot.lane.b32.xlu0 %v1365, 56
  %v1384 = vpop.permute.xlu0 %1383
  %1385 = vrot.lane.b32.xlu0 %v689, 56
  %v1386 = vpop.permute.xlu0 %1385
  %1387 = vrot.lane.b32.xlu0 %v692, 56
  %v1388 = vpop.permute.xlu0 %1387
  %1389 = vrot.lane.b32.xlu0 %v695, 56
  %v1390 = vpop.permute.xlu0 %1389
  %1391 = vrot.lane.b32.xlu0 %v698, 56
  %v1392 = vpop.permute.xlu0 %1391
  %1393 = vrot.lane.b32.xlu0 %v701, 56
  %v1394 = vpop.permute.xlu0 %1393
  %1395 = vrot.lane.b32.xlu0 %v704, 56
  %v1396 = vpop.permute.xlu0 %1395
  %1397 = vrot.lane.b32.xlu0 %v1021, 56
  %v1398 = vpop.permute.xlu0 %1397
  %1399 = vrot.lane.b32.xlu0 %v1368, 56
  %v1400 = vpop.permute.xlu0 %1399
  %vm1417 = vcmask 490944
  %1418 = vst.msk [vmem:[#allocation2] sm:$0xff] %vm1417, %v1370
  %1419 = vst.msk [vmem:[#allocation2 + $0x8] sm:$0xff] %vm1417, %v1372
  %1420 = vst.msk [vmem:[#allocation2 + $0x10] sm:$0xff] %vm1417, %v1374
  %1421 = vst.msk [vmem:[#allocation2 + $0x18] sm:$0xff] %vm1417, %v1376
  %1422 = vst.msk [vmem:[#allocation2 + $0x20] sm:$0xff] %vm1417, %v1378
  %1423 = vst.msk [vmem:[#allocation2 + $0x28] sm:$0xff] %vm1417, %v1380
  %1424 = vst.msk [vmem:[#allocation2 + $0x30] sm:$0xff] %vm1417, %v1382
  %1425 = vst.msk [vmem:[#allocation2 + $0x38] sm:$0xff] %vm1417, %v1384
  %1426 = vst.msk [vmem:[#allocation2 + $0x40] sm:$0xff] %vm1417, %v1386
  %1427 = vst.msk [vmem:[#allocation2 + $0x48] sm:$0xff] %vm1417, %v1388
  %1428 = vst.msk [vmem:[#allocation2 + $0x50] sm:$0xff] %vm1417, %v1390
  %1429 = vst.msk [vmem:[#allocation2 + $0x58] sm:$0xff] %vm1417, %v1392
  %1430 = vst.msk [vmem:[#allocation2 + $0x60] sm:$0xff] %vm1417, %v1394
  %1431 = vst.msk [vmem:[#allocation2 + $0x68] sm:$0xff] %vm1417, %v1396
  %1432 = vst.msk [vmem:[#allocation2 + $0x70] sm:$0xff] %vm1417, %v1398
  %1433 = vst.msk [vmem:[#allocation2 + $0x78] sm:$0xff] %vm1417, %v1400
  %1434 = vrot.lane.b32.xlu0 %v309, 60
  %v1435 = vpop.permute.xlu0 %1434
  %1436 = vrot.lane.b32.xlu0 %v310, 60
  %v1437 = vpop.permute.xlu0 %1436
  %1438 = vrot.lane.b32.xlu0 %v311, 60
  %v1439 = vpop.permute.xlu0 %1438
  %1440 = vrot.lane.b32.xlu0 %v312, 60
  %v1441 = vpop.permute.xlu0 %1440
  %1442 = vrot.lane.b32.xlu0 %v313, 60
  %v1443 = vpop.permute.xlu0 %1442
  %1444 = vrot.lane.b32.xlu0 %v314, 60
  %v1445 = vpop.permute.xlu0 %1444
  %1446 = vrot.lane.b32.xlu0 %v315, 60
  %v1447 = vpop.permute.xlu0 %1446
  %1448 = vrot.lane.b32.xlu0 %v317, 60
  %v1449 = vpop.permute.xlu0 %1448
  %1450 = vrot.lane.b32.xlu0 %v318, 60
  %v1451 = vpop.permute.xlu0 %1450
  %1452 = vrot.lane.b32.xlu0 %v319, 60
  %v1453 = vpop.permute.xlu0 %1452
  %1454 = vrot.lane.b32.xlu0 %v320, 60
  %v1455 = vpop.permute.xlu0 %1454
  %1456 = vrot.lane.b32.xlu0 %v321, 60
  %v1457 = vpop.permute.xlu0 %1456
  %1458 = vrot.lane.b32.xlu0 %v322, 60
  %v1459 = vpop.permute.xlu0 %1458
  %1460 = vrot.lane.b32.xlu0 %v323, 60
  %v1461 = vpop.permute.xlu0 %1460
  %vm1476 = vcmask 523744
  %1477 = vst.msk [vmem:[#allocation2] sm:$0xff] %vm1476, %v1435
  %1478 = vst.msk [vmem:[#allocation2 + $0x8] sm:$0xff] %vm1476, %v1437
  %1479 = vst.msk [vmem:[#allocation2 + $0x10] sm:$0xff] %vm1476, %v1439
  %1480 = vst.msk [vmem:[#allocation2 + $0x18] sm:$0xff] %vm1476, %v1441
  %1481 = vst.msk [vmem:[#allocation2 + $0x20] sm:$0xff] %vm1476, %v1443
  %1482 = vst.msk [vmem:[#allocation2 + $0x28] sm:$0xff] %vm1476, %v1445
  %1483 = vst.msk [vmem:[#allocation2 + $0x30] sm:$0xff] %vm1476, %v1447
  %1484 = vst.msk [vmem:[#allocation2 + $0x38] sm:$0xff] %vm1476, %v1447
  %1485 = vst.msk [vmem:[#allocation2 + $0x40] sm:$0xff] %vm1476, %v1449
  %1486 = vst.msk [vmem:[#allocation2 + $0x48] sm:$0xff] %vm1476, %v1451
  %1487 = vst.msk [vmem:[#allocation2 + $0x50] sm:$0xff] %vm1476, %v1453
  %1488 = vst.msk [vmem:[#allocation2 + $0x58] sm:$0xff] %vm1476, %v1455
  %1489 = vst.msk [vmem:[#allocation2 + $0x60] sm:$0xff] %vm1476, %v1457
  %1490 = vst.msk [vmem:[#allocation2 + $0x68] sm:$0xff] %vm1476, %v1459
  %1491 = vst.msk [vmem:[#allocation2 + $0x70] sm:$0xff] %vm1476, %v1461
  %1492 = vst.msk [vmem:[#allocation2 + $0x78] sm:$0xff] %vm1476, %v1461
  %1493 = vrot.lane.b32.xlu0 %v404, 64
  %v1494 = vpop.permute.xlu0 %1493
  %1495 = vrot.lane.b32.xlu0 %v407, 64
  %v1496 = vpop.permute.xlu0 %1495
  %1497 = vrot.lane.b32.xlu0 %v410, 64
  %v1498 = vpop.permute.xlu0 %1497
  %1499 = vrot.lane.b32.xlu0 %v413, 64
  %v1500 = vpop.permute.xlu0 %1499
  %1501 = vrot.lane.b32.xlu0 %v416, 64
  %v1502 = vpop.permute.xlu0 %1501
  %1503 = vrot.lane.b32.xlu0 %v823, 64
  %v1504 = vpop.permute.xlu0 %1503
  %1505 = vrot.lane.b32.xlu0 %v1152, 64
  %v1506 = vpop.permute.xlu0 %1505
  %1507 = vrot.lane.b32.xlu0 %v422, 64
  %v1508 = vpop.permute.xlu0 %1507
  %1509 = vrot.lane.b32.xlu0 %v425, 64
  %v1510 = vpop.permute.xlu0 %1509
  %1511 = vrot.lane.b32.xlu0 %v428, 64
  %v1512 = vpop.permute.xlu0 %1511
  %1513 = vrot.lane.b32.xlu0 %v431, 64
  %v1514 = vpop.permute.xlu0 %1513
  %1515 = vrot.lane.b32.xlu0 %v434, 64
  %v1516 = vpop.permute.xlu0 %1515
  %1517 = vrot.lane.b32.xlu0 %v826, 64
  %v1518 = vpop.permute.xlu0 %1517
  %1519 = vrot.lane.b32.xlu0 %v1155, 64
  %v1520 = vpop.permute.xlu0 %1519
  %vm1535 = vcmask 556544
  %1536 = vst.msk [vmem:[#allocation2] sm:$0xff] %vm1535, %v1494
  %1537 = vst.msk [vmem:[#allocation2 + $0x8] sm:$0xff] %vm1535, %v1496
  %1538 = vst.msk [vmem:[#allocation2 + $0x10] sm:$0xff] %vm1535, %v1498
  %1539 = vst.msk [vmem:[#allocation2 + $0x18] sm:$0xff] %vm1535, %v1500
  %1540 = vst.msk [vmem:[#allocation2 + $0x20] sm:$0xff] %vm1535, %v1502
  %1541 = vst.msk [vmem:[#allocation2 + $0x28] sm:$0xff] %vm1535, %v1504
  %1542 = vst.msk [vmem:[#allocation2 + $0x30] sm:$0xff] %vm1535, %v1506
  %1543 = vst.msk [vmem:[#allocation2 + $0x38] sm:$0xff] %vm1535, %v1506
  %1544 = vst.msk [vmem:[#allocation2 + $0x40] sm:$0xff] %vm1535, %v1508
  %1545 = vst.msk [vmem:[#allocation2 + $0x48] sm:$0xff] %vm1535, %v1510
  %1546 = vst.msk [vmem:[#allocation2 + $0x50] sm:$0xff] %vm1535, %v1512
  %1547 = vst.msk [vmem:[#allocation2 + $0x58] sm:$0xff] %vm1535, %v1514
  %1548 = vst.msk [vmem:[#allocation2 + $0x60] sm:$0xff] %vm1535, %v1516
  %1549 = vst.msk [vmem:[#allocation2 + $0x68] sm:$0xff] %vm1535, %v1518
  %1550 = vst.msk [vmem:[#allocation2 + $0x70] sm:$0xff] %vm1535, %v1520
  %1551 = vst.msk [vmem:[#allocation2 + $0x78] sm:$0xff] %vm1535, %v1520
  %1552 = vrot.lane.b32.xlu0 %v494, 68
  %v1553 = vpop.permute.xlu0 %1552
  %1554 = vrot.lane.b32.xlu0 %v497, 68
  %v1555 = vpop.permute.xlu0 %1554
  %1556 = vrot.lane.b32.xlu0 %v500, 68
  %v1557 = vpop.permute.xlu0 %1556
  %1558 = vrot.lane.b32.xlu0 %v503, 68
  %v1559 = vpop.permute.xlu0 %1558
  %1560 = vrot.lane.b32.xlu0 %v506, 68
  %v1561 = vpop.permute.xlu0 %1560
  %1562 = vrot.lane.b32.xlu0 %v888, 68
  %v1563 = vpop.permute.xlu0 %1562
  %1564 = vrot.lane.b32.xlu0 %v1223, 68
  %v1565 = vpop.permute.xlu0 %1564
  %1566 = vrot.lane.b32.xlu0 %v512, 68
  %v1567 = vpop.permute.xlu0 %1566
  %1568 = vrot.lane.b32.xlu0 %v515, 68
  %v1569 = vpop.permute.xlu0 %1568
  %1570 = vrot.lane.b32.xlu0 %v518, 68
  %v1571 = vpop.permute.xlu0 %1570
  %1572 = vrot.lane.b32.xlu0 %v521, 68
  %v1573 = vpop.permute.xlu0 %1572
  %1574 = vrot.lane.b32.xlu0 %v524, 68
  %v1575 = vpop.permute.xlu0 %1574
  %1576 = vrot.lane.b32.xlu0 %v891, 68
  %v1577 = vpop.permute.xlu0 %1576
  %1578 = vrot.lane.b32.xlu0 %v1226, 68
  %v1579 = vpop.permute.xlu0 %1578
  %vm1594 = vcmask 589344
  %1595 = vst.msk [vmem:[#allocation2] sm:$0xff] %vm1594, %v1553
  %1596 = vst.msk [vmem:[#allocation2 + $0x8] sm:$0xff] %vm1594, %v1555
  %1597 = vst.msk [vmem:[#allocation2 + $0x10] sm:$0xff] %vm1594, %v1557
  %1598 = vst.msk [vmem:[#allocation2 + $0x18] sm:$0xff] %vm1594, %v1559
  %1599 = vst.msk [vmem:[#allocation2 + $0x20] sm:$0xff] %vm1594, %v1561
  %1600 = vst.msk [vmem:[#allocation2 + $0x28] sm:$0xff] %vm1594, %v1563
  %1601 = vst.msk [vmem:[#allocation2 + $0x30] sm:$0xff] %vm1594, %v1565
  %1602 = vst.msk [vmem:[#allocation2 + $0x38] sm:$0xff] %vm1594, %v1565
  %1603 = vst.msk [vmem:[#allocation2 + $0x40] sm:$0xff] %vm1594, %v1567
  %1604 = vst.msk [vmem:[#allocation2 + $0x48] sm:$0xff] %vm1594, %v1569
  %1605 = vst.msk [vmem:[#allocation2 + $0x50] sm:$0xff] %vm1594, %v1571
  %1606 = vst.msk [vmem:[#allocation2 + $0x58] sm:$0xff] %vm1594, %v1573
  %1607 = vst.msk [vmem:[#allocation2 + $0x60] sm:$0xff] %vm1594, %v1575
  %1608 = vst.msk [vmem:[#allocation2 + $0x68] sm:$0xff] %vm1594, %v1577
  %1609 = vst.msk [vmem:[#allocation2 + $0x70] sm:$0xff] %vm1594, %v1579
  %1610 = vst.msk [vmem:[#allocation2 + $0x78] sm:$0xff] %vm1594, %v1579
  %1611 = vrot.lane.b32.xlu0 %v584, 72
  %v1612 = vpop.permute.xlu0 %1611
  %1613 = vrot.lane.b32.xlu0 %v587, 72
  %v1614 = vpop.permute.xlu0 %1613
  %1615 = vrot.lane.b32.xlu0 %v590, 72
  %v1616 = vpop.permute.xlu0 %1615
  %1617 = vrot.lane.b32.xlu0 %v593, 72
  %v1618 = vpop.permute.xlu0 %1617
  %1619 = vrot.lane.b32.xlu0 %v596, 72
  %v1620 = vpop.permute.xlu0 %1619
  %1621 = vrot.lane.b32.xlu0 %v953, 72
  %v1622 = vpop.permute.xlu0 %1621
  %1623 = vrot.lane.b32.xlu0 %v1294, 72
  %v1624 = vpop.permute.xlu0 %1623
  %1625 = vrot.lane.b32.xlu0 %v602, 72
  %v1626 = vpop.permute.xlu0 %1625
  %1627 = vrot.lane.b32.xlu0 %v605, 72
  %v1628 = vpop.permute.xlu0 %1627
  %1629 = vrot.lane.b32.xlu0 %v608, 72
  %v1630 = vpop.permute.xlu0 %1629
  %1631 = vrot.lane.b32.xlu0 %v611, 72
  %v1632 = vpop.permute.xlu0 %1631
  %1633 = vrot.lane.b32.xlu0 %v614, 72
  %v1634 = vpop.permute.xlu0 %1633
  %1635 = vrot.lane.b32.xlu0 %v956, 72
  %v1636 = vpop.permute.xlu0 %1635
  %1637 = vrot.lane.b32.xlu0 %v1297, 72
  %v1638 = vpop.permute.xlu0 %1637
  %vm1653 = vcmask 622144
  %1654 = vst.msk [vmem:[#allocation2] sm:$0xff] %vm1653, %v1612
  %1655 = vst.msk [vmem:[#allocation2 + $0x8] sm:$0xff] %vm1653, %v1614
  %1656 = vst.msk [vmem:[#allocation2 + $0x10] sm:$0xff] %vm1653, %v1616
  %1657 = vst.msk [vmem:[#allocation2 + $0x18] sm:$0xff] %vm1653, %v1618
  %1658 = vst.msk [vmem:[#allocation2 + $0x20] sm:$0xff] %vm1653, %v1620
  %1659 = vst.msk [vmem:[#allocation2 + $0x28] sm:$0xff] %vm1653, %v1622
  %1660 = vst.msk [vmem:[#allocation2 + $0x30] sm:$0xff] %vm1653, %v1624
  %1661 = vst.msk [vmem:[#allocation2 + $0x38] sm:$0xff] %vm1653, %v1624
  %1662 = vst.msk [vmem:[#allocation2 + $0x40] sm:$0xff] %vm1653, %v1626
  %1663 = vst.msk [vmem:[#allocation2 + $0x48] sm:$0xff] %vm1653, %v1628
  %1664 = vst.msk [vmem:[#allocation2 + $0x50] sm:$0xff] %vm1653, %v1630
  %1665 = vst.msk [vmem:[#allocation2 + $0x58] sm:$0xff] %vm1653, %v1632
  %1666 = vst.msk [vmem:[#allocation2 + $0x60] sm:$0xff] %vm1653, %v1634
  %1667 = vst.msk [vmem:[#allocation2 + $0x68] sm:$0xff] %vm1653, %v1636
  %1668 = vst.msk [vmem:[#allocation2 + $0x70] sm:$0xff] %vm1653, %v1638
  %1669 = vst.msk [vmem:[#allocation2 + $0x78] sm:$0xff] %vm1653, %v1638
  %1670 = vrot.lane.b32.xlu0 %v674, 76
  %v1671 = vpop.permute.xlu0 %1670
  %1672 = vrot.lane.b32.xlu0 %v677, 76
  %v1673 = vpop.permute.xlu0 %1672
  %1674 = vrot.lane.b32.xlu0 %v680, 76
  %v1675 = vpop.permute.xlu0 %1674
  %1676 = vrot.lane.b32.xlu0 %v683, 76
  %v1677 = vpop.permute.xlu0 %1676
  %1678 = vrot.lane.b32.xlu0 %v686, 76
  %v1679 = vpop.permute.xlu0 %1678
  %1680 = vrot.lane.b32.xlu0 %v1018, 76
  %v1681 = vpop.permute.xlu0 %1680
  %1682 = vrot.lane.b32.xlu0 %v1365, 76
  %v1683 = vpop.permute.xlu0 %1682
  %1684 = vrot.lane.b32.xlu0 %v692, 76
  %v1685 = vpop.permute.xlu0 %1684
  %1686 = vrot.lane.b32.xlu0 %v695, 76
  %v1687 = vpop.permute.xlu0 %1686
  %1688 = vrot.lane.b32.xlu0 %v698, 76
  %v1689 = vpop.permute.xlu0 %1688
  %1690 = vrot.lane.b32.xlu0 %v701, 76
  %v1691 = vpop.permute.xlu0 %1690
  %1692 = vrot.lane.b32.xlu0 %v704, 76
  %v1693 = vpop.permute.xlu0 %1692
  %1694 = vrot.lane.b32.xlu0 %v1021, 76
  %v1695 = vpop.permute.xlu0 %1694
  %1696 = vrot.lane.b32.xlu0 %v1368, 76
  %v1697 = vpop.permute.xlu0 %1696
  %vm1712 = vcmask 654944
  %1713 = vst.msk [vmem:[#allocation2] sm:$0xff] %vm1712, %v1671
  %1714 = vst.msk [vmem:[#allocation2 + $0x8] sm:$0xff] %vm1712, %v1673
  %1715 = vst.msk [vmem:[#allocation2 + $0x10] sm:$0xff] %vm1712, %v1675
  %1716 = vst.msk [vmem:[#allocation2 + $0x18] sm:$0xff] %vm1712, %v1677
  %1717 = vst.msk [vmem:[#allocation2 + $0x20] sm:$0xff] %vm1712, %v1679
  %1718 = vst.msk [vmem:[#allocation2 + $0x28] sm:$0xff] %vm1712, %v1681
  %1719 = vst.msk [vmem:[#allocation2 + $0x30] sm:$0xff] %vm1712, %v1683
  %1720 = vst.msk [vmem:[#allocation2 + $0x38] sm:$0xff] %vm1712, %v1683
  %1721 = vst.msk [vmem:[#allocation2 + $0x40] sm:$0xff] %vm1712, %v1685
  %1722 = vst.msk [vmem:[#allocation2 + $0x48] sm:$0xff] %vm1712, %v1687
  %1723 = vst.msk [vmem:[#allocation2 + $0x50] sm:$0xff] %vm1712, %v1689
  %1724 = vst.msk [vmem:[#allocation2 + $0x58] sm:$0xff] %vm1712, %v1691
  %1725 = vst.msk [vmem:[#allocation2 + $0x60] sm:$0xff] %vm1712, %v1693
  %1726 = vst.msk [vmem:[#allocation2 + $0x68] sm:$0xff] %vm1712, %v1695
  %1727 = vst.msk [vmem:[#allocation2 + $0x70] sm:$0xff] %vm1712, %v1697
  %1728 = vst.msk [vmem:[#allocation2 + $0x78] sm:$0xff] %vm1712, %v1697
  %1729 = vrot.lane.b32.xlu0 %v310, 80
  %v1730 = vpop.permute.xlu0 %1729
  %1731 = vrot.lane.b32.xlu0 %v311, 80
  %v1732 = vpop.permute.xlu0 %1731
  %1733 = vrot.lane.b32.xlu0 %v312, 80
  %v1734 = vpop.permute.xlu0 %1733
  %1735 = vrot.lane.b32.xlu0 %v313, 80
  %v1736 = vpop.permute.xlu0 %1735
  %1737 = vrot.lane.b32.xlu0 %v314, 80
  %v1738 = vpop.permute.xlu0 %1737
  %1739 = vrot.lane.b32.xlu0 %v315, 80
  %v1740 = vpop.permute.xlu0 %1739
  %1741 = vrot.lane.b32.xlu0 %v318, 80
  %v1742 = vpop.permute.xlu0 %1741
  %1743 = vrot.lane.b32.xlu0 %v319, 80
  %v1744 = vpop.permute.xlu0 %1743
  %1745 = vrot.lane.b32.xlu0 %v320, 80
  %v1746 = vpop.permute.xlu0 %1745
  %1747 = vrot.lane.b32.xlu0 %v321, 80
  %v1748 = vpop.permute.xlu0 %1747
  %1749 = vrot.lane.b32.xlu0 %v322, 80
  %v1750 = vpop.permute.xlu0 %1749
  %1751 = vrot.lane.b32.xlu0 %v323, 80
  %v1752 = vpop.permute.xlu0 %1751
  %vm1765 = vcmask 687744
  %1766 = vst.msk [vmem:[#allocation2] sm:$0xff] %vm1765, %v1730
  %1767 = vst.msk [vmem:[#allocation2 + $0x8] sm:$0xff] %vm1765, %v1732
  %1768 = vst.msk [vmem:[#allocation2 + $0x10] sm:$0xff] %vm1765, %v1734
  %1769 = vst.msk [vmem:[#allocation2 + $0x18] sm:$0xff] %vm1765, %v1736
  %1770 = vst.msk [vmem:[#allocation2 + $0x20] sm:$0xff] %vm1765, %v1738
  %1771 = vst.msk [vmem:[#allocation2 + $0x28] sm:$0xff] %vm1765, %v1740
  %1772 = vst.msk [vmem:[#allocation2 + $0x30] sm:$0xff] %vm1765, %v1740
  %1773 = vst.msk [vmem:[#allocation2 + $0x38] sm:$0xff] %vm1765, %v1740
  %1774 = vst.msk [vmem:[#allocation2 + $0x40] sm:$0xff] %vm1765, %v1742
  %1775 = vst.msk [vmem:[#allocation2 + $0x48] sm:$0xff] %vm1765, %v1744
  %1776 = vst.msk [vmem:[#allocation2 + $0x50] sm:$0xff] %vm1765, %v1746
  %1777 = vst.msk [vmem:[#allocation2 + $0x58] sm:$0xff] %vm1765, %v1748
  %1778 = vst.msk [vmem:[#allocation2 + $0x60] sm:$0xff] %vm1765, %v1750
  %1779 = vst.msk [vmem:[#allocation2 + $0x68] sm:$0xff] %vm1765, %v1752
  %1780 = vst.msk [vmem:[#allocation2 + $0x70] sm:$0xff] %vm1765, %v1752
  %1781 = vst.msk [vmem:[#allocation2 + $0x78] sm:$0xff] %vm1765, %v1752
  %1782 = vrot.lane.b32.xlu0 %v407, 84
  %v1783 = vpop.permute.xlu0 %1782
  %1784 = vrot.lane.b32.xlu0 %v410, 84
  %v1785 = vpop.permute.xlu0 %1784
  %1786 = vrot.lane.b32.xlu0 %v413, 84
  %v1787 = vpop.permute.xlu0 %1786
  %1788 = vrot.lane.b32.xlu0 %v416, 84
  %v1789 = vpop.permute.xlu0 %1788
  %1790 = vrot.lane.b32.xlu0 %v823, 84
  %v1791 = vpop.permute.xlu0 %1790
  %1792 = vrot.lane.b32.xlu0 %v1152, 84
  %v1793 = vpop.permute.xlu0 %1792
  %1794 = vrot.lane.b32.xlu0 %v425, 84
  %v1795 = vpop.permute.xlu0 %1794
  %1796 = vrot.lane.b32.xlu0 %v428, 84
  %v1797 = vpop.permute.xlu0 %1796
  %1798 = vrot.lane.b32.xlu0 %v431, 84
  %v1799 = vpop.permute.xlu0 %1798
  %1800 = vrot.lane.b32.xlu0 %v434, 84
  %v1801 = vpop.permute.xlu0 %1800
  %1802 = vrot.lane.b32.xlu0 %v826, 84
  %v1803 = vpop.permute.xlu0 %1802
  %1804 = vrot.lane.b32.xlu0 %v1155, 84
  %v1805 = vpop.permute.xlu0 %1804
  %vm1818 = vcmask 720544
  %1819 = vst.msk [vmem:[#allocation2] sm:$0xff] %vm1818, %v1783
  %1820 = vst.msk [vmem:[#allocation2 + $0x8] sm:$0xff] %vm1818, %v1785
  %1821 = vst.msk [vmem:[#allocation2 + $0x10] sm:$0xff] %vm1818, %v1787
  %1822 = vst.msk [vmem:[#allocation2 + $0x18] sm:$0xff] %vm1818, %v1789
  %1823 = vst.msk [vmem:[#allocation2 + $0x20] sm:$0xff] %vm1818, %v1791
  %1824 = vst.msk [vmem:[#allocation2 + $0x28] sm:$0xff] %vm1818, %v1793
  %1825 = vst.msk [vmem:[#allocation2 + $0x30] sm:$0xff] %vm1818, %v1793
  %1826 = vst.msk [vmem:[#allocation2 + $0x38] sm:$0xff] %vm1818, %v1793
  %1827 = vst.msk [vmem:[#allocation2 + $0x40] sm:$0xff] %vm1818, %v1795
  %1828 = vst.msk [vmem:[#allocation2 + $0x48] sm:$0xff] %vm1818, %v1797
  %1829 = vst.msk [vmem:[#allocation2 + $0x50] sm:$0xff] %vm1818, %v1799
  %1830 = vst.msk [vmem:[#allocation2 + $0x58] sm:$0xff] %vm1818, %v1801
  %1831 = vst.msk [vmem:[#allocation2 + $0x60] sm:$0xff] %vm1818, %v1803
  %1832 = vst.msk [vmem:[#allocation2 + $0x68] sm:$0xff] %vm1818, %v1805
  %1833 = vst.msk [vmem:[#allocation2 + $0x70] sm:$0xff] %vm1818, %v1805
  %1834 = vst.msk [vmem:[#allocation2 + $0x78] sm:$0xff] %vm1818, %v1805
  %1835 = vrot.lane.b32.xlu0 %v497, 88
  %v1836 = vpop.permute.xlu0 %1835
  %1837 = vrot.lane.b32.xlu0 %v500, 88
  %v1838 = vpop.permute.xlu0 %1837
  %1839 = vrot.lane.b32.xlu0 %v503, 88
  %v1840 = vpop.permute.xlu0 %1839
  %1841 = vrot.lane.b32.xlu0 %v506, 88
  %v1842 = vpop.permute.xlu0 %1841
  %1843 = vrot.lane.b32.xlu0 %v888, 88
  %v1844 = vpop.permute.xlu0 %1843
  %1845 = vrot.lane.b32.xlu0 %v1223, 88
  %v1846 = vpop.permute.xlu0 %1845
  %1847 = vrot.lane.b32.xlu0 %v515, 88
  %v1848 = vpop.permute.xlu0 %1847
  %1849 = vrot.lane.b32.xlu0 %v518, 88
  %v1850 = vpop.permute.xlu0 %1849
  %1851 = vrot.lane.b32.xlu0 %v521, 88
  %v1852 = vpop.permute.xlu0 %1851
  %1853 = vrot.lane.b32.xlu0 %v524, 88
  %v1854 = vpop.permute.xlu0 %1853
  %1855 = vrot.lane.b32.xlu0 %v891, 88
  %v1856 = vpop.permute.xlu0 %1855
  %1857 = vrot.lane.b32.xlu0 %v1226, 88
  %v1858 = vpop.permute.xlu0 %1857
  %vm1871 = vcmask 753344
  %1872 = vst.msk [vmem:[#allocation2] sm:$0xff] %vm1871, %v1836
  %1873 = vst.msk [vmem:[#allocation2 + $0x8] sm:$0xff] %vm1871, %v1838
  %1874 = vst.msk [vmem:[#allocation2 + $0x10] sm:$0xff] %vm1871, %v1840
  %1875 = vst.msk [vmem:[#allocation2 + $0x18] sm:$0xff] %vm1871, %v1842
  %1876 = vst.msk [vmem:[#allocation2 + $0x20] sm:$0xff] %vm1871, %v1844
  %1877 = vst.msk [vmem:[#allocation2 + $0x28] sm:$0xff] %vm1871, %v1846
  %1878 = vst.msk [vmem:[#allocation2 + $0x30] sm:$0xff] %vm1871, %v1846
  %1879 = vst.msk [vmem:[#allocation2 + $0x38] sm:$0xff] %vm1871, %v1846
  %1880 = vst.msk [vmem:[#allocation2 + $0x40] sm:$0xff] %vm1871, %v1848
  %1881 = vst.msk [vmem:[#allocation2 + $0x48] sm:$0xff] %vm1871, %v1850
  %1882 = vst.msk [vmem:[#allocation2 + $0x50] sm:$0xff] %vm1871, %v1852
  %1883 = vst.msk [vmem:[#allocation2 + $0x58] sm:$0xff] %vm1871, %v1854
  %1884 = vst.msk [vmem:[#allocation2 + $0x60] sm:$0xff] %vm1871, %v1856
  %1885 = vst.msk [vmem:[#allocation2 + $0x68] sm:$0xff] %vm1871, %v1858
  %1886 = vst.msk [vmem:[#allocation2 + $0x70] sm:$0xff] %vm1871, %v1858
  %1887 = vst.msk [vmem:[#allocation2 + $0x78] sm:$0xff] %vm1871, %v1858
  %1888 = vrot.lane.b32.xlu0 %v587, 92
  %v1889 = vpop.permute.xlu0 %1888
  %1890 = vrot.lane.b32.xlu0 %v590, 92
  %v1891 = vpop.permute.xlu0 %1890
  %1892 = vrot.lane.b32.xlu0 %v593, 92
  %v1893 = vpop.permute.xlu0 %1892
  %1894 = vrot.lane.b32.xlu0 %v596, 92
  %v1895 = vpop.permute.xlu0 %1894
  %1896 = vrot.lane.b32.xlu0 %v953, 92
  %v1897 = vpop.permute.xlu0 %1896
  %1898 = vrot.lane.b32.xlu0 %v1294, 92
  %v1899 = vpop.permute.xlu0 %1898
  %1900 = vrot.lane.b32.xlu0 %v605, 92
  %v1901 = vpop.permute.xlu0 %1900
  %1902 = vrot.lane.b32.xlu0 %v608, 92
  %v1903 = vpop.permute.xlu0 %1902
  %1904 = vrot.lane.b32.xlu0 %v611, 92
  %v1905 = vpop.permute.xlu0 %1904
  %1906 = vrot.lane.b32.xlu0 %v614, 92
  %v1907 = vpop.permute.xlu0 %1906
  %1908 = vrot.lane.b32.xlu0 %v956, 92
  %v1909 = vpop.permute.xlu0 %1908
  %1910 = vrot.lane.b32.xlu0 %v1297, 92
  %v1911 = vpop.permute.xlu0 %1910
  %vm1924 = vcmask 786144
  %1925 = vst.msk [vmem:[#allocation2] sm:$0xff] %vm1924, %v1889
  %1926 = vst.msk [vmem:[#allocation2 + $0x8] sm:$0xff] %vm1924, %v1891
  %1927 = vst.msk [vmem:[#allocation2 + $0x10] sm:$0xff] %vm1924, %v1893
  %1928 = vst.msk [vmem:[#allocation2 + $0x18] sm:$0xff] %vm1924, %v1895
  %1929 = vst.msk [vmem:[#allocation2 + $0x20] sm:$0xff] %vm1924, %v1897
  %1930 = vst.msk [vmem:[#allocation2 + $0x28] sm:$0xff] %vm1924, %v1899
  %1931 = vst.msk [vmem:[#allocation2 + $0x30] sm:$0xff] %vm1924, %v1899
  %1932 = vst.msk [vmem:[#allocation2 + $0x38] sm:$0xff] %vm1924, %v1899
  %1933 = vst.msk [vmem:[#allocation2 + $0x40] sm:$0xff] %vm1924, %v1901
  %1934 = vst.msk [vmem:[#allocation2 + $0x48] sm:$0xff] %vm1924, %v1903
  %1935 = vst.msk [vmem:[#allocation2 + $0x50] sm:$0xff] %vm1924, %v1905
  %1936 = vst.msk [vmem:[#allocation2 + $0x58] sm:$0xff] %vm1924, %v1907
  %1937 = vst.msk [vmem:[#allocation2 + $0x60] sm:$0xff] %vm1924, %v1909
  %1938 = vst.msk [vmem:[#allocation2 + $0x68] sm:$0xff] %vm1924, %v1911
  %1939 = vst.msk [vmem:[#allocation2 + $0x70] sm:$0xff] %vm1924, %v1911
  %1940 = vst.msk [vmem:[#allocation2 + $0x78] sm:$0xff] %vm1924, %v1911
  %1941 = vrot.lane.b32.xlu0 %v677, 96
  %v1942 = vpop.permute.xlu0 %1941
  %1943 = vrot.lane.b32.xlu0 %v680, 96
  %v1944 = vpop.permute.xlu0 %1943
  %1945 = vrot.lane.b32.xlu0 %v683, 96
  %v1946 = vpop.permute.xlu0 %1945
  %1947 = vrot.lane.b32.xlu0 %v686, 96
  %v1948 = vpop.permute.xlu0 %1947
  %1949 = vrot.lane.b32.xlu0 %v1018, 96
  %v1950 = vpop.permute.xlu0 %1949
  %1951 = vrot.lane.b32.xlu0 %v1365, 96
  %v1952 = vpop.permute.xlu0 %1951
  %1953 = vrot.lane.b32.xlu0 %v695, 96
  %v1954 = vpop.permute.xlu0 %1953
  %1955 = vrot.lane.b32.xlu0 %v698, 96
  %v1956 = vpop.permute.xlu0 %1955
  %1957 = vrot.lane.b32.xlu0 %v701, 96
  %v1958 = vpop.permute.xlu0 %1957
  %1959 = vrot.lane.b32.xlu0 %v704, 96
  %v1960 = vpop.permute.xlu0 %1959
  %1961 = vrot.lane.b32.xlu0 %v1021, 96
  %v1962 = vpop.permute.xlu0 %1961
  %1963 = vrot.lane.b32.xlu0 %v1368, 96
  %v1964 = vpop.permute.xlu0 %1963
  %vm1977 = vcmask 818944
  %1978 = vst.msk [vmem:[#allocation2] sm:$0xff] %vm1977, %v1942
  %1979 = vst.msk [vmem:[#allocation2 + $0x8] sm:$0xff] %vm1977, %v1944
  %1980 = vst.msk [vmem:[#allocation2 + $0x10] sm:$0xff] %vm1977, %v1946
  %1981 = vst.msk [vmem:[#allocation2 + $0x18] sm:$0xff] %vm1977, %v1948
  %1982 = vst.msk [vmem:[#allocation2 + $0x20] sm:$0xff] %vm1977, %v1950
  %1983 = vst.msk [vmem:[#allocation2 + $0x28] sm:$0xff] %vm1977, %v1952
  %1984 = vst.msk [vmem:[#allocation2 + $0x30] sm:$0xff] %vm1977, %v1952
  %1985 = vst.msk [vmem:[#allocation2 + $0x38] sm:$0xff] %vm1977, %v1952
  %1986 = vst.msk [vmem:[#allocation2 + $0x40] sm:$0xff] %vm1977, %v1954
  %1987 = vst.msk [vmem:[#allocation2 + $0x48] sm:$0xff] %vm1977, %v1956
  %1988 = vst.msk [vmem:[#allocation2 + $0x50] sm:$0xff] %vm1977, %v1958
  %1989 = vst.msk [vmem:[#allocation2 + $0x58] sm:$0xff] %vm1977, %v1960
  %1990 = vst.msk [vmem:[#allocation2 + $0x60] sm:$0xff] %vm1977, %v1962
  %1991 = vst.msk [vmem:[#allocation2 + $0x68] sm:$0xff] %vm1977, %v1964
  %1992 = vst.msk [vmem:[#allocation2 + $0x70] sm:$0xff] %vm1977, %v1964
  %1993 = vst.msk [vmem:[#allocation2 + $0x78] sm:$0xff] %vm1977, %v1964
  %v1994 = vld [vmem:[#allocation2] sm:$0xff]
  %v1995 = vld [vmem:[#allocation2 + $0x8] sm:$0xff]
  %v1996 = vld [vmem:[#allocation2 + $0x10] sm:$0xff]
  %v1997 = vld [vmem:[#allocation2 + $0x18] sm:$0xff]
  %v1998 = vld [vmem:[#allocation2 + $0x20] sm:$0xff]
  %v1999 = vld [vmem:[#allocation2 + $0x28] sm:$0xff]
  %v2000 = vld [vmem:[#allocation2 + $0x30] sm:$0xff]
  %v2001 = vld [vmem:[#allocation2 + $0x38] sm:$0xff]
  %v2002 = vld [vmem:[#allocation2 + $0x40] sm:$0xff]
  %v2003 = vld [vmem:[#allocation2 + $0x48] sm:$0xff]
  %v2004 = vld [vmem:[#allocation2 + $0x50] sm:$0xff]
  %v2005 = vld [vmem:[#allocation2 + $0x58] sm:$0xff]
  %v2006 = vld [vmem:[#allocation2 + $0x60] sm:$0xff]
  %v2007 = vld [vmem:[#allocation2 + $0x68] sm:$0xff]
  %v2008 = vld [vmem:[#allocation2 + $0x70] sm:$0xff]
  %v2009 = vld [vmem:[#allocation2 + $0x78] sm:$0xff]
  %v2010 = vld [vmem:[%s1] sm:$0xff]
  %v2011 = vld [vmem:[%s1 + $0x8] sm:$0xff]
  %v2012 = vld [vmem:[%s1 + $0x10] sm:$0xff]
  %v2013 = vld [vmem:[%s1 + $0x18] sm:$0xff]
  %v2014 = vld [vmem:[%s1 + $0x20] sm:$0xff]
  %v2015 = vld [vmem:[%s1 + $0x28] sm:$0xff]
  %v2016 = vld [vmem:[%s1 + $0x30] sm:$0xff]
  %v2017 = vld [vmem:[%s1 + $0x38] sm:$0xff]
  %v2018 = vld [vmem:[%s1 + $0x40] sm:$0xff]
  %v2019 = vld [vmem:[%s1 + $0x48] sm:$0xff]
  %v2020 = vld [vmem:[%s1 + $0x50] sm:$0xff]
  %v2021 = vld [vmem:[%s1 + $0x58] sm:$0xff]
  %v2022 = vld [vmem:[%s1 + $0x60] sm:$0xff]
  %vm2023 = vcmask 850944
  %v2025 = vsel %vm2023, %v1994, 0
  %v2028 = vsel %vm2023, %v1995, 0
  %v2031 = vsel %vm2023, %v1996, 0
  %v2034 = vsel %vm2023, %v1997, 0
  %v2037 = vsel %vm2023, %v1998, 0
  %v2040 = vsel %vm2023, %v1999, 0
  %v2043 = vsel %vm2023, %v2000, 0
  %v2046 = vsel %vm2023, %v2001, 0
  %v2049 = vsel %vm2023, %v2002, 0
  %v2052 = vsel %vm2023, %v2003, 0
  %v2055 = vsel %vm2023, %v2004, 0
  %v2058 = vsel %vm2023, %v2005, 0
  %v2061 = vsel %vm2023, %v2006, 0
  %v2064 = vsel %vm2023, %v2007, 0
  %v2067 = vsel %vm2023, %v2008, 0
  %v2070 = vsel %vm2023, %v2009, 0
  %2072 = vmatprep.subr.mxu0 0.0
  %2073 = vmatpush1.msra.mxu0 0.0
  %2074 = vmatprep.subr.mxu0 0.0
  %2075 = vmatpush1.msra.mxu0 0.0
  %2076 = vmatprep.subr.mxu0 0.0
  %2077 = vmatpush1.msra.mxu0 0.0
  %2078 = vmatprep.subr.mxu0 0.0
  %2079 = vmatpush1.msra.mxu0 %v2022
  %2080 = vmatprep.subr.mxu0 0.0
  %2081 = vmatpush1.msra.mxu0 %v2021
  %2082 = vmatprep.subr.mxu0 0.0
  %2083 = vmatpush1.msra.mxu0 %v2020
  %2084 = vmatprep.subr.mxu0 0.0
  %2085 = vmatpush1.msra.mxu0 %v2019
  %2086 = vmatprep.subr.mxu0 0.0
  %2087 = vmatpush1.msra.mxu0 %v2018
  %2088 = vmatprep.subr.mxu0 0.0
  %2089 = vmatpush1.msra.mxu0 %v2017
  %2090 = vmatprep.subr.mxu0 0.0
  %2091 = vmatpush1.msra.mxu0 %v2016
  %2092 = vmatprep.subr.mxu0 0.0
  %2093 = vmatpush1.msra.mxu0 %v2015
  %2094 = vmatprep.subr.mxu0 0.0
  %2095 = vmatpush1.msra.mxu0 %v2014
  %2096 = vmatprep.subr.mxu0 0.0
  %2097 = vmatpush1.msra.mxu0 %v2013
  %2098 = vmatprep.subr.mxu0 0.0
  %2099 = vmatpush1.msra.mxu0 %v2012
  %2100 = vmatprep.subr.mxu0 0.0
  %2101 = vmatpush1.msra.mxu0 %v2011
  %2102 = vmatprep.subr.mxu0 0.0
  %2103 = vmatpush1.msra.mxu0 %v2010
  %2104 = vmatprep.subr.mxu0 0.0
  %2105 = vmatpush2.msra.mxu0 0.0
  %2106 = vmatprep.subr.mxu0 0.0
  %2107 = vmatpush2.msra.mxu0 0.0
  %2108 = vmatprep.subr.mxu0 0.0
  %2109 = vmatpush2.msra.mxu0 0.0
  %2110 = vmatprep.subr.mxu0 0.0
  %2111 = vmatpush2.msra.mxu0 0.0
  %2112 = vmatprep.subr.mxu0 0.0
  %2113 = vmatpush2.msra.mxu0 0.0
  %2114 = vmatprep.subr.mxu0 0.0
  %2115 = vmatpush2.msra.mxu0 0.0
  %2116 = vmatprep.subr.mxu0 0.0
  %2117 = vmatpush2.msra.mxu0 0.0
  %2118 = vmatprep.subr.mxu0 0.0
  %2119 = vmatpush2.msra.mxu0 0.0
  %2120 = vmatprep.subr.mxu0 0.0
  %2121 = vmatpush2.msra.mxu0 0.0
  %2122 = vmatprep.subr.mxu0 0.0
  %2123 = vmatpush2.msra.mxu0 0.0
  %2124 = vmatprep.subr.mxu0 0.0
  %2125 = vmatpush2.msra.mxu0 0.0
  %2126 = vmatprep.subr.mxu0 0.0
  %2127 = vmatpush2.msra.mxu0 0.0
  %2128 = vmatprep.subr.mxu0 0.0
  %2129 = vmatpush2.msra.mxu0 0.0
  %2130 = vmatprep.subr.mxu0 0.0
  %2131 = vmatpush2.msra.mxu0 0.0
  %2132 = vmatprep.subr.mxu0 0.0
  %2133 = vmatpush2.msra.mxu0 0.0
  %2134 = vmatprep.subr.mxu0 0.0
  %2135 = vmatpush2.msra.mxu0 0.0
  %2136 = vmatprep.mubr.f32.mxu0 0.0
  %2137 = vmatmul.mubr.f32.gmra.mxu0 %v2025
  %v2138 = vpop.f32.mrf.mxu0
  %v2139 = vadd.f32 0.0, %v2138
  %v2140 = vpop.f32.mrf.mxu0
  %2141 = vmatprep.mubr.f32.mxu0 0.0
  %2142 = vmatmul.mubr.f32.gmra.mxu0 %v2028
  %v2143 = vpop.f32.mrf.mxu0
  %v2144 = vadd.f32 0.0, %v2143
  %v2145 = vpop.f32.mrf.mxu0
  %2146 = vmatprep.mubr.f32.mxu0 0.0
  %2147 = vmatmul.mubr.f32.gmra.mxu0 %v2031
  %v2148 = vpop.f32.mrf.mxu0
  %v2149 = vadd.f32 0.0, %v2148
  %v2150 = vpop.f32.mrf.mxu0
  %2151 = vmatprep.mubr.f32.mxu0 0.0
  %2152 = vmatmul.mubr.f32.gmra.mxu0 %v2034
  %v2153 = vpop.f32.mrf.mxu0
  %v2154 = vadd.f32 0.0, %v2153
  %v2155 = vpop.f32.mrf.mxu0
  %2156 = vmatprep.mubr.f32.mxu0 0.0
  %2157 = vmatmul.mubr.f32.gmra.mxu0 %v2037
  %v2158 = vpop.f32.mrf.mxu0
  %v2159 = vadd.f32 0.0, %v2158
  %v2160 = vpop.f32.mrf.mxu0
  %2161 = vmatprep.mubr.f32.mxu0 0.0
  %2162 = vmatmul.mubr.f32.gmra.mxu0 %v2040
  %v2163 = vpop.f32.mrf.mxu0
  %v2164 = vadd.f32 0.0, %v2163
  %v2165 = vpop.f32.mrf.mxu0
  %2166 = vmatprep.mubr.f32.mxu0 0.0
  %2167 = vmatmul.mubr.f32.gmra.mxu0 %v2043
  %v2168 = vpop.f32.mrf.mxu0
  %v2169 = vadd.f32 0.0, %v2168
  %v2170 = vpop.f32.mrf.mxu0
  %2171 = vmatprep.mubr.f32.mxu0 0.0
  %2172 = vmatmul.mubr.f32.gmra.mxu0 %v2046
  %v2173 = vpop.f32.mrf.mxu0
  %v2174 = vadd.f32 0.0, %v2173
  %v2175 = vpop.f32.mrf.mxu0
  %2176 = vmatprep.mubr.f32.mxu0 0.0
  %2177 = vmatmul.mubr.f32.gmra.mxu0 %v2049
  %v2178 = vpop.f32.mrf.mxu0
  %v2179 = vadd.f32 0.0, %v2178
  %v2180 = vpop.f32.mrf.mxu0
  %2181 = vmatprep.mubr.f32.mxu0 0.0
  %2182 = vmatmul.mubr.f32.gmra.mxu0 %v2052
  %v2183 = vpop.f32.mrf.mxu0
  %v2184 = vadd.f32 0.0, %v2183
  %v2185 = vpop.f32.mrf.mxu0
  %2186 = vmatprep.mubr.f32.mxu0 0.0
  %2187 = vmatmul.mubr.f32.gmra.mxu0 %v2055
  %v2188 = vpop.f32.mrf.mxu0
  %v2189 = vadd.f32 0.0, %v2188
  %v2190 = vpop.f32.mrf.mxu0
  %2191 = vmatprep.mubr.f32.mxu0 0.0
  %2192 = vmatmul.mubr.f32.gmra.mxu0 %v2058
  %v2193 = vpop.f32.mrf.mxu0
  %v2194 = vadd.f32 0.0, %v2193
  %v2195 = vpop.f32.mrf.mxu0
  %2196 = vmatprep.mubr.f32.mxu0 0.0
  %2197 = vmatmul.mubr.f32.gmra.mxu0 %v2061
  %v2198 = vpop.f32.mrf.mxu0
  %v2199 = vadd.f32 0.0, %v2198
  %v2200 = vpop.f32.mrf.mxu0
  %2201 = vmatprep.mubr.f32.mxu0 0.0
  %2202 = vmatmul.mubr.f32.gmra.mxu0 %v2064
  %v2203 = vpop.f32.mrf.mxu0
  %v2204 = vadd.f32 0.0, %v2203
  %v2205 = vpop.f32.mrf.mxu0
  %2206 = vmatprep.mubr.f32.mxu0 0.0
  %2207 = vmatmul.mubr.f32.gmra.mxu0 %v2067
  %v2208 = vpop.f32.mrf.mxu0
  %v2209 = vadd.f32 0.0, %v2208
  %v2210 = vpop.f32.mrf.mxu0
  %2211 = vmatprep.mubr.f32.mxu0 0.0
  %2212 = vmatmul.mubr.f32.gmra.mxu0 %v2070
  %v2213 = vpop.f32.mrf.mxu0
  %v2214 = vadd.f32 0.0, %v2213
  %v2215 = vpop.f32.mrf.mxu0
  %2216 = vdwg.mxu0
  %vm2217 = vcmask 64512
  %v2218 = vsel %vm2217, %v2139, 0.0
  %v2219 = vsel %vm2217, %v2144, 0.0
  %v2220 = vadd.f32 %v2218, %v2219
  %v2221 = vsel %vm2217, %v2149, 0.0
  %v2222 = vadd.f32 %v2220, %v2221
  %v2223 = vsel %vm2217, %v2154, 0.0
  %v2224 = vadd.f32 %v2222, %v2223
  %v2225 = vsel %vm2217, %v2159, 0.0
  %v2226 = vadd.f32 %v2224, %v2225
  %v2227 = vsel %vm2217, %v2164, 0.0
  %v2228 = vadd.f32 %v2226, %v2227
  %v2229 = vsel %vm2217, %v2169, 0.0
  %v2230 = vadd.f32 %v2228, %v2229
  %v2231 = vsel %vm2217, %v2174, 0.0
  %v2232 = vadd.f32 %v2230, %v2231
  %v2233 = vsel %vm2217, %v2179, 0.0
  %v2234 = vadd.f32 %v2232, %v2233
  %v2235 = vsel %vm2217, %v2184, 0.0
  %v2236 = vadd.f32 %v2234, %v2235
  %v2237 = vsel %vm2217, %v2189, 0.0
  %v2238 = vadd.f32 %v2236, %v2237
  %v2239 = vsel %vm2217, %v2194, 0.0
  %v2240 = vadd.f32 %v2238, %v2239
  %v2241 = vsel %vm2217, %v2199, 0.0
  %v2242 = vadd.f32 %v2240, %v2241
  %v2243 = vsel %vm2217, %v2204, 0.0
  %v2244 = vadd.f32 %v2242, %v2243
  %v2245 = vsel %vm2217, %v2209, 0.0
  %v2246 = vadd.f32 %v2244, %v2245
  %v2247 = vsel %vm2217, %v2214, 0.0
  %v2248 = vadd.f32 %v2246, %v2247
  %v2249 = vrot.slane %v2248, 4
  %v2250 = vadd.f32 %v2248, %v2249
  %v2251 = vrot.slane %v2250, 2
  %v2252 = vadd.f32 %v2250, %v2251
  %v2253 = vrot.slane %v2252, 1
  %v2254 = vadd.f32 %v2252, %v2253
  %v2255 = vrcp.pop 128.0
  %v2256 = vmul.f32 %v2254, %v2255
  %v2257 = vsub.f32 %v2139, %v2256
  %v2258 = vsub.f32 %v2144, %v2256
  %v2259 = vsub.f32 %v2149, %v2256
  %v2260 = vsub.f32 %v2154, %v2256
  %v2261 = vsub.f32 %v2159, %v2256
  %v2262 = vsub.f32 %v2164, %v2256
  %v2263 = vsub.f32 %v2169, %v2256
  %v2264 = vsub.f32 %v2174, %v2256
  %v2265 = vsub.f32 %v2179, %v2256
  %v2266 = vsub.f32 %v2184, %v2256
  %v2267 = vsub.f32 %v2189, %v2256
  %v2268 = vsub.f32 %v2194, %v2256
  %v2269 = vsub.f32 %v2199, %v2256
  %v2270 = vsub.f32 %v2204, %v2256
  %v2271 = vsub.f32 %v2209, %v2256
  %v2272 = vsub.f32 %v2214, %v2256
  %v2273 = vmul.f32 %v2257, %v2257
  %v2274 = vmul.f32 %v2258, %v2258
  %v2275 = vmul.f32 %v2259, %v2259
  %v2276 = vmul.f32 %v2260, %v2260
  %v2277 = vmul.f32 %v2261, %v2261
  %v2278 = vmul.f32 %v2262, %v2262
  %v2279 = vmul.f32 %v2263, %v2263
  %v2280 = vmul.f32 %v2264, %v2264
  %v2281 = vmul.f32 %v2265, %v2265
  %v2282 = vmul.f32 %v2266, %v2266
  %v2283 = vmul.f32 %v2267, %v2267
  %v2284 = vmul.f32 %v2268, %v2268
  %v2285 = vmul.f32 %v2269, %v2269
  %v2286 = vmul.f32 %v2270, %v2270
  %v2287 = vmul.f32 %v2271, %v2271
  %v2288 = vmul.f32 %v2272, %v2272
  %v2289 = vsel %vm2217, %v2273, 0.0
  %v2290 = vsel %vm2217, %v2274, 0.0
  %v2291 = vadd.f32 %v2289, %v2290
  %v2292 = vsel %vm2217, %v2275, 0.0
  %v2293 = vadd.f32 %v2291, %v2292
  %v2294 = vsel %vm2217, %v2276, 0.0
  %v2295 = vadd.f32 %v2293, %v2294
  %v2296 = vsel %vm2217, %v2277, 0.0
  %v2297 = vadd.f32 %v2295, %v2296
  %v2298 = vsel %vm2217, %v2278, 0.0
  %v2299 = vadd.f32 %v2297, %v2298
  %v2300 = vsel %vm2217, %v2279, 0.0
  %v2301 = vadd.f32 %v2299, %v2300
  %v2302 = vsel %vm2217, %v2280, 0.0
  %v2303 = vadd.f32 %v2301, %v2302
  %v2304 = vsel %vm2217, %v2281, 0.0
  %v2305 = vadd.f32 %v2303, %v2304
  %v2306 = vsel %vm2217, %v2282, 0.0
  %v2307 = vadd.f32 %v2305, %v2306
  %v2308 = vsel %vm2217, %v2283, 0.0
  %v2309 = vadd.f32 %v2307, %v2308
  %v2310 = vsel %vm2217, %v2284, 0.0
  %v2311 = vadd.f32 %v2309, %v2310
  %v2312 = vsel %vm2217, %v2285, 0.0
  %v2313 = vadd.f32 %v2311, %v2312
  %v2314 = vsel %vm2217, %v2286, 0.0
  %v2315 = vadd.f32 %v2313, %v2314
  %v2316 = vsel %vm2217, %v2287, 0.0
  %v2317 = vadd.f32 %v2315, %v2316
  %v2318 = vsel %vm2217, %v2288, 0.0
  %v2319 = vadd.f32 %v2317, %v2318
  %v2320 = vrot.slane %v2319, 4
  %v2321 = vadd.f32 %v2319, %v2320
  %v2322 = vrot.slane %v2321, 2
  %v2323 = vadd.f32 %v2321, %v2322
  %v2324 = vrot.slane %v2323, 1
  %v2325 = vadd.f32 %v2323, %v2324
  %v2326 = vmul.f32 %v2325, %v2255
  %v2327 = vadd.f32 %v2326, 1e-05
  %v2328 = vrsqrt.pop %v2327
  %v2329 = vmul.f32 %v2257, %v2328
  %v2330 = vmul.f32 %v2258, %v2328
  %v2331 = vmul.f32 %v2259, %v2328
  %v2332 = vmul.f32 %v2260, %v2328
  %v2333 = vmul.f32 %v2261, %v2328
  %v2334 = vmul.f32 %v2262, %v2328
  %v2335 = vmul.f32 %v2263, %v2328
  %v2336 = vmul.f32 %v2264, %v2328
  %v2337 = vmul.f32 %v2265, %v2328
  %v2338 = vmul.f32 %v2266, %v2328
  %v2339 = vmul.f32 %v2267, %v2328
  %v2340 = vmul.f32 %v2268, %v2328
  %v2341 = vmul.f32 %v2269, %v2328
  %v2342 = vmul.f32 %v2270, %v2328
  %v2343 = vmul.f32 %v2271, %v2328
  %v2344 = vmul.f32 %v2272, %v2328
  %vm2345 = vcmp.ge.f32.partialorder %v2329, 0.0
  %vm2346 = vcmp.ge.f32.partialorder %v2330, 0.0
  %vm2347 = vcmp.ge.f32.partialorder %v2331, 0.0
  %vm2348 = vcmp.ge.f32.partialorder %v2332, 0.0
  %vm2349 = vcmp.ge.f32.partialorder %v2333, 0.0
  %vm2350 = vcmp.ge.f32.partialorder %v2334, 0.0
  %vm2351 = vcmp.ge.f32.partialorder %v2335, 0.0
  %vm2352 = vcmp.ge.f32.partialorder %v2336, 0.0
  %vm2353 = vcmp.ge.f32.partialorder %v2337, 0.0
  %vm2354 = vcmp.ge.f32.partialorder %v2338, 0.0
  %vm2355 = vcmp.ge.f32.partialorder %v2339, 0.0
  %vm2356 = vcmp.ge.f32.partialorder %v2340, 0.0
  %vm2357 = vcmp.ge.f32.partialorder %v2341, 0.0
  %vm2358 = vcmp.ge.f32.partialorder %v2342, 0.0
  %vm2359 = vcmp.ge.f32.partialorder %v2343, 0.0
  %vm2360 = vcmp.ge.f32.partialorder %v2344, 0.0
  %v2361 = vmul.f32 %v2329, 0.1
  %v2362 = vmul.f32 %v2330, 0.1
  %v2363 = vmul.f32 %v2331, 0.1
  %v2364 = vmul.f32 %v2332, 0.1
  %v2365 = vmul.f32 %v2333, 0.1
  %v2366 = vmul.f32 %v2334, 0.1
  %v2367 = vmul.f32 %v2335, 0.1
  %v2368 = vmul.f32 %v2336, 0.1
  %v2369 = vmul.f32 %v2337, 0.1
  %v2370 = vmul.f32 %v2338, 0.1
  %v2371 = vmul.f32 %v2339, 0.1
  %v2372 = vmul.f32 %v2340, 0.1
  %v2373 = vmul.f32 %v2341, 0.1
  %v2374 = vmul.f32 %v2342, 0.1
  %v2375 = vmul.f32 %v2343, 0.1
  %v2376 = vmul.f32 %v2344, 0.1
  %v2377 = vsel %vm2345, %v2329, %v2361
  %v2378 = vsel %vm2346, %v2330, %v2362
  %v2379 = vsel %vm2347, %v2331, %v2363
  %v2380 = vsel %vm2348, %v2332, %v2364
  %v2381 = vsel %vm2349, %v2333, %v2365
  %v2382 = vsel %vm2350, %v2334, %v2366
  %v2383 = vsel %vm2351, %v2335, %v2367
  %v2384 = vsel %vm2352, %v2336, %v2368
  %v2385 = vsel %vm2353, %v2337, %v2369
  %v2386 = vsel %vm2354, %v2338, %v2370
  %v2387 = vsel %vm2355, %v2339, %v2371
  %v2388 = vsel %vm2356, %v2340, %v2372
  %v2389 = vsel %vm2357, %v2341, %v2373
  %v2390 = vsel %vm2358, %v2342, %v2374
  %v2391 = vsel %vm2359, %v2343, %v2375
  %v2392 = vsel %vm2360, %v2344, %v2376
  %v2409 = vrot.slane %v2377, 7
  %v2410 = vrot.slane %v2378, 7
  %v2411 = vrot.slane %v2379, 7
  %v2412 = vrot.slane %v2380, 7
  %v2413 = vrot.slane %v2381, 7
  %v2414 = vrot.slane %v2382, 7
  %v2415 = vrot.slane %v2383, 7
  %v2416 = vrot.slane %v2384, 7
  %v2417 = vrot.slane %v2385, 7
  %v2418 = vrot.slane %v2386, 7
  %v2419 = vrot.slane %v2387, 7
  %v2420 = vrot.slane %v2388, 7
  %v2421 = vrot.slane %v2389, 7
  %v2422 = vrot.slane %v2390, 7
  %v2423 = vrot.slane %v2391, 7
  %v2424 = vrot.slane %v2392, 7
  %v2441 = vrot.slane %v2377, 6
  %v2442 = vrot.slane %v2378, 6
  %v2443 = vrot.slane %v2379, 6
  %v2444 = vrot.slane %v2380, 6
  %v2445 = vrot.slane %v2381, 6
  %v2446 = vrot.slane %v2382, 6
  %v2447 = vrot.slane %v2383, 6
  %v2448 = vrot.slane %v2384, 6
  %v2449 = vrot.slane %v2385, 6
  %v2450 = vrot.slane %v2386, 6
  %v2451 = vrot.slane %v2387, 6
  %v2452 = vrot.slane %v2388, 6
  %v2453 = vrot.slane %v2389, 6
  %v2454 = vrot.slane %v2390, 6
  %v2455 = vrot.slane %v2391, 6
  %v2456 = vrot.slane %v2392, 6
  %v2473 = vrot.slane %v2377, 5
  %v2474 = vrot.slane %v2378, 5
  %v2475 = vrot.slane %v2379, 5
  %v2476 = vrot.slane %v2380, 5
  %v2477 = vrot.slane %v2381, 5
  %v2478 = vrot.slane %v2382, 5
  %v2479 = vrot.slane %v2383, 5
  %v2480 = vrot.slane %v2384, 5
  %v2481 = vrot.slane %v2385, 5
  %v2482 = vrot.slane %v2386, 5
  %v2483 = vrot.slane %v2387, 5
  %v2484 = vrot.slane %v2388, 5
  %v2485 = vrot.slane %v2389, 5
  %v2486 = vrot.slane %v2390, 5
  %v2487 = vrot.slane %v2391, 5
  %v2488 = vrot.slane %v2392, 5
  %v2505 = vrot.slane %v2377, 4
  %v2506 = vrot.slane %v2378, 4
  %v2507 = vrot.slane %v2379, 4
  %v2508 = vrot.slane %v2380, 4
  %v2509 = vrot.slane %v2381, 4
  %v2510 = vrot.slane %v2382, 4
  %v2511 = vrot.slane %v2383, 4
  %v2512 = vrot.slane %v2384, 4
  %v2513 = vrot.slane %v2385, 4
  %v2514 = vrot.slane %v2386, 4
  %v2515 = vrot.slane %v2387, 4
  %v2516 = vrot.slane %v2388, 4
  %v2517 = vrot.slane %v2389, 4
  %v2518 = vrot.slane %v2390, 4
  %v2519 = vrot.slane %v2391, 4
  %v2520 = vrot.slane %v2392, 4
  %v2537 = vsel %vm290, %v2377, %v2409
  %v2538 = vsel %vm290, %v2378, %v2410
  %v2539 = vsel %vm290, %v2379, %v2411
  %v2540 = vsel %vm290, %v2380, %v2412
  %v2541 = vsel %vm290, %v2381, %v2413
  %v2542 = vsel %vm290, %v2382, %v2414
  %v2543 = vsel %vm290, %v2383, %v2415
  %v2544 = vsel %vm290, %v2384, %v2416
  %v2545 = vsel %vm290, %v2385, %v2417
  %v2546 = vsel %vm290, %v2386, %v2418
  %v2547 = vsel %vm290, %v2387, %v2419
  %v2548 = vsel %vm290, %v2388, %v2420
  %v2549 = vsel %vm290, %v2389, %v2421
  %v2550 = vsel %vm290, %v2390, %v2422
  %v2551 = vsel %vm290, %v2391, %v2423
  %v2552 = vsel %vm290, %v2392, %v2424
  %v2553 = vsel %vm307, %v2537, %v2441
  %v2554 = vsel %vm307, %v2538, %v2442
  %v2555 = vsel %vm307, %v2539, %v2443
  %v2556 = vsel %vm307, %v2540, %v2444
  %v2557 = vsel %vm307, %v2541, %v2445
  %v2558 = vsel %vm307, %v2542, %v2446
  %v2559 = vsel %vm307, %v2543, %v2447
  %v2560 = vsel %vm307, %v2544, %v2448
  %v2561 = vsel %vm307, %v2545, %v2449
  %v2562 = vsel %vm307, %v2546, %v2450
  %v2563 = vsel %vm307, %v2547, %v2451
  %v2564 = vsel %vm307, %v2548, %v2452
  %v2565 = vsel %vm307, %v2549, %v2453
  %v2566 = vsel %vm307, %v2550, %v2454
  %v2567 = vsel %vm307, %v2551, %v2455
  %v2568 = vsel %vm307, %v2552, %v2456
  %v2569 = vsel %vm307, %v2441, %v2473
  %v2570 = vsel %vm307, %v2442, %v2474
  %v2571 = vsel %vm307, %v2443, %v2475
  %v2572 = vsel %vm307, %v2444, %v2476
  %v2573 = vsel %vm307, %v2445, %v2477
  %v2574 = vsel %vm307, %v2446, %v2478
  %v2575 = vsel %vm307, %v2447, %v2479
  %v2576 = vsel %vm307, %v2448, %v2480
  %v2577 = vsel %vm307, %v2449, %v2481
  %v2578 = vsel %vm307, %v2450, %v2482
  %v2579 = vsel %vm307, %v2451, %v2483
  %v2580 = vsel %vm307, %v2452, %v2484
  %v2581 = vsel %vm307, %v2453, %v2485
  %v2582 = vsel %vm307, %v2454, %v2486
  %v2583 = vsel %vm307, %v2455, %v2487
  %v2584 = vsel %vm307, %v2456, %v2488
  %v2585 = vsel %vm340, %v2569, %v2505
  %v2586 = vsel %vm340, %v2570, %v2506
  %v2587 = vsel %vm340, %v2571, %v2507
  %v2588 = vsel %vm340, %v2572, %v2508
  %v2589 = vsel %vm340, %v2573, %v2509
  %v2590 = vsel %vm340, %v2574, %v2510
  %v2591 = vsel %vm340, %v2575, %v2511
  %v2592 = vsel %vm340, %v2576, %v2512
  %v2593 = vsel %vm340, %v2577, %v2513
  %v2594 = vsel %vm340, %v2578, %v2514
  %v2595 = vsel %vm340, %v2579, %v2515
  %v2596 = vsel %vm340, %v2580, %v2516
  %v2597 = vsel %vm340, %v2581, %v2517
  %v2598 = vsel %vm340, %v2582, %v2518
  %v2599 = vsel %vm340, %v2583, %v2519
  %v2600 = vsel %vm340, %v2584, %v2520
  %2601 = vst.msk [vmem:[#allocation3] sm:$0xff] %vm2217, %v2553
  %2602 = vst.msk [vmem:[#allocation3 + $0x10] sm:$0xff] %vm2217, %v2553
  %2603 = vst.msk [vmem:[#allocation3 + $0x20] sm:$0xff] %vm2217, %v2553
  %2604 = vst.msk [vmem:[#allocation3 + $0x30] sm:$0xff] %vm2217, %v2554
  %2605 = vst.msk [vmem:[#allocation3 + $0x40] sm:$0xff] %vm2217, %v2555
  %2606 = vst.msk [vmem:[#allocation3 + $0x50] sm:$0xff] %vm2217, %v2556
  %2607 = vst.msk [vmem:[#allocation3 + $0x60] sm:$0xff] %vm2217, %v2557
  %2608 = vst.msk [vmem:[#allocation3 + $0x70] sm:$0xff] %vm2217, %v2558
  %2609 = vst.msk [vmem:[#allocation3 + $0x80] sm:$0xff] %vm2217, %v2561
  %2610 = vst.msk [vmem:[#allocation3 + $0x90] sm:$0xff] %vm2217, %v2561
  %2611 = vst.msk [vmem:[#allocation3 + $0xa0] sm:$0xff] %vm2217, %v2561
  %2612 = vst.msk [vmem:[#allocation3 + $0xb0] sm:$0xff] %vm2217, %v2562
  %2613 = vst.msk [vmem:[#allocation3 + $0xc0] sm:$0xff] %vm2217, %v2563
  %2614 = vst.msk [vmem:[#allocation3 + $0xd0] sm:$0xff] %vm2217, %v2564
  %2615 = vst.msk [vmem:[#allocation3 + $0xe0] sm:$0xff] %vm2217, %v2565
  %2616 = vst.msk [vmem:[#allocation3 + $0xf0] sm:$0xff] %vm2217, %v2566
  %v2641 = vrot.slane %v2553, 1
  %v2642 = vrot.slane %v2585, 1
  %v2643 = vsel %vm398, %v2641, %v2642
  %v2644 = vrot.slane %v2554, 1
  %v2645 = vrot.slane %v2586, 1
  %v2646 = vsel %vm398, %v2644, %v2645
  %v2647 = vrot.slane %v2555, 1
  %v2648 = vrot.slane %v2587, 1
  %v2649 = vsel %vm398, %v2647, %v2648
  %v2650 = vrot.slane %v2556, 1
  %v2651 = vrot.slane %v2588, 1
  %v2652 = vsel %vm398, %v2650, %v2651
  %v2653 = vrot.slane %v2557, 1
  %v2654 = vrot.slane %v2589, 1
  %v2655 = vsel %vm398, %v2653, %v2654
  %v2656 = vrot.slane %v2558, 1
  %v2657 = vrot.slane %v2590, 1
  %v2658 = vsel %vm398, %v2656, %v2657
  %v2659 = vrot.slane %v2561, 1
  %v2660 = vrot.slane %v2593, 1
  %v2661 = vsel %vm398, %v2659, %v2660
  %v2662 = vrot.slane %v2562, 1
  %v2663 = vrot.slane %v2594, 1
  %v2664 = vsel %vm398, %v2662, %v2663
  %v2665 = vrot.slane %v2563, 1
  %v2666 = vrot.slane %v2595, 1
  %v2667 = vsel %vm398, %v2665, %v2666
  %v2668 = vrot.slane %v2564, 1
  %v2669 = vrot.slane %v2596, 1
  %v2670 = vsel %vm398, %v2668, %v2669
  %v2671 = vrot.slane %v2565, 1
  %v2672 = vrot.slane %v2597, 1
  %v2673 = vsel %vm398, %v2671, %v2672
  %v2674 = vrot.slane %v2566, 1
  %v2675 = vrot.slane %v2598, 1
  %v2676 = vsel %vm398, %v2674, %v2675
  %2677 = vrot.lane.b32.xlu0 %v2643, 8
  %v2678 = vpop.permute.xlu0 %2677
  %2679 = vrot.lane.b32.xlu0 %v2646, 8
  %v2680 = vpop.permute.xlu0 %2679
  %2681 = vrot.lane.b32.xlu0 %v2649, 8
  %v2682 = vpop.permute.xlu0 %2681
  %2683 = vrot.lane.b32.xlu0 %v2652, 8
  %v2684 = vpop.permute.xlu0 %2683
  %2685 = vrot.lane.b32.xlu0 %v2655, 8
  %v2686 = vpop.permute.xlu0 %2685
  %2687 = vrot.lane.b32.xlu0 %v2658, 8
  %v2688 = vpop.permute.xlu0 %2687
  %2689 = vrot.lane.b32.xlu0 %v2661, 8
  %v2690 = vpop.permute.xlu0 %2689
  %2691 = vrot.lane.b32.xlu0 %v2664, 8
  %v2692 = vpop.permute.xlu0 %2691
  %2693 = vrot.lane.b32.xlu0 %v2667, 8
  %v2694 = vpop.permute.xlu0 %2693
  %2695 = vrot.lane.b32.xlu0 %v2670, 8
  %v2696 = vpop.permute.xlu0 %2695
  %2697 = vrot.lane.b32.xlu0 %v2673, 8
  %v2698 = vpop.permute.xlu0 %2697
  %2699 = vrot.lane.b32.xlu0 %v2676, 8
  %v2700 = vpop.permute.xlu0 %2699
  %vm2713 = vcmask 130112
  %2714 = vst.msk [vmem:[#allocation3] sm:$0xff] %vm2713, %v2678
  %2715 = vst.msk [vmem:[#allocation3 + $0x10] sm:$0xff] %vm2713, %v2678
  %2716 = vst.msk [vmem:[#allocation3 + $0x20] sm:$0xff] %vm2713, %v2678
  %2717 = vst.msk [vmem:[#allocation3 + $0x30] sm:$0xff] %vm2713, %v2680
  %2718 = vst.msk [vmem:[#allocation3 + $0x40] sm:$0xff] %vm2713, %v2682
  %2719 = vst.msk [vmem:[#allocation3 + $0x50] sm:$0xff] %vm2713, %v2684
  %2720 = vst.msk [vmem:[#allocation3 + $0x60] sm:$0xff] %vm2713, %v2686
  %2721 = vst.msk [vmem:[#allocation3 + $0x70] sm:$0xff] %vm2713, %v2688
  %2722 = vst.msk [vmem:[#allocation3 + $0x80] sm:$0xff] %vm2713, %v2690
  %2723 = vst.msk [vmem:[#allocation3 + $0x90] sm:$0xff] %vm2713, %v2690
  %2724 = vst.msk [vmem:[#allocation3 + $0xa0] sm:$0xff] %vm2713, %v2690
  %2725 = vst.msk [vmem:[#allocation3 + $0xb0] sm:$0xff] %vm2713, %v2692
  %2726 = vst.msk [vmem:[#allocation3 + $0xc0] sm:$0xff] %vm2713, %v2694
  %2727 = vst.msk [vmem:[#allocation3 + $0xd0] sm:$0xff] %vm2713, %v2696
  %2728 = vst.msk [vmem:[#allocation3 + $0xe0] sm:$0xff] %vm2713, %v2698
  %2729 = vst.msk [vmem:[#allocation3 + $0xf0] sm:$0xff] %vm2713, %v2700
  %v2730 = vrot.slane %v2553, 2
  %v2731 = vrot.slane %v2585, 2
  %v2732 = vsel %vm488, %v2730, %v2731
  %v2733 = vrot.slane %v2554, 2
  %v2734 = vrot.slane %v2586, 2
  %v2735 = vsel %vm488, %v2733, %v2734
  %v2736 = vrot.slane %v2555, 2
  %v2737 = vrot.slane %v2587, 2
  %v2738 = vsel %vm488, %v2736, %v2737
  %v2739 = vrot.slane %v2556, 2
  %v2740 = vrot.slane %v2588, 2
  %v2741 = vsel %vm488, %v2739, %v2740
  %v2742 = vrot.slane %v2557, 2
  %v2743 = vrot.slane %v2589, 2
  %v2744 = vsel %vm488, %v2742, %v2743
  %v2745 = vrot.slane %v2558, 2
  %v2746 = vrot.slane %v2590, 2
  %v2747 = vsel %vm488, %v2745, %v2746
  %v2748 = vrot.slane %v2561, 2
  %v2749 = vrot.slane %v2593, 2
  %v2750 = vsel %vm488, %v2748, %v2749
  %v2751 = vrot.slane %v2562, 2
  %v2752 = vrot.slane %v2594, 2
  %v2753 = vsel %vm488, %v2751, %v2752
  %v2754 = vrot.slane %v2563, 2
  %v2755 = vrot.slane %v2595, 2
  %v2756 = vsel %vm488, %v2754, %v2755
  %v2757 = vrot.slane %v2564, 2
  %v2758 = vrot.slane %v2596, 2
  %v2759 = vsel %vm488, %v2757, %v2758
  %v2760 = vrot.slane %v2565, 2
  %v2761 = vrot.slane %v2597, 2
  %v2762 = vsel %vm488, %v2760, %v2761
  %v2763 = vrot.slane %v2566, 2
  %v2764 = vrot.slane %v2598, 2
  %v2765 = vsel %vm488, %v2763, %v2764
  %2766 = vrot.lane.b32.xlu0 %v2732, 16
  %v2767 = vpop.permute.xlu0 %2766
  %2768 = vrot.lane.b32.xlu0 %v2735, 16
  %v2769 = vpop.permute.xlu0 %2768
  %2770 = vrot.lane.b32.xlu0 %v2738, 16
  %v2771 = vpop.permute.xlu0 %2770
  %2772 = vrot.lane.b32.xlu0 %v2741, 16
  %v2773 = vpop.permute.xlu0 %2772
  %2774 = vrot.lane.b32.xlu0 %v2744, 16
  %v2775 = vpop.permute.xlu0 %2774
  %2776 = vrot.lane.b32.xlu0 %v2747, 16
  %v2777 = vpop.permute.xlu0 %2776
  %2778 = vrot.lane.b32.xlu0 %v2750, 16
  %v2779 = vpop.permute.xlu0 %2778
  %2780 = vrot.lane.b32.xlu0 %v2753, 16
  %v2781 = vpop.permute.xlu0 %2780
  %2782 = vrot.lane.b32.xlu0 %v2756, 16
  %v2783 = vpop.permute.xlu0 %2782
  %2784 = vrot.lane.b32.xlu0 %v2759, 16
  %v2785 = vpop.permute.xlu0 %2784
  %2786 = vrot.lane.b32.xlu0 %v2762, 16
  %v2787 = vpop.permute.xlu0 %2786
  %2788 = vrot.lane.b32.xlu0 %v2765, 16
  %v2789 = vpop.permute.xlu0 %2788
  %vm2802 = vcmask 195712
  %2803 = vst.msk [vmem:[#allocation3] sm:$0xff] %vm2802, %v2767
  %2804 = vst.msk [vmem:[#allocation3 + $0x10] sm:$0xff] %vm2802, %v2767
  %2805 = vst.msk [vmem:[#allocation3 + $0x20] sm:$0xff] %vm2802, %v2767
  %2806 = vst.msk [vmem:[#allocation3 + $0x30] sm:$0xff] %vm2802, %v2769
  %2807 = vst.msk [vmem:[#allocation3 + $0x40] sm:$0xff] %vm2802, %v2771
  %2808 = vst.msk [vmem:[#allocation3 + $0x50] sm:$0xff] %vm2802, %v2773
  %2809 = vst.msk [vmem:[#allocation3 + $0x60] sm:$0xff] %vm2802, %v2775
  %2810 = vst.msk [vmem:[#allocation3 + $0x70] sm:$0xff] %vm2802, %v2777
  %2811 = vst.msk [vmem:[#allocation3 + $0x80] sm:$0xff] %vm2802, %v2779
  %2812 = vst.msk [vmem:[#allocation3 + $0x90] sm:$0xff] %vm2802, %v2779
  %2813 = vst.msk [vmem:[#allocation3 + $0xa0] sm:$0xff] %vm2802, %v2779
  %2814 = vst.msk [vmem:[#allocation3 + $0xb0] sm:$0xff] %vm2802, %v2781
  %2815 = vst.msk [vmem:[#allocation3 + $0xc0] sm:$0xff] %vm2802, %v2783
  %2816 = vst.msk [vmem:[#allocation3 + $0xd0] sm:$0xff] %vm2802, %v2785
  %2817 = vst.msk [vmem:[#allocation3 + $0xe0] sm:$0xff] %vm2802, %v2787
  %2818 = vst.msk [vmem:[#allocation3 + $0xf0] sm:$0xff] %vm2802, %v2789
  %v2819 = vrot.slane %v2553, 3
  %v2820 = vrot.slane %v2585, 3
  %v2821 = vsel %vm578, %v2819, %v2820
  %v2822 = vrot.slane %v2554, 3
  %v2823 = vrot.slane %v2586, 3
  %v2824 = vsel %vm578, %v2822, %v2823
  %v2825 = vrot.slane %v2555, 3
  %v2826 = vrot.slane %v2587, 3
  %v2827 = vsel %vm578, %v2825, %v2826
  %v2828 = vrot.slane %v2556, 3
  %v2829 = vrot.slane %v2588, 3
  %v2830 = vsel %vm578, %v2828, %v2829
  %v2831 = vrot.slane %v2557, 3
  %v2832 = vrot.slane %v2589, 3
  %v2833 = vsel %vm578, %v2831, %v2832
  %v2834 = vrot.slane %v2558, 3
  %v2835 = vrot.slane %v2590, 3
  %v2836 = vsel %vm578, %v2834, %v2835
  %v2837 = vrot.slane %v2561, 3
  %v2838 = vrot.slane %v2593, 3
  %v2839 = vsel %vm578, %v2837, %v2838
  %v2840 = vrot.slane %v2562, 3
  %v2841 = vrot.slane %v2594, 3
  %v2842 = vsel %vm578, %v2840, %v2841
  %v2843 = vrot.slane %v2563, 3
  %v2844 = vrot.slane %v2595, 3
  %v2845 = vsel %vm578, %v2843, %v2844
  %v2846 = vrot.slane %v2564, 3
  %v2847 = vrot.slane %v2596, 3
  %v2848 = vsel %vm578, %v2846, %v2847
  %v2849 = vrot.slane %v2565, 3
  %v2850 = vrot.slane %v2597, 3
  %v2851 = vsel %vm578, %v2849, %v2850
  %v2852 = vrot.slane %v2566, 3
  %v2853 = vrot.slane %v2598, 3
  %v2854 = vsel %vm578, %v2852, %v2853
  %2855 = vrot.lane.b32.xlu0 %v2821, 24
  %v2856 = vpop.permute.xlu0 %2855
  %2857 = vrot.lane.b32.xlu0 %v2824, 24
  %v2858 = vpop.permute.xlu0 %2857
  %2859 = vrot.lane.b32.xlu0 %v2827, 24
  %v2860 = vpop.permute.xlu0 %2859
  %2861 = vrot.lane.b32.xlu0 %v2830, 24
  %v2862 = vpop.permute.xlu0 %2861
  %2863 = vrot.lane.b32.xlu0 %v2833, 24
  %v2864 = vpop.permute.xlu0 %2863
  %2865 = vrot.lane.b32.xlu0 %v2836, 24
  %v2866 = vpop.permute.xlu0 %2865
  %2867 = vrot.lane.b32.xlu0 %v2839, 24
  %v2868 = vpop.permute.xlu0 %2867
  %2869 = vrot.lane.b32.xlu0 %v2842, 24
  %v2870 = vpop.permute.xlu0 %2869
  %2871 = vrot.lane.b32.xlu0 %v2845, 24
  %v2872 = vpop.permute.xlu0 %2871
  %2873 = vrot.lane.b32.xlu0 %v2848, 24
  %v2874 = vpop.permute.xlu0 %2873
  %2875 = vrot.lane.b32.xlu0 %v2851, 24
  %v2876 = vpop.permute.xlu0 %2875
  %2877 = vrot.lane.b32.xlu0 %v2854, 24
  %v2878 = vpop.permute.xlu0 %2877
  %vm2891 = vcmask 261312
  %2892 = vst.msk [vmem:[#allocation3] sm:$0xff] %vm2891, %v2856
  %2893 = vst.msk [vmem:[#allocation3 + $0x10] sm:$0xff] %vm2891, %v2856
  %2894 = vst.msk [vmem:[#allocation3 + $0x20] sm:$0xff] %vm2891, %v2856
  %2895 = vst.msk [vmem:[#allocation3 + $0x30] sm:$0xff] %vm2891, %v2858
  %2896 = vst.msk [vmem:[#allocation3 + $0x40] sm:$0xff] %vm2891, %v2860
  %2897 = vst.msk [vmem:[#allocation3 + $0x50] sm:$0xff] %vm2891, %v2862
  %2898 = vst.msk [vmem:[#allocation3 + $0x60] sm:$0xff] %vm2891, %v2864
  %2899 = vst.msk [vmem:[#allocation3 + $0x70] sm:$0xff] %vm2891, %v2866
  %2900 = vst.msk [vmem:[#allocation3 + $0x80] sm:$0xff] %vm2891, %v2868
  %2901 = vst.msk [vmem:[#allocation3 + $0x90] sm:$0xff] %vm2891, %v2868
  %2902 = vst.msk [vmem:[#allocation3 + $0xa0] sm:$0xff] %vm2891, %v2868
  %2903 = vst.msk [vmem:[#allocation3 + $0xb0] sm:$0xff] %vm2891, %v2870
  %2904 = vst.msk [vmem:[#allocation3 + $0xc0] sm:$0xff] %vm2891, %v2872
  %2905 = vst.msk [vmem:[#allocation3 + $0xd0] sm:$0xff] %vm2891, %v2874
  %2906 = vst.msk [vmem:[#allocation3 + $0xe0] sm:$0xff] %vm2891, %v2876
  %2907 = vst.msk [vmem:[#allocation3 + $0xf0] sm:$0xff] %vm2891, %v2878
  %v2908 = vrot.slane %v2553, 4
  %v2909 = vrot.slane %v2585, 4
  %v2910 = vsel %vm668, %v2908, %v2909
  %v2911 = vrot.slane %v2554, 4
  %v2912 = vrot.slane %v2586, 4
  %v2913 = vsel %vm668, %v2911, %v2912
  %v2914 = vrot.slane %v2555, 4
  %v2915 = vrot.slane %v2587, 4
  %v2916 = vsel %vm668, %v2914, %v2915
  %v2917 = vrot.slane %v2556, 4
  %v2918 = vrot.slane %v2588, 4
  %v2919 = vsel %vm668, %v2917, %v2918
  %v2920 = vrot.slane %v2557, 4
  %v2921 = vrot.slane %v2589, 4
  %v2922 = vsel %vm668, %v2920, %v2921
  %v2923 = vrot.slane %v2558, 4
  %v2924 = vrot.slane %v2590, 4
  %v2925 = vsel %vm668, %v2923, %v2924
  %v2926 = vrot.slane %v2561, 4
  %v2927 = vrot.slane %v2593, 4
  %v2928 = vsel %vm668, %v2926, %v2927
  %v2929 = vrot.slane %v2562, 4
  %v2930 = vrot.slane %v2594, 4
  %v2931 = vsel %vm668, %v2929, %v2930
  %v2932 = vrot.slane %v2563, 4
  %v2933 = vrot.slane %v2595, 4
  %v2934 = vsel %vm668, %v2932, %v2933
  %v2935 = vrot.slane %v2564, 4
  %v2936 = vrot.slane %v2596, 4
  %v2937 = vsel %vm668, %v2935, %v2936
  %v2938 = vrot.slane %v2565, 4
  %v2939 = vrot.slane %v2597, 4
  %v2940 = vsel %vm668, %v2938, %v2939
  %v2941 = vrot.slane %v2566, 4
  %v2942 = vrot.slane %v2598, 4
  %v2943 = vsel %vm668, %v2941, %v2942
  %2944 = vrot.lane.b32.xlu0 %v2910, 32
  %v2945 = vpop.permute.xlu0 %2944
  %2946 = vrot.lane.b32.xlu0 %v2913, 32
  %v2947 = vpop.permute.xlu0 %2946
  %2948 = vrot.lane.b32.xlu0 %v2916, 32
  %v2949 = vpop.permute.xlu0 %2948
  %2950 = vrot.lane.b32.xlu0 %v2919, 32
  %v2951 = vpop.permute.xlu0 %2950
  %2952 = vrot.lane.b32.xlu0 %v2922, 32
  %v2953 = vpop.permute.xlu0 %2952
  %2954 = vrot.lane.b32.xlu0 %v2925, 32
  %v2955 = vpop.permute.xlu0 %2954
  %2956 = vrot.lane.b32.xlu0 %v2928, 32
  %v2957 = vpop.permute.xlu0 %2956
  %2958 = vrot.lane.b32.xlu0 %v2931, 32
  %v2959 = vpop.permute.xlu0 %2958
  %2960 = vrot.lane.b32.xlu0 %v2934, 32
  %v2961 = vpop.permute.xlu0 %2960
  %2962 = vrot.lane.b32.xlu0 %v2937, 32
  %v2963 = vpop.permute.xlu0 %2962
  %2964 = vrot.lane.b32.xlu0 %v2940, 32
  %v2965 = vpop.permute.xlu0 %2964
  %2966 = vrot.lane.b32.xlu0 %v2943, 32
  %v2967 = vpop.permute.xlu0 %2966
  %vm2980 = vcmask 326912
  %2981 = vst.msk [vmem:[#allocation3] sm:$0xff] %vm2980, %v2945
  %2982 = vst.msk [vmem:[#allocation3 + $0x10] sm:$0xff] %vm2980, %v2945
  %2983 = vst.msk [vmem:[#allocation3 + $0x20] sm:$0xff] %vm2980, %v2945
  %2984 = vst.msk [vmem:[#allocation3 + $0x30] sm:$0xff] %vm2980, %v2947
  %2985 = vst.msk [vmem:[#allocation3 + $0x40] sm:$0xff] %vm2980, %v2949
  %2986 = vst.msk [vmem:[#allocation3 + $0x50] sm:$0xff] %vm2980, %v2951
  %2987 = vst.msk [vmem:[#allocation3 + $0x60] sm:$0xff] %vm2980, %v2953
  %2988 = vst.msk [vmem:[#allocation3 + $0x70] sm:$0xff] %vm2980, %v2955
  %2989 = vst.msk [vmem:[#allocation3 + $0x80] sm:$0xff] %vm2980, %v2957
  %2990 = vst.msk [vmem:[#allocation3 + $0x90] sm:$0xff] %vm2980, %v2957
  %2991 = vst.msk [vmem:[#allocation3 + $0xa0] sm:$0xff] %vm2980, %v2957
  %2992 = vst.msk [vmem:[#allocation3 + $0xb0] sm:$0xff] %vm2980, %v2959
  %2993 = vst.msk [vmem:[#allocation3 + $0xc0] sm:$0xff] %vm2980, %v2961
  %2994 = vst.msk [vmem:[#allocation3 + $0xd0] sm:$0xff] %vm2980, %v2963
  %2995 = vst.msk [vmem:[#allocation3 + $0xe0] sm:$0xff] %vm2980, %v2965
  %2996 = vst.msk [vmem:[#allocation3 + $0xf0] sm:$0xff] %vm2980, %v2967
  %2999 = vrot.lane.b32.xlu0 %v2553, 40
  %v3000 = vpop.permute.xlu0 %2999
  %3001 = vrot.lane.b32.xlu0 %v2554, 40
  %v3002 = vpop.permute.xlu0 %3001
  %3003 = vrot.lane.b32.xlu0 %v2555, 40
  %v3004 = vpop.permute.xlu0 %3003
  %3005 = vrot.lane.b32.xlu0 %v2556, 40
  %v3006 = vpop.permute.xlu0 %3005
  %3007 = vrot.lane.b32.xlu0 %v2557, 40
  %v3008 = vpop.permute.xlu0 %3007
  %3009 = vrot.lane.b32.xlu0 %v2558, 40
  %v3010 = vpop.permute.xlu0 %3009
  %3011 = vrot.lane.b32.xlu0 %v2559, 40
  %v3012 = vpop.permute.xlu0 %3011
  %3013 = vrot.lane.b32.xlu0 %v2561, 40
  %v3014 = vpop.permute.xlu0 %3013
  %3015 = vrot.lane.b32.xlu0 %v2562, 40
  %v3016 = vpop.permute.xlu0 %3015
  %3017 = vrot.lane.b32.xlu0 %v2563, 40
  %v3018 = vpop.permute.xlu0 %3017
  %3019 = vrot.lane.b32.xlu0 %v2564, 40
  %v3020 = vpop.permute.xlu0 %3019
  %3021 = vrot.lane.b32.xlu0 %v2565, 40
  %v3022 = vpop.permute.xlu0 %3021
  %3023 = vrot.lane.b32.xlu0 %v2566, 40
  %v3024 = vpop.permute.xlu0 %3023
  %3025 = vrot.lane.b32.xlu0 %v2567, 40
  %v3026 = vpop.permute.xlu0 %3025
  %vm3041 = vcmask 392512
  %3042 = vst.msk [vmem:[#allocation3] sm:$0xff] %vm3041, %v3000
  %3043 = vst.msk [vmem:[#allocation3 + $0x10] sm:$0xff] %vm3041, %v3000
  %3044 = vst.msk [vmem:[#allocation3 + $0x20] sm:$0xff] %vm3041, %v3002
  %3045 = vst.msk [vmem:[#allocation3 + $0x30] sm:$0xff] %vm3041, %v3004
  %3046 = vst.msk [vmem:[#allocation3 + $0x40] sm:$0xff] %vm3041, %v3006
  %3047 = vst.msk [vmem:[#allocation3 + $0x50] sm:$0xff] %vm3041, %v3008
  %3048 = vst.msk [vmem:[#allocation3 + $0x60] sm:$0xff] %vm3041, %v3010
  %3049 = vst.msk [vmem:[#allocation3 + $0x70] sm:$0xff] %vm3041, %v3012
  %3050 = vst.msk [vmem:[#allocation3 + $0x80] sm:$0xff] %vm3041, %v3014
  %3051 = vst.msk [vmem:[#allocation3 + $0x90] sm:$0xff] %vm3041, %v3014
  %3052 = vst.msk [vmem:[#allocation3 + $0xa0] sm:$0xff] %vm3041, %v3016
  %3053 = vst.msk [vmem:[#allocation3 + $0xb0] sm:$0xff] %vm3041, %v3018
  %3054 = vst.msk [vmem:[#allocation3 + $0xc0] sm:$0xff] %vm3041, %v3020
  %3055 = vst.msk [vmem:[#allocation3 + $0xd0] sm:$0xff] %vm3041, %v3022
  %3056 = vst.msk [vmem:[#allocation3 + $0xe0] sm:$0xff] %vm3041, %v3024
  %3057 = vst.msk [vmem:[#allocation3 + $0xf0] sm:$0xff] %vm3041, %v3026
  %v3060 = vrot.slane %v2559, 1
  %v3061 = vrot.slane %v2591, 1
  %v3062 = vsel %vm398, %v3060, %v3061
  %v3063 = vrot.slane %v2567, 1
  %v3064 = vrot.slane %v2599, 1
  %v3065 = vsel %vm398, %v3063, %v3064
  %3066 = vrot.lane.b32.xlu0 %v2643, 48
  %v3067 = vpop.permute.xlu0 %3066
  %3068 = vrot.lane.b32.xlu0 %v2646, 48
  %v3069 = vpop.permute.xlu0 %3068
  %3070 = vrot.lane.b32.xlu0 %v2649, 48
  %v3071 = vpop.permute.xlu0 %3070
  %3072 = vrot.lane.b32.xlu0 %v2652, 48
  %v3073 = vpop.permute.xlu0 %3072
  %3074 = vrot.lane.b32.xlu0 %v2655, 48
  %v3075 = vpop.permute.xlu0 %3074
  %3076 = vrot.lane.b32.xlu0 %v2658, 48
  %v3077 = vpop.permute.xlu0 %3076
  %3078 = vrot.lane.b32.xlu0 %v3062, 48
  %v3079 = vpop.permute.xlu0 %3078
  %3080 = vrot.lane.b32.xlu0 %v2661, 48
  %v3081 = vpop.permute.xlu0 %3080
  %3082 = vrot.lane.b32.xlu0 %v2664, 48
  %v3083 = vpop.permute.xlu0 %3082
  %3084 = vrot.lane.b32.xlu0 %v2667, 48
  %v3085 = vpop.permute.xlu0 %3084
  %3086 = vrot.lane.b32.xlu0 %v2670, 48
  %v3087 = vpop.permute.xlu0 %3086
  %3088 = vrot.lane.b32.xlu0 %v2673, 48
  %v3089 = vpop.permute.xlu0 %3088
  %3090 = vrot.lane.b32.xlu0 %v2676, 48
  %v3091 = vpop.permute.xlu0 %3090
  %3092 = vrot.lane.b32.xlu0 %v3065, 48
  %v3093 = vpop.permute.xlu0 %3092
  %vm3108 = vcmask 458112
  %3109 = vst.msk [vmem:[#allocation3] sm:$0xff] %vm3108, %v3067
  %3110 = vst.msk [vmem:[#allocation3 + $0x10] sm:$0xff] %vm3108, %v3067
  %3111 = vst.msk [vmem:[#allocation3 + $0x20] sm:$0xff] %vm3108, %v3069
  %3112 = vst.msk [vmem:[#allocation3 + $0x30] sm:$0xff] %vm3108, %v3071
  %3113 = vst.msk [vmem:[#allocation3 + $0x40] sm:$0xff] %vm3108, %v3073
  %3114 = vst.msk [vmem:[#allocation3 + $0x50] sm:$0xff] %vm3108, %v3075
  %3115 = vst.msk [vmem:[#allocation3 + $0x60] sm:$0xff] %vm3108, %v3077
  %3116 = vst.msk [vmem:[#allocation3 + $0x70] sm:$0xff] %vm3108, %v3079
  %3117 = vst.msk [vmem:[#allocation3 + $0x80] sm:$0xff] %vm3108, %v3081
  %3118 = vst.msk [vmem:[#allocation3 + $0x90] sm:$0xff] %vm3108, %v3081
  %3119 = vst.msk [vmem:[#allocation3 + $0xa0] sm:$0xff] %vm3108, %v3083
  %3120 = vst.msk [vmem:[#allocation3 + $0xb0] sm:$0xff] %vm3108, %v3085
  %3121 = vst.msk [vmem:[#allocation3 + $0xc0] sm:$0xff] %vm3108, %v3087
  %3122 = vst.msk [vmem:[#allocation3 + $0xd0] sm:$0xff] %vm3108, %v3089
  %3123 = vst.msk [vmem:[#allocation3 + $0xe0] sm:$0xff] %vm3108, %v3091
  %3124 = vst.msk [vmem:[#allocation3 + $0xf0] sm:$0xff] %vm3108, %v3093
  %v3125 = vrot.slane %v2559, 2
  %v3126 = vrot.slane %v2591, 2
  %v3127 = vsel %vm488, %v3125, %v3126
  %v3128 = vrot.slane %v2567, 2
  %v3129 = vrot.slane %v2599, 2
  %v3130 = vsel %vm488, %v3128, %v3129
  %3131 = vrot.lane.b32.xlu0 %v2732, 56
  %v3132 = vpop.permute.xlu0 %3131
  %3133 = vrot.lane.b32.xlu0 %v2735, 56
  %v3134 = vpop.permute.xlu0 %3133
  %3135 = vrot.lane.b32.xlu0 %v2738, 56
  %v3136 = vpop.permute.xlu0 %3135
  %3137 = vrot.lane.b32.xlu0 %v2741, 56
  %v3138 = vpop.permute.xlu0 %3137
  %3139 = vrot.lane.b32.xlu0 %v2744, 56
  %v3140 = vpop.permute.xlu0 %3139
  %3141 = vrot.lane.b32.xlu0 %v2747, 56
  %v3142 = vpop.permute.xlu0 %3141
  %3143 = vrot.lane.b32.xlu0 %v3127, 56
  %v3144 = vpop.permute.xlu0 %3143
  %3145 = vrot.lane.b32.xlu0 %v2750, 56
  %v3146 = vpop.permute.xlu0 %3145
  %3147 = vrot.lane.b32.xlu0 %v2753, 56
  %v3148 = vpop.permute.xlu0 %3147
  %3149 = vrot.lane.b32.xlu0 %v2756, 56
  %v3150 = vpop.permute.xlu0 %3149
  %3151 = vrot.lane.b32.xlu0 %v2759, 56
  %v3152 = vpop.permute.xlu0 %3151
  %3153 = vrot.lane.b32.xlu0 %v2762, 56
  %v3154 = vpop.permute.xlu0 %3153
  %3155 = vrot.lane.b32.xlu0 %v2765, 56
  %v3156 = vpop.permute.xlu0 %3155
  %3157 = vrot.lane.b32.xlu0 %v3130, 56
  %v3158 = vpop.permute.xlu0 %3157
  %vm3173 = vcmask 523712
  %3174 = vst.msk [vmem:[#allocation3] sm:$0xff] %vm3173, %v3132
  %3175 = vst.msk [vmem:[#allocation3 + $0x10] sm:$0xff] %vm3173, %v3132
  %3176 = vst.msk [vmem:[#allocation3 + $0x20] sm:$0xff] %vm3173, %v3134
  %3177 = vst.msk [vmem:[#allocation3 + $0x30] sm:$0xff] %vm3173, %v3136
  %3178 = vst.msk [vmem:[#allocation3 + $0x40] sm:$0xff] %vm3173, %v3138
  %3179 = vst.msk [vmem:[#allocation3 + $0x50] sm:$0xff] %vm3173, %v3140
  %3180 = vst.msk [vmem:[#allocation3 + $0x60] sm:$0xff] %vm3173, %v3142
  %3181 = vst.msk [vmem:[#allocation3 + $0x70] sm:$0xff] %vm3173, %v3144
  %3182 = vst.msk [vmem:[#allocation3 + $0x80] sm:$0xff] %vm3173, %v3146
  %3183 = vst.msk [vmem:[#allocation3 + $0x90] sm:$0xff] %vm3173, %v3146
  %3184 = vst.msk [vmem:[#allocation3 + $0xa0] sm:$0xff] %vm3173, %v3148
  %3185 = vst.msk [vmem:[#allocation3 + $0xb0] sm:$0xff] %vm3173, %v3150
  %3186 = vst.msk [vmem:[#allocation3 + $0xc0] sm:$0xff] %vm3173, %v3152
  %3187 = vst.msk [vmem:[#allocation3 + $0xd0] sm:$0xff] %vm3173, %v3154
  %3188 = vst.msk [vmem:[#allocation3 + $0xe0] sm:$0xff] %vm3173, %v3156
  %3189 = vst.msk [vmem:[#allocation3 + $0xf0] sm:$0xff] %vm3173, %v3158
  %v3190 = vrot.slane %v2559, 3
  %v3191 = vrot.slane %v2591, 3
  %v3192 = vsel %vm578, %v3190, %v3191
  %v3193 = vrot.slane %v2567, 3
  %v3194 = vrot.slane %v2599, 3
  %v3195 = vsel %vm578, %v3193, %v3194
  %3196 = vrot.lane.b32.xlu0 %v2821, 64
  %v3197 = vpop.permute.xlu0 %3196
  %3198 = vrot.lane.b32.xlu0 %v2824, 64
  %v3199 = vpop.permute.xlu0 %3198
  %3200 = vrot.lane.b32.xlu0 %v2827, 64
  %v3201 = vpop.permute.xlu0 %3200
  %3202 = vrot.lane.b32.xlu0 %v2830, 64
  %v3203 = vpop.permute.xlu0 %3202
  %3204 = vrot.lane.b32.xlu0 %v2833, 64
  %v3205 = vpop.permute.xlu0 %3204
  %3206 = vrot.lane.b32.xlu0 %v2836, 64
  %v3207 = vpop.permute.xlu0 %3206
  %3208 = vrot.lane.b32.xlu0 %v3192, 64
  %v3209 = vpop.permute.xlu0 %3208
  %3210 = vrot.lane.b32.xlu0 %v2839, 64
  %v3211 = vpop.permute.xlu0 %3210
  %3212 = vrot.lane.b32.xlu0 %v2842, 64
  %v3213 = vpop.permute.xlu0 %3212
  %3214 = vrot.lane.b32.xlu0 %v2845, 64
  %v3215 = vpop.permute.xlu0 %3214
  %3216 = vrot.lane.b32.xlu0 %v2848, 64
  %v3217 = vpop.permute.xlu0 %3216
  %3218 = vrot.lane.b32.xlu0 %v2851, 64
  %v3219 = vpop.permute.xlu0 %3218
  %3220 = vrot.lane.b32.xlu0 %v2854, 64
  %v3221 = vpop.permute.xlu0 %3220
  %3222 = vrot.lane.b32.xlu0 %v3195, 64
  %v3223 = vpop.permute.xlu0 %3222
  %vm3238 = vcmask 589312
  %3239 = vst.msk [vmem:[#allocation3] sm:$0xff] %vm3238, %v3197
  %3240 = vst.msk [vmem:[#allocation3 + $0x10] sm:$0xff] %vm3238, %v3197
  %3241 = vst.msk [vmem:[#allocation3 + $0x20] sm:$0xff] %vm3238, %v3199
  %3242 = vst.msk [vmem:[#allocation3 + $0x30] sm:$0xff] %vm3238, %v3201
  %3243 = vst.msk [vmem:[#allocation3 + $0x40] sm:$0xff] %vm3238, %v3203
  %3244 = vst.msk [vmem:[#allocation3 + $0x50] sm:$0xff] %vm3238, %v3205
  %3245 = vst.msk [vmem:[#allocation3 + $0x60] sm:$0xff] %vm3238, %v3207
  %3246 = vst.msk [vmem:[#allocation3 + $0x70] sm:$0xff] %vm3238, %v3209
  %3247 = vst.msk [vmem:[#allocation3 + $0x80] sm:$0xff] %vm3238, %v3211
  %3248 = vst.msk [vmem:[#allocation3 + $0x90] sm:$0xff] %vm3238, %v3211
  %3249 = vst.msk [vmem:[#allocation3 + $0xa0] sm:$0xff] %vm3238, %v3213
  %3250 = vst.msk [vmem:[#allocation3 + $0xb0] sm:$0xff] %vm3238, %v3215
  %3251 = vst.msk [vmem:[#allocation3 + $0xc0] sm:$0xff] %vm3238, %v3217
  %3252 = vst.msk [vmem:[#allocation3 + $0xd0] sm:$0xff] %vm3238, %v3219
  %3253 = vst.msk [vmem:[#allocation3 + $0xe0] sm:$0xff] %vm3238, %v3221
  %3254 = vst.msk [vmem:[#allocation3 + $0xf0] sm:$0xff] %vm3238, %v3223
  %v3255 = vrot.slane %v2559, 4
  %v3256 = vrot.slane %v2591, 4
  %v3257 = vsel %vm668, %v3255, %v3256
  %v3258 = vrot.slane %v2567, 4
  %v3259 = vrot.slane %v2599, 4
  %v3260 = vsel %vm668, %v3258, %v3259
  %3261 = vrot.lane.b32.xlu0 %v2910, 72
  %v3262 = vpop.permute.xlu0 %3261
  %3263 = vrot.lane.b32.xlu0 %v2913, 72
  %v3264 = vpop.permute.xlu0 %3263
  %3265 = vrot.lane.b32.xlu0 %v2916, 72
  %v3266 = vpop.permute.xlu0 %3265
  %3267 = vrot.lane.b32.xlu0 %v2919, 72
  %v3268 = vpop.permute.xlu0 %3267
  %3269 = vrot.lane.b32.xlu0 %v2922, 72
  %v3270 = vpop.permute.xlu0 %3269
  %3271 = vrot.lane.b32.xlu0 %v2925, 72
  %v3272 = vpop.permute.xlu0 %3271
  %3273 = vrot.lane.b32.xlu0 %v3257, 72
  %v3274 = vpop.permute.xlu0 %3273
  %3275 = vrot.lane.b32.xlu0 %v2928, 72
  %v3276 = vpop.permute.xlu0 %3275
  %3277 = vrot.lane.b32.xlu0 %v2931, 72
  %v3278 = vpop.permute.xlu0 %3277
  %3279 = vrot.lane.b32.xlu0 %v2934, 72
  %v3280 = vpop.permute.xlu0 %3279
  %3281 = vrot.lane.b32.xlu0 %v2937, 72
  %v3282 = vpop.permute.xlu0 %3281
  %3283 = vrot.lane.b32.xlu0 %v2940, 72
  %v3284 = vpop.permute.xlu0 %3283
  %3285 = vrot.lane.b32.xlu0 %v2943, 72
  %v3286 = vpop.permute.xlu0 %3285
  %3287 = vrot.lane.b32.xlu0 %v3260, 72
  %v3288 = vpop.permute.xlu0 %3287
  %vm3303 = vcmask 654912
  %3304 = vst.msk [vmem:[#allocation3] sm:$0xff] %vm3303, %v3262
  %3305 = vst.msk [vmem:[#allocation3 + $0x10] sm:$0xff] %vm3303, %v3262
  %3306 = vst.msk [vmem:[#allocation3 + $0x20] sm:$0xff] %vm3303, %v3264
  %3307 = vst.msk [vmem:[#allocation3 + $0x30] sm:$0xff] %vm3303, %v3266
  %3308 = vst.msk [vmem:[#allocation3 + $0x40] sm:$0xff] %vm3303, %v3268
  %3309 = vst.msk [vmem:[#allocation3 + $0x50] sm:$0xff] %vm3303, %v3270
  %3310 = vst.msk [vmem:[#allocation3 + $0x60] sm:$0xff] %vm3303, %v3272
  %3311 = vst.msk [vmem:[#allocation3 + $0x70] sm:$0xff] %vm3303, %v3274
  %3312 = vst.msk [vmem:[#allocation3 + $0x80] sm:$0xff] %vm3303, %v3276
  %3313 = vst.msk [vmem:[#allocation3 + $0x90] sm:$0xff] %vm3303, %v3276
  %3314 = vst.msk [vmem:[#allocation3 + $0xa0] sm:$0xff] %vm3303, %v3278
  %3315 = vst.msk [vmem:[#allocation3 + $0xb0] sm:$0xff] %vm3303, %v3280
  %3316 = vst.msk [vmem:[#allocation3 + $0xc0] sm:$0xff] %vm3303, %v3282
  %3317 = vst.msk [vmem:[#allocation3 + $0xd0] sm:$0xff] %vm3303, %v3284
  %3318 = vst.msk [vmem:[#allocation3 + $0xe0] sm:$0xff] %vm3303, %v3286
  %3319 = vst.msk [vmem:[#allocation3 + $0xf0] sm:$0xff] %vm3303, %v3288
  %3322 = vrot.lane.b32.xlu0 %v2553, 80
  %v3323 = vpop.permute.xlu0 %3322
  %3324 = vrot.lane.b32.xlu0 %v2554, 80
  %v3325 = vpop.permute.xlu0 %3324
  %3326 = vrot.lane.b32.xlu0 %v2555, 80
  %v3327 = vpop.permute.xlu0 %3326
  %3328 = vrot.lane.b32.xlu0 %v2556, 80
  %v3329 = vpop.permute.xlu0 %3328
  %3330 = vrot.lane.b32.xlu0 %v2557, 80
  %v3331 = vpop.permute.xlu0 %3330
  %3332 = vrot.lane.b32.xlu0 %v2558, 80
  %v3333 = vpop.permute.xlu0 %3332
  %3334 = vrot.lane.b32.xlu0 %v2559, 80
  %v3335 = vpop.permute.xlu0 %3334
  %3336 = vrot.lane.b32.xlu0 %v2560, 80
  %v3337 = vpop.permute.xlu0 %3336
  %3338 = vrot.lane.b32.xlu0 %v2561, 80
  %v3339 = vpop.permute.xlu0 %3338
  %3340 = vrot.lane.b32.xlu0 %v2562, 80
  %v3341 = vpop.permute.xlu0 %3340
  %3342 = vrot.lane.b32.xlu0 %v2563, 80
  %v3343 = vpop.permute.xlu0 %3342
  %3344 = vrot.lane.b32.xlu0 %v2564, 80
  %v3345 = vpop.permute.xlu0 %3344
  %3346 = vrot.lane.b32.xlu0 %v2565, 80
  %v3347 = vpop.permute.xlu0 %3346
  %3348 = vrot.lane.b32.xlu0 %v2566, 80
  %v3349 = vpop.permute.xlu0 %3348
  %3350 = vrot.lane.b32.xlu0 %v2567, 80
  %v3351 = vpop.permute.xlu0 %3350
  %3352 = vrot.lane.b32.xlu0 %v2568, 80
  %v3353 = vpop.permute.xlu0 %3352
  %vm3370 = vcmask 720512
  %3371 = vst.msk [vmem:[#allocation3] sm:$0xff] %vm3370, %v3323
  %3372 = vst.msk [vmem:[#allocation3 + $0x10] sm:$0xff] %vm3370, %v3325
  %3373 = vst.msk [vmem:[#allocation3 + $0x20] sm:$0xff] %vm3370, %v3327
  %3374 = vst.msk [vmem:[#allocation3 + $0x30] sm:$0xff] %vm3370, %v3329
  %3375 = vst.msk [vmem:[#allocation3 + $0x40] sm:$0xff] %vm3370, %v3331
  %3376 = vst.msk [vmem:[#allocation3 + $0x50] sm:$0xff] %vm3370, %v3333
  %3377 = vst.msk [vmem:[#allocation3 + $0x60] sm:$0xff] %vm3370, %v3335
  %3378 = vst.msk [vmem:[#allocation3 + $0x70] sm:$0xff] %vm3370, %v3337
  %3379 = vst.msk [vmem:[#allocation3 + $0x80] sm:$0xff] %vm3370, %v3339
  %3380 = vst.msk [vmem:[#allocation3 + $0x90] sm:$0xff] %vm3370, %v3341
  %3381 = vst.msk [vmem:[#allocation3 + $0xa0] sm:$0xff] %vm3370, %v3343
  %3382 = vst.msk [vmem:[#allocation3 + $0xb0] sm:$0xff] %vm3370, %v3345
  %3383 = vst.msk [vmem:[#allocation3 + $0xc0] sm:$0xff] %vm3370, %v3347
  %3384 = vst.msk [vmem:[#allocation3 + $0xd0] sm:$0xff] %vm3370, %v3349
  %3385 = vst.msk [vmem:[#allocation3 + $0xe0] sm:$0xff] %vm3370, %v3351
  %3386 = vst.msk [vmem:[#allocation3 + $0xf0] sm:$0xff] %vm3370, %v3353
  %v3389 = vrot.slane %v2560, 1
  %v3390 = vrot.slane %v2592, 1
  %v3391 = vsel %vm398, %v3389, %v3390
  %v3392 = vrot.slane %v2568, 1
  %v3393 = vrot.slane %v2600, 1
  %v3394 = vsel %vm398, %v3392, %v3393
  %3395 = vrot.lane.b32.xlu0 %v2643, 88
  %v3396 = vpop.permute.xlu0 %3395
  %3397 = vrot.lane.b32.xlu0 %v2646, 88
  %v3398 = vpop.permute.xlu0 %3397
  %3399 = vrot.lane.b32.xlu0 %v2649, 88
  %v3400 = vpop.permute.xlu0 %3399
  %3401 = vrot.lane.b32.xlu0 %v2652, 88
  %v3402 = vpop.permute.xlu0 %3401
  %3403 = vrot.lane.b32.xlu0 %v2655, 88
  %v3404 = vpop.permute.xlu0 %3403
  %3405 = vrot.lane.b32.xlu0 %v2658, 88
  %v3406 = vpop.permute.xlu0 %3405
  %3407 = vrot.lane.b32.xlu0 %v3062, 88
  %v3408 = vpop.permute.xlu0 %3407
  %3409 = vrot.lane.b32.xlu0 %v3391, 88
  %v3410 = vpop.permute.xlu0 %3409
  %3411 = vrot.lane.b32.xlu0 %v2661, 88
  %v3412 = vpop.permute.xlu0 %3411
  %3413 = vrot.lane.b32.xlu0 %v2664, 88
  %v3414 = vpop.permute.xlu0 %3413
  %3415 = vrot.lane.b32.xlu0 %v2667, 88
  %v3416 = vpop.permute.xlu0 %3415
  %3417 = vrot.lane.b32.xlu0 %v2670, 88
  %v3418 = vpop.permute.xlu0 %3417
  %3419 = vrot.lane.b32.xlu0 %v2673, 88
  %v3420 = vpop.permute.xlu0 %3419
  %3421 = vrot.lane.b32.xlu0 %v2676, 88
  %v3422 = vpop.permute.xlu0 %3421
  %3423 = vrot.lane.b32.xlu0 %v3065, 88
  %v3424 = vpop.permute.xlu0 %3423
  %3425 = vrot.lane.b32.xlu0 %v3394, 88
  %v3426 = vpop.permute.xlu0 %3425
  %vm3443 = vcmask 786112
  %3444 = vst.msk [vmem:[#allocation3] sm:$0xff] %vm3443, %v3396
  %3445 = vst.msk [vmem:[#allocation3 + $0x10] sm:$0xff] %vm3443, %v3398
  %3446 = vst.msk [vmem:[#allocation3 + $0x20] sm:$0xff] %vm3443, %v3400
  %3447 = vst.msk [vmem:[#allocation3 + $0x30] sm:$0xff] %vm3443, %v3402
  %3448 = vst.msk [vmem:[#allocation3 + $0x40] sm:$0xff] %vm3443, %v3404
  %3449 = vst.msk [vmem:[#allocation3 + $0x50] sm:$0xff] %vm3443, %v3406
  %3450 = vst.msk [vmem:[#allocation3 + $0x60] sm:$0xff] %vm3443, %v3408
  %3451 = vst.msk [vmem:[#allocation3 + $0x70] sm:$0xff] %vm3443, %v3410
  %3452 = vst.msk [vmem:[#allocation3 + $0x80] sm:$0xff] %vm3443, %v3412
  %3453 = vst.msk [vmem:[#allocation3 + $0x90] sm:$0xff] %vm3443, %v3414
  %3454 = vst.msk [vmem:[#allocation3 + $0xa0] sm:$0xff] %vm3443, %v3416
  %3455 = vst.msk [vmem:[#allocation3 + $0xb0] sm:$0xff] %vm3443, %v3418
  %3456 = vst.msk [vmem:[#allocation3 + $0xc0] sm:$0xff] %vm3443, %v3420
  %3457 = vst.msk [vmem:[#allocation3 + $0xd0] sm:$0xff] %vm3443, %v3422
  %3458 = vst.msk [vmem:[#allocation3 + $0xe0] sm:$0xff] %vm3443, %v3424
  %3459 = vst.msk [vmem:[#allocation3 + $0xf0] sm:$0xff] %vm3443, %v3426
  %v3460 = vrot.slane %v2560, 2
  %v3461 = vrot.slane %v2592, 2
  %v3462 = vsel %vm488, %v3460, %v3461
  %v3463 = vrot.slane %v2568, 2
  %v3464 = vrot.slane %v2600, 2
  %v3465 = vsel %vm488, %v3463, %v3464
  %3466 = vrot.lane.b32.xlu0 %v2732, 96
  %v3467 = vpop.permute.xlu0 %3466
  %3468 = vrot.lane.b32.xlu0 %v2735, 96
  %v3469 = vpop.permute.xlu0 %3468
  %3470 = vrot.lane.b32.xlu0 %v2738, 96
  %v3471 = vpop.permute.xlu0 %3470
  %3472 = vrot.lane.b32.xlu0 %v2741, 96
  %v3473 = vpop.permute.xlu0 %3472
  %3474 = vrot.lane.b32.xlu0 %v2744, 96
  %v3475 = vpop.permute.xlu0 %3474
  %3476 = vrot.lane.b32.xlu0 %v2747, 96
  %v3477 = vpop.permute.xlu0 %3476
  %3478 = vrot.lane.b32.xlu0 %v3127, 96
  %v3479 = vpop.permute.xlu0 %3478
  %3480 = vrot.lane.b32.xlu0 %v3462, 96
  %v3481 = vpop.permute.xlu0 %3480
  %3482 = vrot.lane.b32.xlu0 %v2750, 96
  %v3483 = vpop.permute.xlu0 %3482
  %3484 = vrot.lane.b32.xlu0 %v2753, 96
  %v3485 = vpop.permute.xlu0 %3484
  %3486 = vrot.lane.b32.xlu0 %v2756, 96
  %v3487 = vpop.permute.xlu0 %3486
  %3488 = vrot.lane.b32.xlu0 %v2759, 96
  %v3489 = vpop.permute.xlu0 %3488
  %3490 = vrot.lane.b32.xlu0 %v2762, 96
  %v3491 = vpop.permute.xlu0 %3490
  %3492 = vrot.lane.b32.xlu0 %v2765, 96
  %v3493 = vpop.permute.xlu0 %3492
  %3494 = vrot.lane.b32.xlu0 %v3130, 96
  %v3495 = vpop.permute.xlu0 %3494
  %3496 = vrot.lane.b32.xlu0 %v3465, 96
  %v3497 = vpop.permute.xlu0 %3496
  %vm3514 = vcmask 851712
  %3515 = vst.msk [vmem:[#allocation3] sm:$0xff] %vm3514, %v3467
  %3516 = vst.msk [vmem:[#allocation3 + $0x10] sm:$0xff] %vm3514, %v3469
  %3517 = vst.msk [vmem:[#allocation3 + $0x20] sm:$0xff] %vm3514, %v3471
  %3518 = vst.msk [vmem:[#allocation3 + $0x30] sm:$0xff] %vm3514, %v3473
  %3519 = vst.msk [vmem:[#allocation3 + $0x40] sm:$0xff] %vm3514, %v3475
  %3520 = vst.msk [vmem:[#allocation3 + $0x50] sm:$0xff] %vm3514, %v3477
  %3521 = vst.msk [vmem:[#allocation3 + $0x60] sm:$0xff] %vm3514, %v3479
  %3522 = vst.msk [vmem:[#allocation3 + $0x70] sm:$0xff] %vm3514, %v3481
  %3523 = vst.msk [vmem:[#allocation3 + $0x80] sm:$0xff] %vm3514, %v3483
  %3524 = vst.msk [vmem:[#allocation3 + $0x90] sm:$0xff] %vm3514, %v3485
  %3525 = vst.msk [vmem:[#allocation3 + $0xa0] sm:$0xff] %vm3514, %v3487
  %3526 = vst.msk [vmem:[#allocation3 + $0xb0] sm:$0xff] %vm3514, %v3489
  %3527 = vst.msk [vmem:[#allocation3 + $0xc0] sm:$0xff] %vm3514, %v3491
  %3528 = vst.msk [vmem:[#allocation3 + $0xd0] sm:$0xff] %vm3514, %v3493
  %3529 = vst.msk [vmem:[#allocation3 + $0xe0] sm:$0xff] %vm3514, %v3495
  %3530 = vst.msk [vmem:[#allocation3 + $0xf0] sm:$0xff] %vm3514, %v3497
  %v3531 = vrot.slane %v2560, 3
  %v3532 = vrot.slane %v2592, 3
  %v3533 = vsel %vm578, %v3531, %v3532
  %v3534 = vrot.slane %v2568, 3
  %v3535 = vrot.slane %v2600, 3
  %v3536 = vsel %vm578, %v3534, %v3535
  %3537 = vrot.lane.b32.xlu0 %v2821, 104
  %v3538 = vpop.permute.xlu0 %3537
  %3539 = vrot.lane.b32.xlu0 %v2824, 104
  %v3540 = vpop.permute.xlu0 %3539
  %3541 = vrot.lane.b32.xlu0 %v2827, 104
  %v3542 = vpop.permute.xlu0 %3541
  %3543 = vrot.lane.b32.xlu0 %v2830, 104
  %v3544 = vpop.permute.xlu0 %3543
  %3545 = vrot.lane.b32.xlu0 %v2833, 104
  %v3546 = vpop.permute.xlu0 %3545
  %3547 = vrot.lane.b32.xlu0 %v2836, 104
  %v3548 = vpop.permute.xlu0 %3547
  %3549 = vrot.lane.b32.xlu0 %v3192, 104
  %v3550 = vpop.permute.xlu0 %3549
  %3551 = vrot.lane.b32.xlu0 %v3533, 104
  %v3552 = vpop.permute.xlu0 %3551
  %3553 = vrot.lane.b32.xlu0 %v2839, 104
  %v3554 = vpop.permute.xlu0 %3553
  %3555 = vrot.lane.b32.xlu0 %v2842, 104
  %v3556 = vpop.permute.xlu0 %3555
  %3557 = vrot.lane.b32.xlu0 %v2845, 104
  %v3558 = vpop.permute.xlu0 %3557
  %3559 = vrot.lane.b32.xlu0 %v2848, 104
  %v3560 = vpop.permute.xlu0 %3559
  %3561 = vrot.lane.b32.xlu0 %v2851, 104
  %v3562 = vpop.permute.xlu0 %3561
  %3563 = vrot.lane.b32.xlu0 %v2854, 104
  %v3564 = vpop.permute.xlu0 %3563
  %3565 = vrot.lane.b32.xlu0 %v3195, 104
  %v3566 = vpop.permute.xlu0 %3565
  %3567 = vrot.lane.b32.xlu0 %v3536, 104
  %v3568 = vpop.permute.xlu0 %3567
  %vm3585 = vcmask 917312
  %3586 = vst.msk [vmem:[#allocation3] sm:$0xff] %vm3585, %v3538
  %3587 = vst.msk [vmem:[#allocation3 + $0x10] sm:$0xff] %vm3585, %v3540
  %3588 = vst.msk [vmem:[#allocation3 + $0x20] sm:$0xff] %vm3585, %v3542
  %3589 = vst.msk [vmem:[#allocation3 + $0x30] sm:$0xff] %vm3585, %v3544
  %3590 = vst.msk [vmem:[#allocation3 + $0x40] sm:$0xff] %vm3585, %v3546
  %3591 = vst.msk [vmem:[#allocation3 + $0x50] sm:$0xff] %vm3585, %v3548
  %3592 = vst.msk [vmem:[#allocation3 + $0x60] sm:$0xff] %vm3585, %v3550
  %3593 = vst.msk [vmem:[#allocation3 + $0x70] sm:$0xff] %vm3585, %v3552
  %3594 = vst.msk [vmem:[#allocation3 + $0x80] sm:$0xff] %vm3585, %v3554
  %3595 = vst.msk [vmem:[#allocation3 + $0x90] sm:$0xff] %vm3585, %v3556
  %3596 = vst.msk [vmem:[#allocation3 + $0xa0] sm:$0xff] %vm3585, %v3558
  %3597 = vst.msk [vmem:[#allocation3 + $0xb0] sm:$0xff] %vm3585, %v3560
  %3598 = vst.msk [vmem:[#allocation3 + $0xc0] sm:$0xff] %vm3585, %v3562
  %3599 = vst.msk [vmem:[#allocation3 + $0xd0] sm:$0xff] %vm3585, %v3564
  %3600 = vst.msk [vmem:[#allocation3 + $0xe0] sm:$0xff] %vm3585, %v3566
  %3601 = vst.msk [vmem:[#allocation3 + $0xf0] sm:$0xff] %vm3585, %v3568
  %v3602 = vrot.slane %v2560, 4
  %v3603 = vrot.slane %v2592, 4
  %v3604 = vsel %vm668, %v3602, %v3603
  %v3605 = vrot.slane %v2568, 4
  %v3606 = vrot.slane %v2600, 4
  %v3607 = vsel %vm668, %v3605, %v3606
  %3608 = vrot.lane.b32.xlu0 %v2910, 112
  %v3609 = vpop.permute.xlu0 %3608
  %3610 = vrot.lane.b32.xlu0 %v2913, 112
  %v3611 = vpop.permute.xlu0 %3610
  %3612 = vrot.lane.b32.xlu0 %v2916, 112
  %v3613 = vpop.permute.xlu0 %3612
  %3614 = vrot.lane.b32.xlu0 %v2919, 112
  %v3615 = vpop.permute.xlu0 %3614
  %3616 = vrot.lane.b32.xlu0 %v2922, 112
  %v3617 = vpop.permute.xlu0 %3616
  %3618 = vrot.lane.b32.xlu0 %v2925, 112
  %v3619 = vpop.permute.xlu0 %3618
  %3620 = vrot.lane.b32.xlu0 %v3257, 112
  %v3621 = vpop.permute.xlu0 %3620
  %3622 = vrot.lane.b32.xlu0 %v3604, 112
  %v3623 = vpop.permute.xlu0 %3622
  %3624 = vrot.lane.b32.xlu0 %v2928, 112
  %v3625 = vpop.permute.xlu0 %3624
  %3626 = vrot.lane.b32.xlu0 %v2931, 112
  %v3627 = vpop.permute.xlu0 %3626
  %3628 = vrot.lane.b32.xlu0 %v2934, 112
  %v3629 = vpop.permute.xlu0 %3628
  %3630 = vrot.lane.b32.xlu0 %v2937, 112
  %v3631 = vpop.permute.xlu0 %3630
  %3632 = vrot.lane.b32.xlu0 %v2940, 112
  %v3633 = vpop.permute.xlu0 %3632
  %3634 = vrot.lane.b32.xlu0 %v2943, 112
  %v3635 = vpop.permute.xlu0 %3634
  %3636 = vrot.lane.b32.xlu0 %v3260, 112
  %v3637 = vpop.permute.xlu0 %3636
  %3638 = vrot.lane.b32.xlu0 %v3607, 112
  %v3639 = vpop.permute.xlu0 %3638
  %vm3656 = vcmask 982912
  %3657 = vst.msk [vmem:[#allocation3] sm:$0xff] %vm3656, %v3609
  %3658 = vst.msk [vmem:[#allocation3 + $0x10] sm:$0xff] %vm3656, %v3611
  %3659 = vst.msk [vmem:[#allocation3 + $0x20] sm:$0xff] %vm3656, %v3613
  %3660 = vst.msk [vmem:[#allocation3 + $0x30] sm:$0xff] %vm3656, %v3615
  %3661 = vst.msk [vmem:[#allocation3 + $0x40] sm:$0xff] %vm3656, %v3617
  %3662 = vst.msk [vmem:[#allocation3 + $0x50] sm:$0xff] %vm3656, %v3619
  %3663 = vst.msk [vmem:[#allocation3 + $0x60] sm:$0xff] %vm3656, %v3621
  %3664 = vst.msk [vmem:[#allocation3 + $0x70] sm:$0xff] %vm3656, %v3623
  %3665 = vst.msk [vmem:[#allocation3 + $0x80] sm:$0xff] %vm3656, %v3625
  %3666 = vst.msk [vmem:[#allocation3 + $0x90] sm:$0xff] %vm3656, %v3627
  %3667 = vst.msk [vmem:[#allocation3 + $0xa0] sm:$0xff] %vm3656, %v3629
  %3668 = vst.msk [vmem:[#allocation3 + $0xb0] sm:$0xff] %vm3656, %v3631
  %3669 = vst.msk [vmem:[#allocation3 + $0xc0] sm:$0xff] %vm3656, %v3633
  %3670 = vst.msk [vmem:[#allocation3 + $0xd0] sm:$0xff] %vm3656, %v3635
  %3671 = vst.msk [vmem:[#allocation3 + $0xe0] sm:$0xff] %vm3656, %v3637
  %3672 = vst.msk [vmem:[#allocation3 + $0xf0] sm:$0xff] %vm3656, %v3639
  %3673 = vrot.lane.b32.xlu0 %v2554, 120
  %v3674 = vpop.permute.xlu0 %3673
  %3675 = vrot.lane.b32.xlu0 %v2555, 120
  %v3676 = vpop.permute.xlu0 %3675
  %3677 = vrot.lane.b32.xlu0 %v2556, 120
  %v3678 = vpop.permute.xlu0 %3677
  %3679 = vrot.lane.b32.xlu0 %v2557, 120
  %v3680 = vpop.permute.xlu0 %3679
  %3681 = vrot.lane.b32.xlu0 %v2558, 120
  %v3682 = vpop.permute.xlu0 %3681
  %3683 = vrot.lane.b32.xlu0 %v2559, 120
  %v3684 = vpop.permute.xlu0 %3683
  %3685 = vrot.lane.b32.xlu0 %v2560, 120
  %v3686 = vpop.permute.xlu0 %3685
  %3687 = vrot.lane.b32.xlu0 %v2562, 120
  %v3688 = vpop.permute.xlu0 %3687
  %3689 = vrot.lane.b32.xlu0 %v2563, 120
  %v3690 = vpop.permute.xlu0 %3689
  %3691 = vrot.lane.b32.xlu0 %v2564, 120
  %v3692 = vpop.permute.xlu0 %3691
  %3693 = vrot.lane.b32.xlu0 %v2565, 120
  %v3694 = vpop.permute.xlu0 %3693
  %3695 = vrot.lane.b32.xlu0 %v2566, 120
  %v3696 = vpop.permute.xlu0 %3695
  %3697 = vrot.lane.b32.xlu0 %v2567, 120
  %v3698 = vpop.permute.xlu0 %3697
  %3699 = vrot.lane.b32.xlu0 %v2568, 120
  %v3700 = vpop.permute.xlu0 %3699
  %vm3715 = vcmask 1048512
  %3716 = vst.msk [vmem:[#allocation3] sm:$0xff] %vm3715, %v3674
  %3717 = vst.msk [vmem:[#allocation3 + $0x10] sm:$0xff] %vm3715, %v3676
  %3718 = vst.msk [vmem:[#allocation3 + $0x20] sm:$0xff] %vm3715, %v3678
  %3719 = vst.msk [vmem:[#allocation3 + $0x30] sm:$0xff] %vm3715, %v3680
  %3720 = vst.msk [vmem:[#allocation3 + $0x40] sm:$0xff] %vm3715, %v3682
  %3721 = vst.msk [vmem:[#allocation3 + $0x50] sm:$0xff] %vm3715, %v3684
  %3722 = vst.msk [vmem:[#allocation3 + $0x60] sm:$0xff] %vm3715, %v3686
  %3723 = vst.msk [vmem:[#allocation3 + $0x70] sm:$0xff] %vm3715, %v3686
  %3724 = vst.msk [vmem:[#allocation3 + $0x80] sm:$0xff] %vm3715, %v3688
  %3725 = vst.msk [vmem:[#allocation3 + $0x90] sm:$0xff] %vm3715, %v3690
  %3726 = vst.msk [vmem:[#allocation3 + $0xa0] sm:$0xff] %vm3715, %v3692
  %3727 = vst.msk [vmem:[#allocation3 + $0xb0] sm:$0xff] %vm3715, %v3694
  %3728 = vst.msk [vmem:[#allocation3 + $0xc0] sm:$0xff] %vm3715, %v3696
  %3729 = vst.msk [vmem:[#allocation3 + $0xd0] sm:$0xff] %vm3715, %v3698
  %3730 = vst.msk [vmem:[#allocation3 + $0xe0] sm:$0xff] %vm3715, %v3700
  %3731 = vst.msk [vmem:[#allocation3 + $0xf0] sm:$0xff] %vm3715, %v3700
  %3746 = vst.msk [vmem:[#allocation3 + $0x8] sm:$0xff] %vm2217, %v2646
  %3747 = vst.msk [vmem:[#allocation3 + $0x18] sm:$0xff] %vm2217, %v2649
  %3748 = vst.msk [vmem:[#allocation3 + $0x28] sm:$0xff] %vm2217, %v2652
  %3749 = vst.msk [vmem:[#allocation3 + $0x38] sm:$0xff] %vm2217, %v2655
  %3750 = vst.msk [vmem:[#allocation3 + $0x48] sm:$0xff] %vm2217, %v2658
  %3751 = vst.msk [vmem:[#allocation3 + $0x58] sm:$0xff] %vm2217, %v3062
  %3752 = vst.msk [vmem:[#allocation3 + $0x68] sm:$0xff] %vm2217, %v3391
  %3753 = vst.msk [vmem:[#allocation3 + $0x78] sm:$0xff] %vm2217, %v3391
  %3754 = vst.msk [vmem:[#allocation3 + $0x88] sm:$0xff] %vm2217, %v2664
  %3755 = vst.msk [vmem:[#allocation3 + $0x98] sm:$0xff] %vm2217, %v2667
  %3756 = vst.msk [vmem:[#allocation3 + $0xa8] sm:$0xff] %vm2217, %v2670
  %3757 = vst.msk [vmem:[#allocation3 + $0xb8] sm:$0xff] %vm2217, %v2673
  %3758 = vst.msk [vmem:[#allocation3 + $0xc8] sm:$0xff] %vm2217, %v2676
  %3759 = vst.msk [vmem:[#allocation3 + $0xd8] sm:$0xff] %vm2217, %v3065
  %3760 = vst.msk [vmem:[#allocation3 + $0xe8] sm:$0xff] %vm2217, %v3394
  %3761 = vst.msk [vmem:[#allocation3 + $0xf8] sm:$0xff] %vm2217, %v3394
  %3762 = vrot.lane.b32.xlu0 %v2735, 8
  %v3763 = vpop.permute.xlu0 %3762
  %3764 = vrot.lane.b32.xlu0 %v2738, 8
  %v3765 = vpop.permute.xlu0 %3764
  %3766 = vrot.lane.b32.xlu0 %v2741, 8
  %v3767 = vpop.permute.xlu0 %3766
  %3768 = vrot.lane.b32.xlu0 %v2744, 8
  %v3769 = vpop.permute.xlu0 %3768
  %3770 = vrot.lane.b32.xlu0 %v2747, 8
  %v3771 = vpop.permute.xlu0 %3770
  %3772 = vrot.lane.b32.xlu0 %v3127, 8
  %v3773 = vpop.permute.xlu0 %3772
  %3774 = vrot.lane.b32.xlu0 %v3462, 8
  %v3775 = vpop.permute.xlu0 %3774
  %3776 = vrot.lane.b32.xlu0 %v2753, 8
  %v3777 = vpop.permute.xlu0 %3776
  %3778 = vrot.lane.b32.xlu0 %v2756, 8
  %v3779 = vpop.permute.xlu0 %3778
  %3780 = vrot.lane.b32.xlu0 %v2759, 8
  %v3781 = vpop.permute.xlu0 %3780
  %3782 = vrot.lane.b32.xlu0 %v2762, 8
  %v3783 = vpop.permute.xlu0 %3782
  %3784 = vrot.lane.b32.xlu0 %v2765, 8
  %v3785 = vpop.permute.xlu0 %3784
  %3786 = vrot.lane.b32.xlu0 %v3130, 8
  %v3787 = vpop.permute.xlu0 %3786
  %3788 = vrot.lane.b32.xlu0 %v3465, 8
  %v3789 = vpop.permute.xlu0 %3788
  %3804 = vst.msk [vmem:[#allocation3 + $0x8] sm:$0xff] %vm2713, %v3763
  %3805 = vst.msk [vmem:[#allocation3 + $0x18] sm:$0xff] %vm2713, %v3765
  %3806 = vst.msk [vmem:[#allocation3 + $0x28] sm:$0xff] %vm2713, %v3767
  %3807 = vst.msk [vmem:[#allocation3 + $0x38] sm:$0xff] %vm2713, %v3769
  %3808 = vst.msk [vmem:[#allocation3 + $0x48] sm:$0xff] %vm2713, %v3771
  %3809 = vst.msk [vmem:[#allocation3 + $0x58] sm:$0xff] %vm2713, %v3773
  %3810 = vst.msk [vmem:[#allocation3 + $0x68] sm:$0xff] %vm2713, %v3775
  %3811 = vst.msk [vmem:[#allocation3 + $0x78] sm:$0xff] %vm2713, %v3775
  %3812 = vst.msk [vmem:[#allocation3 + $0x88] sm:$0xff] %vm2713, %v3777
  %3813 = vst.msk [vmem:[#allocation3 + $0x98] sm:$0xff] %vm2713, %v3779
  %3814 = vst.msk [vmem:[#allocation3 + $0xa8] sm:$0xff] %vm2713, %v3781
  %3815 = vst.msk [vmem:[#allocation3 + $0xb8] sm:$0xff] %vm2713, %v3783
  %3816 = vst.msk [vmem:[#allocation3 + $0xc8] sm:$0xff] %vm2713, %v3785
  %3817 = vst.msk [vmem:[#allocation3 + $0xd8] sm:$0xff] %vm2713, %v3787
  %3818 = vst.msk [vmem:[#allocation3 + $0xe8] sm:$0xff] %vm2713, %v3789
  %3819 = vst.msk [vmem:[#allocation3 + $0xf8] sm:$0xff] %vm2713, %v3789
  %3820 = vrot.lane.b32.xlu0 %v2824, 16
  %v3821 = vpop.permute.xlu0 %3820
  %3822 = vrot.lane.b32.xlu0 %v2827, 16
  %v3823 = vpop.permute.xlu0 %3822
  %3824 = vrot.lane.b32.xlu0 %v2830, 16
  %v3825 = vpop.permute.xlu0 %3824
  %3826 = vrot.lane.b32.xlu0 %v2833, 16
  %v3827 = vpop.permute.xlu0 %3826
  %3828 = vrot.lane.b32.xlu0 %v2836, 16
  %v3829 = vpop.permute.xlu0 %3828
  %3830 = vrot.lane.b32.xlu0 %v3192, 16
  %v3831 = vpop.permute.xlu0 %3830
  %3832 = vrot.lane.b32.xlu0 %v3533, 16
  %v3833 = vpop.permute.xlu0 %3832
  %3834 = vrot.lane.b32.xlu0 %v2842, 16
  %v3835 = vpop.permute.xlu0 %3834
  %3836 = vrot.lane.b32.xlu0 %v2845, 16
  %v3837 = vpop.permute.xlu0 %3836
  %3838 = vrot.lane.b32.xlu0 %v2848, 16
  %v3839 = vpop.permute.xlu0 %3838
  %3840 = vrot.lane.b32.xlu0 %v2851, 16
  %v3841 = vpop.permute.xlu0 %3840
  %3842 = vrot.lane.b32.xlu0 %v2854, 16
  %v3843 = vpop.permute.xlu0 %3842
  %3844 = vrot.lane.b32.xlu0 %v3195, 16
  %v3845 = vpop.permute.xlu0 %3844
  %3846 = vrot.lane.b32.xlu0 %v3536, 16
  %v3847 = vpop.permute.xlu0 %3846
  %3862 = vst.msk [vmem:[#allocation3 + $0x8] sm:$0xff] %vm2802, %v3821
  %3863 = vst.msk [vmem:[#allocation3 + $0x18] sm:$0xff] %vm2802, %v3823
  %3864 = vst.msk [vmem:[#allocation3 + $0x28] sm:$0xff] %vm2802, %v3825
  %3865 = vst.msk [vmem:[#allocation3 + $0x38] sm:$0xff] %vm2802, %v3827
  %3866 = vst.msk [vmem:[#allocation3 + $0x48] sm:$0xff] %vm2802, %v3829
  %3867 = vst.msk [vmem:[#allocation3 + $0x58] sm:$0xff] %vm2802, %v3831
  %3868 = vst.msk [vmem:[#allocation3 + $0x68] sm:$0xff] %vm2802, %v3833
  %3869 = vst.msk [vmem:[#allocation3 + $0x78] sm:$0xff] %vm2802, %v3833
  %3870 = vst.msk [vmem:[#allocation3 + $0x88] sm:$0xff] %vm2802, %v3835
  %3871 = vst.msk [vmem:[#allocation3 + $0x98] sm:$0xff] %vm2802, %v3837
  %3872 = vst.msk [vmem:[#allocation3 + $0xa8] sm:$0xff] %vm2802, %v3839
  %3873 = vst.msk [vmem:[#allocation3 + $0xb8] sm:$0xff] %vm2802, %v3841
  %3874 = vst.msk [vmem:[#allocation3 + $0xc8] sm:$0xff] %vm2802, %v3843
  %3875 = vst.msk [vmem:[#allocation3 + $0xd8] sm:$0xff] %vm2802, %v3845
  %3876 = vst.msk [vmem:[#allocation3 + $0xe8] sm:$0xff] %vm2802, %v3847
  %3877 = vst.msk [vmem:[#allocation3 + $0xf8] sm:$0xff] %vm2802, %v3847
  %3878 = vrot.lane.b32.xlu0 %v2913, 24
  %v3879 = vpop.permute.xlu0 %3878
  %3880 = vrot.lane.b32.xlu0 %v2916, 24
  %v3881 = vpop.permute.xlu0 %3880
  %3882 = vrot.lane.b32.xlu0 %v2919, 24
  %v3883 = vpop.permute.xlu0 %3882
  %3884 = vrot.lane.b32.xlu0 %v2922, 24
  %v3885 = vpop.permute.xlu0 %3884
  %3886 = vrot.lane.b32.xlu0 %v2925, 24
  %v3887 = vpop.permute.xlu0 %3886
  %3888 = vrot.lane.b32.xlu0 %v3257, 24
  %v3889 = vpop.permute.xlu0 %3888
  %3890 = vrot.lane.b32.xlu0 %v3604, 24
  %v3891 = vpop.permute.xlu0 %3890
  %3892 = vrot.lane.b32.xlu0 %v2931, 24
  %v3893 = vpop.permute.xlu0 %3892
  %3894 = vrot.lane.b32.xlu0 %v2934, 24
  %v3895 = vpop.permute.xlu0 %3894
  %3896 = vrot.lane.b32.xlu0 %v2937, 24
  %v3897 = vpop.permute.xlu0 %3896
  %3898 = vrot.lane.b32.xlu0 %v2940, 24
  %v3899 = vpop.permute.xlu0 %3898
  %3900 = vrot.lane.b32.xlu0 %v2943, 24
  %v3901 = vpop.permute.xlu0 %3900
  %3902 = vrot.lane.b32.xlu0 %v3260, 24
  %v3903 = vpop.permute.xlu0 %3902
  %3904 = vrot.lane.b32.xlu0 %v3607, 24
  %v3905 = vpop.permute.xlu0 %3904
  %3920 = vst.msk [vmem:[#allocation3 + $0x8] sm:$0xff] %vm2891, %v3879
  %3921 = vst.msk [vmem:[#allocation3 + $0x18] sm:$0xff] %vm2891, %v3881
  %3922 = vst.msk [vmem:[#allocation3 + $0x28] sm:$0xff] %vm2891, %v3883
  %3923 = vst.msk [vmem:[#allocation3 + $0x38] sm:$0xff] %vm2891, %v3885
  %3924 = vst.msk [vmem:[#allocation3 + $0x48] sm:$0xff] %vm2891, %v3887
  %3925 = vst.msk [vmem:[#allocation3 + $0x58] sm:$0xff] %vm2891, %v3889
  %3926 = vst.msk [vmem:[#allocation3 + $0x68] sm:$0xff] %vm2891, %v3891
  %3927 = vst.msk [vmem:[#allocation3 + $0x78] sm:$0xff] %vm2891, %v3891
  %3928 = vst.msk [vmem:[#allocation3 + $0x88] sm:$0xff] %vm2891, %v3893
  %3929 = vst.msk [vmem:[#allocation3 + $0x98] sm:$0xff] %vm2891, %v3895
  %3930 = vst.msk [vmem:[#allocation3 + $0xa8] sm:$0xff] %vm2891, %v3897
  %3931 = vst.msk [vmem:[#allocation3 + $0xb8] sm:$0xff] %vm2891, %v3899
  %3932 = vst.msk [vmem:[#allocation3 + $0xc8] sm:$0xff] %vm2891, %v3901
  %3933 = vst.msk [vmem:[#allocation3 + $0xd8] sm:$0xff] %vm2891, %v3903
  %3934 = vst.msk [vmem:[#allocation3 + $0xe8] sm:$0xff] %vm2891, %v3905
  %3935 = vst.msk [vmem:[#allocation3 + $0xf8] sm:$0xff] %vm2891, %v3905
  %3936 = vrot.lane.b32.xlu0 %v2555, 32
  %v3937 = vpop.permute.xlu0 %3936
  %3938 = vrot.lane.b32.xlu0 %v2556, 32
  %v3939 = vpop.permute.xlu0 %3938
  %3940 = vrot.lane.b32.xlu0 %v2557, 32
  %v3941 = vpop.permute.xlu0 %3940
  %3942 = vrot.lane.b32.xlu0 %v2558, 32
  %v3943 = vpop.permute.xlu0 %3942
  %3944 = vrot.lane.b32.xlu0 %v2559, 32
  %v3945 = vpop.permute.xlu0 %3944
  %3946 = vrot.lane.b32.xlu0 %v2560, 32
  %v3947 = vpop.permute.xlu0 %3946
  %3948 = vrot.lane.b32.xlu0 %v2563, 32
  %v3949 = vpop.permute.xlu0 %3948
  %3950 = vrot.lane.b32.xlu0 %v2564, 32
  %v3951 = vpop.permute.xlu0 %3950
  %3952 = vrot.lane.b32.xlu0 %v2565, 32
  %v3953 = vpop.permute.xlu0 %3952
  %3954 = vrot.lane.b32.xlu0 %v2566, 32
  %v3955 = vpop.permute.xlu0 %3954
  %3956 = vrot.lane.b32.xlu0 %v2567, 32
  %v3957 = vpop.permute.xlu0 %3956
  %3958 = vrot.lane.b32.xlu0 %v2568, 32
  %v3959 = vpop.permute.xlu0 %3958
  %3972 = vst.msk [vmem:[#allocation3 + $0x8] sm:$0xff] %vm2980, %v3937
  %3973 = vst.msk [vmem:[#allocation3 + $0x18] sm:$0xff] %vm2980, %v3939
  %3974 = vst.msk [vmem:[#allocation3 + $0x28] sm:$0xff] %vm2980, %v3941
  %3975 = vst.msk [vmem:[#allocation3 + $0x38] sm:$0xff] %vm2980, %v3943
  %3976 = vst.msk [vmem:[#allocation3 + $0x48] sm:$0xff] %vm2980, %v3945
  %3977 = vst.msk [vmem:[#allocation3 + $0x58] sm:$0xff] %vm2980, %v3947
  %3978 = vst.msk [vmem:[#allocation3 + $0x68] sm:$0xff] %vm2980, %v3947
  %3979 = vst.msk [vmem:[#allocation3 + $0x78] sm:$0xff] %vm2980, %v3947
  %3980 = vst.msk [vmem:[#allocation3 + $0x88] sm:$0xff] %vm2980, %v3949
  %3981 = vst.msk [vmem:[#allocation3 + $0x98] sm:$0xff] %vm2980, %v3951
  %3982 = vst.msk [vmem:[#allocation3 + $0xa8] sm:$0xff] %vm2980, %v3953
  %3983 = vst.msk [vmem:[#allocation3 + $0xb8] sm:$0xff] %vm2980, %v3955
  %3984 = vst.msk [vmem:[#allocation3 + $0xc8] sm:$0xff] %vm2980, %v3957
  %3985 = vst.msk [vmem:[#allocation3 + $0xd8] sm:$0xff] %vm2980, %v3959
  %3986 = vst.msk [vmem:[#allocation3 + $0xe8] sm:$0xff] %vm2980, %v3959
  %3987 = vst.msk [vmem:[#allocation3 + $0xf8] sm:$0xff] %vm2980, %v3959
  %3988 = vrot.lane.b32.xlu0 %v2649, 40
  %v3989 = vpop.permute.xlu0 %3988
  %3990 = vrot.lane.b32.xlu0 %v2652, 40
  %v3991 = vpop.permute.xlu0 %3990
  %3992 = vrot.lane.b32.xlu0 %v2655, 40
  %v3993 = vpop.permute.xlu0 %3992
  %3994 = vrot.lane.b32.xlu0 %v2658, 40
  %v3995 = vpop.permute.xlu0 %3994
  %3996 = vrot.lane.b32.xlu0 %v3062, 40
  %v3997 = vpop.permute.xlu0 %3996
  %3998 = vrot.lane.b32.xlu0 %v3391, 40
  %v3999 = vpop.permute.xlu0 %3998
  %4000 = vrot.lane.b32.xlu0 %v2667, 40
  %v4001 = vpop.permute.xlu0 %4000
  %4002 = vrot.lane.b32.xlu0 %v2670, 40
  %v4003 = vpop.permute.xlu0 %4002
  %4004 = vrot.lane.b32.xlu0 %v2673, 40
  %v4005 = vpop.permute.xlu0 %4004
  %4006 = vrot.lane.b32.xlu0 %v2676, 40
  %v4007 = vpop.permute.xlu0 %4006
  %4008 = vrot.lane.b32.xlu0 %v3065, 40
  %v4009 = vpop.permute.xlu0 %4008
  %4010 = vrot.lane.b32.xlu0 %v3394, 40
  %v4011 = vpop.permute.xlu0 %4010
  %4024 = vst.msk [vmem:[#allocation3 + $0x8] sm:$0xff] %vm3041, %v3989
  %4025 = vst.msk [vmem:[#allocation3 + $0x18] sm:$0xff] %vm3041, %v3991
  %4026 = vst.msk [vmem:[#allocation3 + $0x28] sm:$0xff] %vm3041, %v3993
  %4027 = vst.msk [vmem:[#allocation3 + $0x38] sm:$0xff] %vm3041, %v3995
  %4028 = vst.msk [vmem:[#allocation3 + $0x48] sm:$0xff] %vm3041, %v3997
  %4029 = vst.msk [vmem:[#allocation3 + $0x58] sm:$0xff] %vm3041, %v3999
  %4030 = vst.msk [vmem:[#allocation3 + $0x68] sm:$0xff] %vm3041, %v3999
  %4031 = vst.msk [vmem:[#allocation3 + $0x78] sm:$0xff] %vm3041, %v3999
  %4032 = vst.msk [vmem:[#allocation3 + $0x88] sm:$0xff] %vm3041, %v4001
  %4033 = vst.msk [vmem:[#allocation3 + $0x98] sm:$0xff] %vm3041, %v4003
  %4034 = vst.msk [vmem:[#allocation3 + $0xa8] sm:$0xff] %vm3041, %v4005
  %4035 = vst.msk [vmem:[#allocation3 + $0xb8] sm:$0xff] %vm3041, %v4007
  %4036 = vst.msk [vmem:[#allocation3 + $0xc8] sm:$0xff] %vm3041, %v4009
  %4037 = vst.msk [vmem:[#allocation3 + $0xd8] sm:$0xff] %vm3041, %v4011
  %4038 = vst.msk [vmem:[#allocation3 + $0xe8] sm:$0xff] %vm3041, %v4011
  %4039 = vst.msk [vmem:[#allocation3 + $0xf8] sm:$0xff] %vm3041, %v4011
  %4040 = vrot.lane.b32.xlu0 %v2738, 48
  %v4041 = vpop.permute.xlu0 %4040
  %4042 = vrot.lane.b32.xlu0 %v2741, 48
  %v4043 = vpop.permute.xlu0 %4042
  %4044 = vrot.lane.b32.xlu0 %v2744, 48
  %v4045 = vpop.permute.xlu0 %4044
  %4046 = vrot.lane.b32.xlu0 %v2747, 48
  %v4047 = vpop.permute.xlu0 %4046
  %4048 = vrot.lane.b32.xlu0 %v3127, 48
  %v4049 = vpop.permute.xlu0 %4048
  %4050 = vrot.lane.b32.xlu0 %v3462, 48
  %v4051 = vpop.permute.xlu0 %4050
  %4052 = vrot.lane.b32.xlu0 %v2756, 48
  %v4053 = vpop.permute.xlu0 %4052
  %4054 = vrot.lane.b32.xlu0 %v2759, 48
  %v4055 = vpop.permute.xlu0 %4054
  %4056 = vrot.lane.b32.xlu0 %v2762, 48
  %v4057 = vpop.permute.xlu0 %4056
  %4058 = vrot.lane.b32.xlu0 %v2765, 48
  %v4059 = vpop.permute.xlu0 %4058
  %4060 = vrot.lane.b32.xlu0 %v3130, 48
  %v4061 = vpop.permute.xlu0 %4060
  %4062 = vrot.lane.b32.xlu0 %v3465, 48
  %v4063 = vpop.permute.xlu0 %4062
  %4076 = vst.msk [vmem:[#allocation3 + $0x8] sm:$0xff] %vm3108, %v4041
  %4077 = vst.msk [vmem:[#allocation3 + $0x18] sm:$0xff] %vm3108, %v4043
  %4078 = vst.msk [vmem:[#allocation3 + $0x28] sm:$0xff] %vm3108, %v4045
  %4079 = vst.msk [vmem:[#allocation3 + $0x38] sm:$0xff] %vm3108, %v4047
  %4080 = vst.msk [vmem:[#allocation3 + $0x48] sm:$0xff] %vm3108, %v4049
  %4081 = vst.msk [vmem:[#allocation3 + $0x58] sm:$0xff] %vm3108, %v4051
  %4082 = vst.msk [vmem:[#allocation3 + $0x68] sm:$0xff] %vm3108, %v4051
  %4083 = vst.msk [vmem:[#allocation3 + $0x78] sm:$0xff] %vm3108, %v4051
  %4084 = vst.msk [vmem:[#allocation3 + $0x88] sm:$0xff] %vm3108, %v4053
  %4085 = vst.msk [vmem:[#allocation3 + $0x98] sm:$0xff] %vm3108, %v4055
  %4086 = vst.msk [vmem:[#allocation3 + $0xa8] sm:$0xff] %vm3108, %v4057
  %4087 = vst.msk [vmem:[#allocation3 + $0xb8] sm:$0xff] %vm3108, %v4059
  %4088 = vst.msk [vmem:[#allocation3 + $0xc8] sm:$0xff] %vm3108, %v4061
  %4089 = vst.msk [vmem:[#allocation3 + $0xd8] sm:$0xff] %vm3108, %v4063
  %4090 = vst.msk [vmem:[#allocation3 + $0xe8] sm:$0xff] %vm3108, %v4063
  %4091 = vst.msk [vmem:[#allocation3 + $0xf8] sm:$0xff] %vm3108, %v4063
  %4092 = vrot.lane.b32.xlu0 %v2827, 56
  %v4093 = vpop.permute.xlu0 %4092
  %4094 = vrot.lane.b32.xlu0 %v2830, 56
  %v4095 = vpop.permute.xlu0 %4094
  %4096 = vrot.lane.b32.xlu0 %v2833, 56
  %v4097 = vpop.permute.xlu0 %4096
  %4098 = vrot.lane.b32.xlu0 %v2836, 56
  %v4099 = vpop.permute.xlu0 %4098
  %4100 = vrot.lane.b32.xlu0 %v3192, 56
  %v4101 = vpop.permute.xlu0 %4100
  %4102 = vrot.lane.b32.xlu0 %v3533, 56
  %v4103 = vpop.permute.xlu0 %4102
  %4104 = vrot.lane.b32.xlu0 %v2845, 56
  %v4105 = vpop.permute.xlu0 %4104
  %4106 = vrot.lane.b32.xlu0 %v2848, 56
  %v4107 = vpop.permute.xlu0 %4106
  %4108 = vrot.lane.b32.xlu0 %v2851, 56
  %v4109 = vpop.permute.xlu0 %4108
  %4110 = vrot.lane.b32.xlu0 %v2854, 56
  %v4111 = vpop.permute.xlu0 %4110
  %4112 = vrot.lane.b32.xlu0 %v3195, 56
  %v4113 = vpop.permute.xlu0 %4112
  %4114 = vrot.lane.b32.xlu0 %v3536, 56
  %v4115 = vpop.permute.xlu0 %4114
  %4128 = vst.msk [vmem:[#allocation3 + $0x8] sm:$0xff] %vm3173, %v4093
  %4129 = vst.msk [vmem:[#allocation3 + $0x18] sm:$0xff] %vm3173, %v4095
  %4130 = vst.msk [vmem:[#allocation3 + $0x28] sm:$0xff] %vm3173, %v4097
  %4131 = vst.msk [vmem:[#allocation3 + $0x38] sm:$0xff] %vm3173, %v4099
  %4132 = vst.msk [vmem:[#allocation3 + $0x48] sm:$0xff] %vm3173, %v4101
  %4133 = vst.msk [vmem:[#allocation3 + $0x58] sm:$0xff] %vm3173, %v4103
  %4134 = vst.msk [vmem:[#allocation3 + $0x68] sm:$0xff] %vm3173, %v4103
  %4135 = vst.msk [vmem:[#allocation3 + $0x78] sm:$0xff] %vm3173, %v4103
  %4136 = vst.msk [vmem:[#allocation3 + $0x88] sm:$0xff] %vm3173, %v4105
  %4137 = vst.msk [vmem:[#allocation3 + $0x98] sm:$0xff] %vm3173, %v4107
  %4138 = vst.msk [vmem:[#allocation3 + $0xa8] sm:$0xff] %vm3173, %v4109
  %4139 = vst.msk [vmem:[#allocation3 + $0xb8] sm:$0xff] %vm3173, %v4111
  %4140 = vst.msk [vmem:[#allocation3 + $0xc8] sm:$0xff] %vm3173, %v4113
  %4141 = vst.msk [vmem:[#allocation3 + $0xd8] sm:$0xff] %vm3173, %v4115
  %4142 = vst.msk [vmem:[#allocation3 + $0xe8] sm:$0xff] %vm3173, %v4115
  %4143 = vst.msk [vmem:[#allocation3 + $0xf8] sm:$0xff] %vm3173, %v4115
  %4144 = vrot.lane.b32.xlu0 %v2916, 64
  %v4145 = vpop.permute.xlu0 %4144
  %4146 = vrot.lane.b32.xlu0 %v2919, 64
  %v4147 = vpop.permute.xlu0 %4146
  %4148 = vrot.lane.b32.xlu0 %v2922, 64
  %v4149 = vpop.permute.xlu0 %4148
  %4150 = vrot.lane.b32.xlu0 %v2925, 64
  %v4151 = vpop.permute.xlu0 %4150
  %4152 = vrot.lane.b32.xlu0 %v3257, 64
  %v4153 = vpop.permute.xlu0 %4152
  %4154 = vrot.lane.b32.xlu0 %v3604, 64
  %v4155 = vpop.permute.xlu0 %4154
  %4156 = vrot.lane.b32.xlu0 %v2934, 64
  %v4157 = vpop.permute.xlu0 %4156
  %4158 = vrot.lane.b32.xlu0 %v2937, 64
  %v4159 = vpop.permute.xlu0 %4158
  %4160 = vrot.lane.b32.xlu0 %v2940, 64
  %v4161 = vpop.permute.xlu0 %4160
  %4162 = vrot.lane.b32.xlu0 %v2943, 64
  %v4163 = vpop.permute.xlu0 %4162
  %4164 = vrot.lane.b32.xlu0 %v3260, 64
  %v4165 = vpop.permute.xlu0 %4164
  %4166 = vrot.lane.b32.xlu0 %v3607, 64
  %v4167 = vpop.permute.xlu0 %4166
  %4180 = vst.msk [vmem:[#allocation3 + $0x8] sm:$0xff] %vm3238, %v4145
  %4181 = vst.msk [vmem:[#allocation3 + $0x18] sm:$0xff] %vm3238, %v4147
  %4182 = vst.msk [vmem:[#allocation3 + $0x28] sm:$0xff] %vm3238, %v4149
  %4183 = vst.msk [vmem:[#allocation3 + $0x38] sm:$0xff] %vm3238, %v4151
  %4184 = vst.msk [vmem:[#allocation3 + $0x48] sm:$0xff] %vm3238, %v4153
  %4185 = vst.msk [vmem:[#allocation3 + $0x58] sm:$0xff] %vm3238, %v4155
  %4186 = vst.msk [vmem:[#allocation3 + $0x68] sm:$0xff] %vm3238, %v4155
  %4187 = vst.msk [vmem:[#allocation3 + $0x78] sm:$0xff] %vm3238, %v4155
  %4188 = vst.msk [vmem:[#allocation3 + $0x88] sm:$0xff] %vm3238, %v4157
  %4189 = vst.msk [vmem:[#allocation3 + $0x98] sm:$0xff] %vm3238, %v4159
  %4190 = vst.msk [vmem:[#allocation3 + $0xa8] sm:$0xff] %vm3238, %v4161
  %4191 = vst.msk [vmem:[#allocation3 + $0xb8] sm:$0xff] %vm3238, %v4163
  %4192 = vst.msk [vmem:[#allocation3 + $0xc8] sm:$0xff] %vm3238, %v4165
  %4193 = vst.msk [vmem:[#allocation3 + $0xd8] sm:$0xff] %vm3238, %v4167
  %4194 = vst.msk [vmem:[#allocation3 + $0xe8] sm:$0xff] %vm3238, %v4167
  %4195 = vst.msk [vmem:[#allocation3 + $0xf8] sm:$0xff] %vm3238, %v4167
  %v4196 = vld [vmem:[#allocation3] sm:$0xff]
  %v4197 = vld [vmem:[#allocation3 + $0x8] sm:$0xff]
  %v4198 = vld [vmem:[#allocation3 + $0x10] sm:$0xff]
  %v4199 = vld [vmem:[#allocation3 + $0x18] sm:$0xff]
  %v4200 = vld [vmem:[#allocation3 + $0x20] sm:$0xff]
  %v4201 = vld [vmem:[#allocation3 + $0x28] sm:$0xff]
  %v4202 = vld [vmem:[#allocation3 + $0x30] sm:$0xff]
  %v4203 = vld [vmem:[#allocation3 + $0x38] sm:$0xff]
  %v4204 = vld [vmem:[#allocation3 + $0x40] sm:$0xff]
  %v4205 = vld [vmem:[#allocation3 + $0x48] sm:$0xff]
  %v4206 = vld [vmem:[#allocation3 + $0x50] sm:$0xff]
  %v4207 = vld [vmem:[#allocation3 + $0x58] sm:$0xff]
  %v4208 = vld [vmem:[#allocation3 + $0x60] sm:$0xff]
  %v4209 = vld [vmem:[#allocation3 + $0x68] sm:$0xff]
  %v4210 = vld [vmem:[#allocation3 + $0x70] sm:$0xff]
  %v4211 = vld [vmem:[#allocation3 + $0x78] sm:$0xff]
  %v4212 = vld [vmem:[#allocation3 + $0x80] sm:$0xff]
  %v4213 = vld [vmem:[#allocation3 + $0x88] sm:$0xff]
  %v4214 = vld [vmem:[#allocation3 + $0x90] sm:$0xff]
  %v4215 = vld [vmem:[#allocation3 + $0x98] sm:$0xff]
  %v4216 = vld [vmem:[#allocation3 + $0xa0] sm:$0xff]
  %v4217 = vld [vmem:[#allocation3 + $0xa8] sm:$0xff]
  %v4218 = vld [vmem:[#allocation3 + $0xb0] sm:$0xff]
  %v4219 = vld [vmem:[#allocation3 + $0xb8] sm:$0xff]
  %v4220 = vld [vmem:[#allocation3 + $0xc0] sm:$0xff]
  %v4221 = vld [vmem:[#allocation3 + $0xc8] sm:$0xff]
  %v4222 = vld [vmem:[#allocation3 + $0xd0] sm:$0xff]
  %v4223 = vld [vmem:[#allocation3 + $0xd8] sm:$0xff]
  %v4224 = vld [vmem:[#allocation3 + $0xe0] sm:$0xff]
  %v4225 = vld [vmem:[#allocation3 + $0xe8] sm:$0xff]
  %v4226 = vld [vmem:[#allocation3 + $0xf0] sm:$0xff]
  %v4227 = vld [vmem:[#allocation3 + $0xf8] sm:$0xff]
  %v4228 = vld [vmem:[%s2] sm:$0xff]
  %v4229 = vld [vmem:[%s2 + $0x8] sm:$0xff]
  %v4230 = vld [vmem:[%s2 + $0x10] sm:$0xff]
  %v4231 = vld [vmem:[%s2 + $0x18] sm:$0xff]
  %v4232 = vld [vmem:[%s2 + $0x20] sm:$0xff]
  %v4233 = vld [vmem:[%s2 + $0x28] sm:$0xff]
  %v4234 = vld [vmem:[%s2 + $0x30] sm:$0xff]
  %v4235 = vld [vmem:[%s2 + $0x38] sm:$0xff]
  %v4236 = vld [vmem:[%s2 + $0x40] sm:$0xff]
  %v4237 = vld [vmem:[%s2 + $0x48] sm:$0xff]
  %v4238 = vld [vmem:[%s2 + $0x50] sm:$0xff]
  %v4239 = vld [vmem:[%s2 + $0x58] sm:$0xff]
  %v4240 = vld [vmem:[%s2 + $0x60] sm:$0xff]
  %v4241 = vld [vmem:[%s2 + $0x68] sm:$0xff]
  %v4242 = vld [vmem:[%s2 + $0x70] sm:$0xff]
  %v4243 = vld [vmem:[%s2 + $0x78] sm:$0xff]
  %v4244 = vld [vmem:[%s2 + $0x80] sm:$0xff]
  %v4245 = vld [vmem:[%s2 + $0x88] sm:$0xff]
  %v4246 = vld [vmem:[%s2 + $0x90] sm:$0xff]
  %v4247 = vld [vmem:[%s2 + $0x98] sm:$0xff]
  %v4248 = vld [vmem:[%s2 + $0xa0] sm:$0xff]
  %v4249 = vld [vmem:[%s2 + $0xa8] sm:$0xff]
  %v4250 = vld [vmem:[%s2 + $0xb0] sm:$0xff]
  %v4251 = vld [vmem:[%s2 + $0xb8] sm:$0xff]
  %v4252 = vld [vmem:[%s2 + $0xc0] sm:$0xff]
  %vm4253 = vcmask 588800
  %v4255 = vsel %vm4253, %v4197, 0
  %v4258 = vsel %vm4253, %v4199, 0
  %v4261 = vsel %vm4253, %v4201, 0
  %v4264 = vsel %vm4253, %v4203, 0
  %v4267 = vsel %vm4253, %v4205, 0
  %v4270 = vsel %vm4253, %v4207, 0
  %v4273 = vsel %vm4253, %v4209, 0
  %v4276 = vsel %vm4253, %v4211, 0
  %v4279 = vsel %vm4253, %v4213, 0
  %v4282 = vsel %vm4253, %v4215, 0
  %v4285 = vsel %vm4253, %v4217, 0
  %v4288 = vsel %vm4253, %v4219, 0
  %v4291 = vsel %vm4253, %v4221, 0
  %v4294 = vsel %vm4253, %v4223, 0
  %v4297 = vsel %vm4253, %v4225, 0
  %v4300 = vsel %vm4253, %v4227, 0
  %4302 = vmatprep.subr.mxu0 0.0
  %4303 = vmatpush1.msra.mxu0 %v4243
  %4304 = vmatprep.subr.mxu0 0.0
  %4305 = vmatpush1.msra.mxu0 %v4242
  %4306 = vmatprep.subr.mxu0 0.0
  %4307 = vmatpush1.msra.mxu0 %v4241
  %4308 = vmatprep.subr.mxu0 0.0
  %4309 = vmatpush1.msra.mxu0 %v4240
  %4310 = vmatprep.subr.mxu0 0.0
  %4311 = vmatpush1.msra.mxu0 %v4239
  %4312 = vmatprep.subr.mxu0 0.0
  %4313 = vmatpush1.msra.mxu0 %v4238
  %4314 = vmatprep.subr.mxu0 0.0
  %4315 = vmatpush1.msra.mxu0 %v4237
  %4316 = vmatprep.subr.mxu0 0.0
  %4317 = vmatpush1.msra.mxu0 %v4236
  %4318 = vmatprep.subr.mxu0 0.0
  %4319 = vmatpush1.msra.mxu0 %v4235
  %4320 = vmatprep.subr.mxu0 0.0
  %4321 = vmatpush1.msra.mxu0 %v4234
  %4322 = vmatprep.subr.mxu0 0.0
  %4323 = vmatpush1.msra.mxu0 %v4233
  %4324 = vmatprep.subr.mxu0 0.0
  %4325 = vmatpush1.msra.mxu0 %v4232
  %4326 = vmatprep.subr.mxu0 0.0
  %4327 = vmatpush1.msra.mxu0 %v4231
  %4328 = vmatprep.subr.mxu0 0.0
  %4329 = vmatpush1.msra.mxu0 %v4230
  %4330 = vmatprep.subr.mxu0 0.0
  %4331 = vmatpush1.msra.mxu0 %v4229
  %4332 = vmatprep.subr.mxu0 0.0
  %4333 = vmatpush1.msra.mxu0 %v4228
  %4334 = vmatprep.subr.mxu0 0.0
  %4335 = vmatpush2.msra.mxu0 0.0
  %4336 = vmatprep.subr.mxu0 0.0
  %4337 = vmatpush2.msra.mxu0 0.0
  %4338 = vmatprep.subr.mxu0 0.0
  %4339 = vmatpush2.msra.mxu0 0.0
  %4340 = vmatprep.subr.mxu0 0.0
  %4341 = vmatpush2.msra.mxu0 0.0
  %4342 = vmatprep.subr.mxu0 0.0
  %4343 = vmatpush2.msra.mxu0 0.0
  %4344 = vmatprep.subr.mxu0 0.0
  %4345 = vmatpush2.msra.mxu0 0.0
  %4346 = vmatprep.subr.mxu0 0.0
  %4347 = vmatpush2.msra.mxu0 0.0
  %4348 = vmatprep.subr.mxu0 0.0
  %4349 = vmatpush2.msra.mxu0 %v4252
  %4350 = vmatprep.subr.mxu0 0.0
  %4351 = vmatpush2.msra.mxu0 %v4251
  %4352 = vmatprep.subr.mxu0 0.0
  %4353 = vmatpush2.msra.mxu0 %v4250
  %4354 = vmatprep.subr.mxu0 0.0
  %4355 = vmatpush2.msra.mxu0 %v4249
  %4356 = vmatprep.subr.mxu0 0.0
  %4357 = vmatpush2.msra.mxu0 %v4248
  %4358 = vmatprep.subr.mxu0 0.0
  %4359 = vmatpush2.msra.mxu0 %v4247
  %4360 = vmatprep.subr.mxu0 0.0
  %4361 = vmatpush2.msra.mxu0 %v4246
  %4362 = vmatprep.subr.mxu0 0.0
  %4363 = vmatpush2.msra.mxu0 %v4245
  %4364 = vmatprep.subr.mxu0 0.0
  %4365 = vmatpush2.msra.mxu0 %v4244
  %4366 = vmatprep.mubr.f32.mxu0 %v4255
  %4367 = vmatmul.mubr.f32.gmra.mxu0 %v4196
  %v4368 = vpop.f32.mrf.mxu0
  %v4369 = vadd.f32 0.0, %v4368
  %v4370 = vpop.f32.mrf.mxu0
  %4371 = vmatprep.mubr.f32.mxu0 %v4258
  %4372 = vmatmul.mubr.f32.gmra.mxu0 %v4198
  %v4373 = vpop.f32.mrf.mxu0
  %v4374 = vadd.f32 0.0, %v4373
  %v4375 = vpop.f32.mrf.mxu0
  %4376 = vmatprep.mubr.f32.mxu0 %v4261
  %4377 = vmatmul.mubr.f32.gmra.mxu0 %v4200
  %v4378 = vpop.f32.mrf.mxu0
  %v4379 = vadd.f32 0.0, %v4378
  %v4380 = vpop.f32.mrf.mxu0
  %4381 = vmatprep.mubr.f32.mxu0 %v4264
  %4382 = vmatmul.mubr.f32.gmra.mxu0 %v4202
  %v4383 = vpop.f32.mrf.mxu0
  %v4384 = vadd.f32 0.0, %v4383
  %v4385 = vpop.f32.mrf.mxu0
  %4386 = vmatprep.mubr.f32.mxu0 %v4267
  %4387 = vmatmul.mubr.f32.gmra.mxu0 %v4204
  %v4388 = vpop.f32.mrf.mxu0
  %v4389 = vadd.f32 0.0, %v4388
  %v4390 = vpop.f32.mrf.mxu0
  %4391 = vmatprep.mubr.f32.mxu0 %v4270
  %4392 = vmatmul.mubr.f32.gmra.mxu0 %v4206
  %v4393 = vpop.f32.mrf.mxu0
  %v4394 = vadd.f32 0.0, %v4393
  %v4395 = vpop.f32.mrf.mxu0
  %4396 = vmatprep.mubr.f32.mxu0 %v4273
  %4397 = vmatmul.mubr.f32.gmra.mxu0 %v4208
  %v4398 = vpop.f32.mrf.mxu0
  %v4399 = vadd.f32 0.0, %v4398
  %v4400 = vpop.f32.mrf.mxu0
  %4401 = vmatprep.mubr.f32.mxu0 %v4276
  %4402 = vmatmul.mubr.f32.gmra.mxu0 %v4210
  %v4403 = vpop.f32.mrf.mxu0
  %v4404 = vadd.f32 0.0, %v4403
  %v4405 = vpop.f32.mrf.mxu0
  %4406 = vmatprep.mubr.f32.mxu0 %v4279
  %4407 = vmatmul.mubr.f32.gmra.mxu0 %v4212
  %v4408 = vpop.f32.mrf.mxu0
  %v4409 = vadd.f32 0.0, %v4408
  %v4410 = vpop.f32.mrf.mxu0
  %4411 = vmatprep.mubr.f32.mxu0 %v4282
  %4412 = vmatmul.mubr.f32.gmra.mxu0 %v4214
  %v4413 = vpop.f32.mrf.mxu0
  %v4414 = vadd.f32 0.0, %v4413
  %v4415 = vpop.f32.mrf.mxu0
  %4416 = vmatprep.mubr.f32.mxu0 %v4285
  %4417 = vmatmul.mubr.f32.gmra.mxu0 %v4216
  %v4418 = vpop.f32.mrf.mxu0
  %v4419 = vadd.f32 0.0, %v4418
  %v4420 = vpop.f32.mrf.mxu0
  %4421 = vmatprep.mubr.f32.mxu0 %v4288
  %4422 = vmatmul.mubr.f32.gmra.mxu0 %v4218
  %v4423 = vpop.f32.mrf.mxu0
  %v4424 = vadd.f32 0.0, %v4423
  %v4425 = vpop.f32.mrf.mxu0
  %4426 = vmatprep.mubr.f32.mxu0 %v4291
  %4427 = vmatmul.mubr.f32.gmra.mxu0 %v4220
  %v4428 = vpop.f32.mrf.mxu0
  %v4429 = vadd.f32 0.0, %v4428
  %v4430 = vpop.f32.mrf.mxu0
  %4431 = vmatprep.mubr.f32.mxu0 %v4294
  %4432 = vmatmul.mubr.f32.gmra.mxu0 %v4222
  %v4433 = vpop.f32.mrf.mxu0
  %v4434 = vadd.f32 0.0, %v4433
  %v4435 = vpop.f32.mrf.mxu0
  %4436 = vmatprep.mubr.f32.mxu0 %v4297
  %4437 = vmatmul.mubr.f32.gmra.mxu0 %v4224
  %v4438 = vpop.f32.mrf.mxu0
  %v4439 = vadd.f32 0.0, %v4438
  %v4440 = vpop.f32.mrf.mxu0
  %4441 = vmatprep.mubr.f32.mxu0 %v4300
  %4442 = vmatmul.mubr.f32.gmra.mxu0 %v4226
  %v4443 = vpop.f32.mrf.mxu0
  %v4444 = vadd.f32 0.0, %v4443
  %v4445 = vpop.f32.mrf.mxu0
  %4446 = vdwg.mxu0
  %4447 = vxpose.xlu0.b32.start [1/16] %v4369, 128
  %4448 = vxpose.xlu0.b32.cont [2/16] %v4374, 128
  %4449 = vxpose.xlu0.b32.cont [3/16] %v4379, 128
  %4450 = vxpose.xlu0.b32.cont [4/16] %v4384, 128
  %4451 = vxpose.xlu0.b32.cont [5/16] %v4389, 128
  %4452 = vxpose.xlu0.b32.cont [6/16] %v4394, 128
  %4453 = vxpose.xlu0.b32.cont [7/16] %v4399, 128
  %4454 = vxpose.xlu0.b32.cont [8/16] %v4404, 128
  %4455 = vxpose.xlu0.b32.cont [9/16] %v4409, 128
  %4456 = vxpose.xlu0.b32.cont [10/16] %v4414, 128
  %4457 = vxpose.xlu0.b32.cont [11/16] %v4419, 128
  %4458 = vxpose.xlu0.b32.cont [12/16] %v4424, 128
  %4459 = vxpose.xlu0.b32.cont [13/16] %v4429, 128
  %4460 = vxpose.xlu0.b32.cont [14/16] %v4434, 128
  %4461 = vxpose.xlu0.b32.cont [15/16] %v4439, 128
  %4462 = vxpose.xlu0.b32.end [16/16] %v4444, 128
  %v4463 = vpop.trf.xlu0
  %v4464 = vpop.trf.xlu0
  %v4465 = vpop.trf.xlu0
  %v4466 = vpop.trf.xlu0
  %v4467 = vpop.trf.xlu0
  %v4468 = vpop.trf.xlu0
  %v4469 = vpop.trf.xlu0
  %v4470 = vpop.trf.xlu0
  %v4471 = vpop.trf.xlu0
  %v4472 = vpop.trf.xlu0
  %v4473 = vpop.trf.xlu0
  %v4474 = vpop.trf.xlu0
  %v4475 = vpop.trf.xlu0
  %v4476 = vpop.trf.xlu0
  %v4477 = vpop.trf.xlu0
  %v4478 = vpop.trf.xlu0
  %4479 = vadd.xlane.f32.xlu0 %v4463
  %v4480 = vpop.xlane.xlu0 %4479
  %v4481 = vmul.f32 %v4480, %v2255
  %v4482 = vsub.f32 %v4463, %v4481
  %v4483 = vmul.f32 %v4482, %v4482
  %4484 = vadd.xlane.f32.xlu0 %v4483
  %v4485 = vpop.xlane.xlu0 %4484
  %v4486 = vmul.f32 %v4485, %v2255
  %v4487 = vadd.f32 %v4486, 1e-05
  %v4488 = vrsqrt.pop %v4487
  %v4489 = vmul.f32 %v4482, %v4488
  %vm4490 = vcmp.ge.f32.partialorder %v4489, 0.0
  %v4491 = vmul.f32 %v4489, 0.1
  %v4492 = vsel %vm4490, %v4489, %v4491
  %4493 = vst [vmem:[%s3] sm:$0xff] %v4492
  // Predicated region
  $region14: #{down_forward.1} parent=0 // pred_check
    _
  $region15: #{down_forward.1} parent=0 // pred_check_branch
    %4495 = sbr.rel (0) target = $region17
  $region16: #{down_forward.1} parent=0 // pred_region
    _
  $region17: #{down_forward.1} parent=0 // pred_fallthru
    _
  // Predicated region
  $region18: #{down_forward.1} parent=0 // pred_check
    _
  $region19: #{down_forward.1} parent=0 // pred_check_branch
    %4497 = sbr.rel (0) target = $region21
  $region20: #{down_forward.1} parent=0 // pred_region
    _
  $region21: #{down_forward.1} parent=0 // pred_fallthru
    _

</llo_original>
